<compile_context>
chip_gen: v5e
topology: v5e:2x2
jax: 0.10.0
libtpu: 0.0.40
codegen_flags: <defaults>
</compile_context>

<pallas_src>
import jax
import jax.numpy as jnp
import numpy as np
from jax.experimental import pallas as pl
from jax.experimental.pallas import tpu as pltpu


def _digits_convnet_kernel(x_ref, w1_ref, b1_ref, w2_ref, b2_ref,
                           fcw_ref, fcb_ref, out_ref):
    # x_ref  : (8, 8, TN)  VMEM  images, batch on lanes
    # w1_ref : (72,)       SMEM  conv1 weights, index [ci*9 + 3*di + dj]
    # b1_ref : (8,)        SMEM  conv1 bias
    # w2_ref : (4, 72)     VMEM  conv2 weights, [co, ci*9 + 3*i + j]
    # b2_ref : (4, 1)      VMEM  conv2 bias
    # fcw_ref: (10, 4)     VMEM  fc weight
    # fcb_ref: (10, 1)     VMEM  fc bias
    # out_ref: (10, TN)    VMEM  logits, batch on lanes
    tn = x_ref.shape[-1]

    # Three sublane-shifted input copies (dj = 0, 1, 2).  Every conv1 tap is a
    # free major-dim slice of one of these.
    xs = [x_ref[:, dj:dj + 6, :] for dj in range(3)]          # each (8, 6, TN)

    w2 = w2_ref[...]                                          # (4, 72)
    acc2 = jnp.zeros((4, tn), jnp.float32)                    # conv2 acc, co on sublanes

    for ci in range(8):                                       # conv1 output channels
        b1c = b1_ref[ci]
        for i in range(3):                                    # pooled output row
            # conv1 rows (2i, 2i+1), bias deferred: 9 scalar-broadcast MACs on (2,6,TN).
            acc = xs[0][2 * i:2 * i + 2] * w1_ref[ci * 9]
            for p in range(1, 9):
                di, dj = p // 3, p % 3
                acc = acc + xs[dj][2 * i + di:2 * i + di + 2] * w1_ref[ci * 9 + p]
            # 2x2 max-pool row-reduce, then bias + ReLU on the (6,TN) row-max
            # (add-constant and ReLU commute with max -> identical result,
            #  half the vreg-rows of doing it pre-pool).
            rm = jnp.maximum(acc[0], acc[1])                  # (6, TN)
            rm = jnp.maximum(rm + b1c, 0.0)
            for j in range(3):                                # pooled output col
                pv = jnp.maximum(rm[2 * j:2 * j + 1, :],
                                 rm[2 * j + 1:2 * j + 2, :])  # (1, TN)
                k = ci * 9 + 3 * i + j
                # Dense conv2 MAC: pooled value broadcast over 4 output channels.
                acc2 = acc2 + pv * w2[:, k:k + 1]             # (4, TN)

    feat = jnp.maximum(acc2 + b2_ref[...], 0.0)               # conv2 bias + ReLU, (4, TN)

    # fc (4 -> 10) densified onto a single (10, TN) tile, lane-dense store.
    fcw = fcw_ref[...]                                        # (10, 4)
    logits = fcb_ref[...] + feat[0:1, :] * fcw[:, 0:1]
    for c in range(1, 4):
        logits = logits + feat[c:c + 1, :] * fcw[:, c:c + 1]
    out_ref[...] = logits


def _pick_tile_n(n):
    # Aim for >=2 grid steps (v7x megacore) while keeping tiles large enough
    # (<=1024 lanes) to amortize the ~0.35us per-grid-step overhead; floor is
    # one 128-lane vreg.  n is a static shape -> plain Python math at trace time.
    t = -(-n // 2)
    t = -(-t // 128) * 128
    return max(128, min(1024, t))


@jax.jit
def digits_convnet_forward(x, kern1, bias1, kern2, bias2, fc_weight, fc_bias):
    """x: (N, 8, 8) f32; params follow the PyTorch module's shapes; returns (N, 10)."""
    n = x.shape[0]
    tile_n = _pick_tile_n(n)
    n_pad = -(-n // tile_n) * tile_n
    x = x.astype(jnp.float32)
    if n_pad != n:
        x = jnp.pad(x, ((0, n_pad - n), (0, 0), (0, 0)))
    # Batch-on-lanes layout.  (For very large / repeated batches, store inputs
    # as (8, 8, N) upstream to avoid this extra HBM transpose pass.)
    x_t = jnp.transpose(x, (1, 2, 0))                                        # (8, 8, n_pad)

    # Parameter plumbing (plain JAX glue).
    w1 = kern1.reshape(-1).astype(jnp.float32)                               # (72,)  SMEM
    b1 = bias1.astype(jnp.float32)                                           # (8,)   SMEM
    w2 = kern2.reshape(4, 72).astype(jnp.float32)                            # (4,72) VMEM
    b2 = bias2.reshape(4, 1).astype(jnp.float32)                             # (4,1)  VMEM
    fcw = fc_weight.astype(jnp.float32)                                      # (10,4) VMEM
    fcb = fc_bias.reshape(10, 1).astype(jnp.float32)                         # (10,1) VMEM

    out_t = pl.pallas_call(
        _digits_convnet_kernel,
        out_shape=jax.ShapeDtypeStruct((10, n_pad), jnp.float32),
        grid=(n_pad // tile_n,),
        in_specs=[
            pl.BlockSpec((8, 8, tile_n), lambda i: (0, 0, i)),               # x, batch-tiled
            pl.BlockSpec(memory_space=pltpu.MemorySpace.SMEM),               # w1 scalars
            pl.BlockSpec(memory_space=pltpu.MemorySpace.SMEM),               # b1 scalars
            pl.BlockSpec((4, 72), lambda i: (0, 0)),                         # w2 table
            pl.BlockSpec((4, 1), lambda i: (0, 0)),                          # b2
            pl.BlockSpec((10, 4), lambda i: (0, 0)),                         # fc weight
            pl.BlockSpec((10, 1), lambda i: (0, 0)),                         # fc bias
        ],
        out_specs=pl.BlockSpec((10, tile_n), lambda i: (0, i)),
        compiler_params=pltpu.CompilerParams(
            dimension_semantics=("parallel",)),
    )(x_t, w1, b1, w2, b2, fcw, fcb)

    return out_t.T[:n]                                                       # (N, 10)


def _reference_forward(x, kern1, bias1, kern2, bias2, fc_weight, fc_bias):
    """Pure-numpy reference matching the PyTorch forward semantics."""
    x = np.asarray(x, np.float32)
    k1 = np.asarray(kern1, np.float32)[:, 0]     # (8, 3, 3)
    k2 = np.asarray(kern2, np.float32)           # (4, 8, 3, 3)
    b1 = np.asarray(bias1, np.float32)
    b2 = np.asarray(bias2, np.float32)
    fw = np.asarray(fc_weight, np.float32)
    fb = np.asarray(fc_bias, np.float32)
    n = x.shape[0]

    conv1 = np.zeros((n, 8, 6, 6), np.float32)
    for c in range(8):
        for y in range(6):
            for z in range(6):
                conv1[:, c, y, z] = (x[:, y:y + 3, z:z + 3] * k1[c]).sum(axis=(1, 2)) + b1[c]
    conv1 = np.maximum(conv1, 0.0)
    pooled = conv1.reshape(n, 8, 3, 2, 3, 2).max(axis=(3, 5))   # (n, 8, 3, 3)
    conv2 = np.einsum('ncij,ocij->no', pooled, k2) + b2
    conv2 = np.maximum(conv2, 0.0)
    return conv2 @ fw.T + fb


if __name__ == "__main__":
    key = jax.random.PRNGKey(0)
    kx, k1, kb1, k2, kb2, kf, kfb = jax.random.split(key, 7)

    N = 4
    x = jax.random.normal(kx, (N, 8, 8), jnp.float32)
    kern1 = jax.random.normal(k1, (8, 1, 3, 3), jnp.float32) * 0.3
    bias1 = jax.random.normal(kb1, (8,), jnp.float32) * 0.1
    kern2 = jax.random.normal(k2, (4, 8, 3, 3), jnp.float32) * 0.2
    bias2 = jax.random.normal(kb2, (4,), jnp.float32) * 0.1
    fc_weight = jax.random.normal(kf, (10, 4), jnp.float32) * 0.3
    fc_bias = jax.random.normal(kfb, (10,), jnp.float32) * 0.1

    out = digits_convnet_forward(x, kern1, bias1, kern2, bias2, fc_weight, fc_bias)
    out = jax.block_until_ready(out)

    ref = _reference_forward(x, kern1, bias1, kern2, bias2, fc_weight, fc_bias)
    assert out.shape == (N, 10), out.shape
    np.testing.assert_allclose(np.asarray(out), ref, rtol=1e-3, atol=1e-3)
    print("KERNEL_OK")
</pallas_src>

<mosaic_0001>
module attributes {stable_mosaic.version = 11 : i64} {
  func.func @_digits_convnet_kernel(%arg0: i32, %arg1: memref<8x8x128xf32, #tpu.memory_space<vmem>>, %arg2: memref<72xf32, #tpu.memory_space<smem>>, %arg3: memref<8xf32, #tpu.memory_space<smem>>, %arg4: memref<4x72xf32, #tpu.memory_space<vmem>>, %arg5: memref<4x1xf32, #tpu.memory_space<vmem>>, %arg6: memref<10x4xf32, #tpu.memory_space<vmem>>, %arg7: memref<10x1xf32, #tpu.memory_space<vmem>>, %arg8: memref<10x128xf32, #tpu.memory_space<vmem>>) attributes {dimension_semantics = [#tpu.dimension_semantics<parallel>], iteration_bounds = array<i64: 1>, scalar_prefetch = 0 : i64, scratch_operands = 0 : i64, tpu.core_type = #tpu.core_type<tc>, window_params = [{transform_indices = @transform_0, window_bounds = array<i64: 8, 8, 128>}, {transform_indices = @transform_1, window_bounds = array<i64: 72>}, {transform_indices = @transform_2, window_bounds = array<i64: 8>}, {pipeline_mode = #tpu.pipeline_mode<synchronous>, transform_indices = @transform_3, window_bounds = array<i64: 4, 72>}, {pipeline_mode = #tpu.pipeline_mode<synchronous>, transform_indices = @transform_4, window_bounds = array<i64: 4, 1>}, {pipeline_mode = #tpu.pipeline_mode<synchronous>, transform_indices = @transform_5, window_bounds = array<i64: 10, 4>}, {pipeline_mode = #tpu.pipeline_mode<synchronous>, transform_indices = @transform_6, window_bounds = array<i64: 10, 1>}, {transform_indices = @transform_7, window_bounds = array<i64: 10, 128>}]} {
    %c0 = arith.constant 0 : index
    %c0_0 = arith.constant 0 : index
    %c0_1 = arith.constant 0 : index
    %0 = vector.load %arg1[%c0, %c0_0, %c0_1] : memref<8x8x128xf32, #tpu.memory_space<vmem>>, vector<8x6x128xf32>
    %c0_2 = arith.constant 0 : index
    %c1 = arith.constant 1 : index
    %c0_3 = arith.constant 0 : index
    %1 = vector.load %arg1[%c0_2, %c1, %c0_3] : memref<8x8x128xf32, #tpu.memory_space<vmem>>, vector<8x6x128xf32>
    %c0_4 = arith.constant 0 : index
    %c2 = arith.constant 2 : index
    %c0_5 = arith.constant 0 : index
    %2 = vector.load %arg1[%c0_4, %c2, %c0_5] : memref<8x8x128xf32, #tpu.memory_space<vmem>>, vector<8x6x128xf32>
    %c0_6 = arith.constant 0 : index
    %c0_7 = arith.constant 0 : index
    %3 = vector.load %arg4[%c0_6, %c0_7] : memref<4x72xf32, #tpu.memory_space<vmem>>, vector<4x72xf32>
    %cst = arith.constant 0.000000e+00 : f32
    %4 = vector.broadcast %cst : f32 to vector<4x128xf32>
    %c0_8 = arith.constant 0 : index
    %5 = memref.load %arg3[%c0_8] : memref<8xf32, #tpu.memory_space<smem>>
    %6 = vector.extract_strided_slice %0 {offsets = [0, 0, 0], sizes = [2, 6, 128], strides = [1, 1, 1]} : vector<8x6x128xf32> to vector<2x6x128xf32>
    %c0_9 = arith.constant 0 : index
    %7 = memref.load %arg2[%c0_9] : memref<72xf32, #tpu.memory_space<smem>>
    %8 = vector.broadcast %7 : f32 to vector<2x6x128xf32>
    %9 = arith.mulf %6, %8 : vector<2x6x128xf32>
    %10 = vector.extract_strided_slice %1 {offsets = [0, 0, 0], sizes = [2, 6, 128], strides = [1, 1, 1]} : vector<8x6x128xf32> to vector<2x6x128xf32>
    %c1_10 = arith.constant 1 : index
    %11 = memref.load %arg2[%c1_10] : memref<72xf32, #tpu.memory_space<smem>>
    %12 = vector.broadcast %11 : f32 to vector<2x6x128xf32>
    %13 = arith.mulf %10, %12 : vector<2x6x128xf32>
    %14 = arith.addf %9, %13 : vector<2x6x128xf32>
    %15 = vector.extract_strided_slice %2 {offsets = [0, 0, 0], sizes = [2, 6, 128], strides = [1, 1, 1]} : vector<8x6x128xf32> to vector<2x6x128xf32>
    %c2_11 = arith.constant 2 : index
    %16 = memref.load %arg2[%c2_11] : memref<72xf32, #tpu.memory_space<smem>>
    %17 = vector.broadcast %16 : f32 to vector<2x6x128xf32>
    %18 = arith.mulf %15, %17 : vector<2x6x128xf32>
    %19 = arith.addf %14, %18 : vector<2x6x128xf32>
    %20 = vector.extract_strided_slice %0 {offsets = [1, 0, 0], sizes = [2, 6, 128], strides = [1, 1, 1]} : vector<8x6x128xf32> to vector<2x6x128xf32>
    %c3 = arith.constant 3 : index
    %21 = memref.load %arg2[%c3] : memref<72xf32, #tpu.memory_space<smem>>
    %22 = vector.broadcast %21 : f32 to vector<2x6x128xf32>
    %23 = arith.mulf %20, %22 : vector<2x6x128xf32>
    %24 = arith.addf %19, %23 : vector<2x6x128xf32>
    %25 = vector.extract_strided_slice %1 {offsets = [1, 0, 0], sizes = [2, 6, 128], strides = [1, 1, 1]} : vector<8x6x128xf32> to vector<2x6x128xf32>
    %c4 = arith.constant 4 : index
    %26 = memref.load %arg2[%c4] : memref<72xf32, #tpu.memory_space<smem>>
    %27 = vector.broadcast %26 : f32 to vector<2x6x128xf32>
    %28 = arith.mulf %25, %27 : vector<2x6x128xf32>
    %29 = arith.addf %24, %28 : vector<2x6x128xf32>
    %30 = vector.extract_strided_slice %2 {offsets = [1, 0, 0], sizes = [2, 6, 128], strides = [1, 1, 1]} : vector<8x6x128xf32> to vector<2x6x128xf32>
    %c5 = arith.constant 5 : index
    %31 = memref.load %arg2[%c5] : memref<72xf32, #tpu.memory_space<smem>>
    %32 = vector.broadcast %31 : f32 to vector<2x6x128xf32>
    %33 = arith.mulf %30, %32 : vector<2x6x128xf32>
    %34 = arith.addf %29, %33 : vector<2x6x128xf32>
    %35 = vector.extract_strided_slice %0 {offsets = [2, 0, 0], sizes = [2, 6, 128], strides = [1, 1, 1]} : vector<8x6x128xf32> to vector<2x6x128xf32>
    %c6 = arith.constant 6 : index
    %36 = memref.load %arg2[%c6] : memref<72xf32, #tpu.memory_space<smem>>
    %37 = vector.broadcast %36 : f32 to vector<2x6x128xf32>
    %38 = arith.mulf %35, %37 : vector<2x6x128xf32>
    %39 = arith.addf %34, %38 : vector<2x6x128xf32>
    %40 = vector.extract_strided_slice %1 {offsets = [2, 0, 0], sizes = [2, 6, 128], strides = [1, 1, 1]} : vector<8x6x128xf32> to vector<2x6x128xf32>
    %c7 = arith.constant 7 : index
    %41 = memref.load %arg2[%c7] : memref<72xf32, #tpu.memory_space<smem>>
    %42 = vector.broadcast %41 : f32 to vector<2x6x128xf32>
    %43 = arith.mulf %40, %42 : vector<2x6x128xf32>
    %44 = arith.addf %39, %43 : vector<2x6x128xf32>
    %45 = vector.extract_strided_slice %2 {offsets = [2, 0, 0], sizes = [2, 6, 128], strides = [1, 1, 1]} : vector<8x6x128xf32> to vector<2x6x128xf32>
    %c8 = arith.constant 8 : index
    %46 = memref.load %arg2[%c8] : memref<72xf32, #tpu.memory_space<smem>>
    %47 = vector.broadcast %46 : f32 to vector<2x6x128xf32>
    %48 = arith.mulf %45, %47 : vector<2x6x128xf32>
    %49 = arith.addf %44, %48 : vector<2x6x128xf32>
    %50 = vector.extract_strided_slice %49 {offsets = [0, 0, 0], sizes = [1, 6, 128], strides = [1, 1, 1]} : vector<2x6x128xf32> to vector<1x6x128xf32>
    %51 = vector.shape_cast %50 : vector<1x6x128xf32> to vector<6x128xf32>
    %52 = vector.extract_strided_slice %49 {offsets = [1, 0, 0], sizes = [1, 6, 128], strides = [1, 1, 1]} : vector<2x6x128xf32> to vector<1x6x128xf32>
    %53 = vector.shape_cast %52 : vector<1x6x128xf32> to vector<6x128xf32>
    %54 = arith.maximumf %51, %53 : vector<6x128xf32>
    %55 = vector.broadcast %5 : f32 to vector<6x128xf32>
    %56 = arith.addf %54, %55 : vector<6x128xf32>
    %cst_12 = arith.constant 0.000000e+00 : f32
    %57 = vector.broadcast %cst_12 : f32 to vector<6x128xf32>
    %58 = arith.maximumf %56, %57 : vector<6x128xf32>
    %59 = vector.extract_strided_slice %58 {offsets = [0, 0], sizes = [1, 128], strides = [1, 1]} : vector<6x128xf32> to vector<1x128xf32>
    %60 = vector.extract_strided_slice %58 {offsets = [1, 0], sizes = [1, 128], strides = [1, 1]} : vector<6x128xf32> to vector<1x128xf32>
    %61 = arith.maximumf %59, %60 : vector<1x128xf32>
    %62 = vector.extract_strided_slice %3 {offsets = [0, 0], sizes = [4, 1], strides = [1, 1]} : vector<4x72xf32> to vector<4x1xf32>
    %63 = vector.broadcast %61 : vector<1x128xf32> to vector<4x128xf32>
    %64 = vector.broadcast %62 : vector<4x1xf32> to vector<4x128xf32>
    %65 = arith.mulf %63, %64 : vector<4x128xf32>
    %66 = arith.addf %4, %65 : vector<4x128xf32>
    %67 = vector.extract_strided_slice %58 {offsets = [2, 0], sizes = [1, 128], strides = [1, 1]} : vector<6x128xf32> to vector<1x128xf32>
    %68 = vector.extract_strided_slice %58 {offsets = [3, 0], sizes = [1, 128], strides = [1, 1]} : vector<6x128xf32> to vector<1x128xf32>
    %69 = arith.maximumf %67, %68 : vector<1x128xf32>
    %70 = vector.extract_strided_slice %3 {offsets = [0, 1], sizes = [4, 1], strides = [1, 1]} : vector<4x72xf32> to vector<4x1xf32>
    %71 = vector.broadcast %69 : vector<1x128xf32> to vector<4x128xf32>
    %72 = vector.broadcast %70 : vector<4x1xf32> to vector<4x128xf32>
    %73 = arith.mulf %71, %72 : vector<4x128xf32>
    %74 = arith.addf %66, %73 : vector<4x128xf32>
    %75 = vector.extract_strided_slice %58 {offsets = [4, 0], sizes = [1, 128], strides = [1, 1]} : vector<6x128xf32> to vector<1x128xf32>
    %76 = vector.extract_strided_slice %58 {offsets = [5, 0], sizes = [1, 128], strides = [1, 1]} : vector<6x128xf32> to vector<1x128xf32>
    %77 = arith.maximumf %75, %76 : vector<1x128xf32>
    %78 = vector.extract_strided_slice %3 {offsets = [0, 2], sizes = [4, 1], strides = [1, 1]} : vector<4x72xf32> to vector<4x1xf32>
    %79 = vector.broadcast %77 : vector<1x128xf32> to vector<4x128xf32>
    %80 = vector.broadcast %78 : vector<4x1xf32> to vector<4x128xf32>
    %81 = arith.mulf %79, %80 : vector<4x128xf32>
    %82 = arith.addf %74, %81 : vector<4x128xf32>
    %83 = vector.extract_strided_slice %0 {offsets = [2, 0, 0], sizes = [2, 6, 128], strides = [1, 1, 1]} : vector<8x6x128xf32> to vector<2x6x128xf32>
    %c0_13 = arith.constant 0 : index
    %84 = memref.load %arg2[%c0_13] : memref<72xf32, #tpu.memory_space<smem>>
    %85 = vector.broadcast %84 : f32 to vector<2x6x128xf32>
    %86 = arith.mulf %83, %85 : vector<2x6x128xf32>
    %87 = vector.extract_strided_slice %1 {offsets = [2, 0, 0], sizes = [2, 6, 128], strides = [1, 1, 1]} : vector<8x6x128xf32> to vector<2x6x128xf32>
    %c1_14 = arith.constant 1 : index
    %88 = memref.load %arg2[%c1_14] : memref<72xf32, #tpu.memory_space<smem>>
    %89 = vector.broadcast %88 : f32 to vector<2x6x128xf32>
    %90 = arith.mulf %87, %89 : vector<2x6x128xf32>
    %91 = arith.addf %86, %90 : vector<2x6x128xf32>
    %92 = vector.extract_strided_slice %2 {offsets = [2, 0, 0], sizes = [2, 6, 128], strides = [1, 1, 1]} : vector<8x6x128xf32> to vector<2x6x128xf32>
    %c2_15 = arith.constant 2 : index
    %93 = memref.load %arg2[%c2_15] : memref<72xf32, #tpu.memory_space<smem>>
    %94 = vector.broadcast %93 : f32 to vector<2x6x128xf32>
    %95 = arith.mulf %92, %94 : vector<2x6x128xf32>
    %96 = arith.addf %91, %95 : vector<2x6x128xf32>
    %97 = vector.extract_strided_slice %0 {offsets = [3, 0, 0], sizes = [2, 6, 128], strides = [1, 1, 1]} : vector<8x6x128xf32> to vector<2x6x128xf32>
    %c3_16 = arith.constant 3 : index
    %98 = memref.load %arg2[%c3_16] : memref<72xf32, #tpu.memory_space<smem>>
    %99 = vector.broadcast %98 : f32 to vector<2x6x128xf32>
    %100 = arith.mulf %97, %99 : vector<2x6x128xf32>
    %101 = arith.addf %96, %100 : vector<2x6x128xf32>
    %102 = vector.extract_strided_slice %1 {offsets = [3, 0, 0], sizes = [2, 6, 128], strides = [1, 1, 1]} : vector<8x6x128xf32> to vector<2x6x128xf32>
    %c4_17 = arith.constant 4 : index
    %103 = memref.load %arg2[%c4_17] : memref<72xf32, #tpu.memory_space<smem>>
    %104 = vector.broadcast %103 : f32 to vector<2x6x128xf32>
    %105 = arith.mulf %102, %104 : vector<2x6x128xf32>
    %106 = arith.addf %101, %105 : vector<2x6x128xf32>
    %107 = vector.extract_strided_slice %2 {offsets = [3, 0, 0], sizes = [2, 6, 128], strides = [1, 1, 1]} : vector<8x6x128xf32> to vector<2x6x128xf32>
    %c5_18 = arith.constant 5 : index
    %108 = memref.load %arg2[%c5_18] : memref<72xf32, #tpu.memory_space<smem>>
    %109 = vector.broadcast %108 : f32 to vector<2x6x128xf32>
    %110 = arith.mulf %107, %109 : vector<2x6x128xf32>
    %111 = arith.addf %106, %110 : vector<2x6x128xf32>
    %112 = vector.extract_strided_slice %0 {offsets = [4, 0, 0], sizes = [2, 6, 128], strides = [1, 1, 1]} : vector<8x6x128xf32> to vector<2x6x128xf32>
    %c6_19 = arith.constant 6 : index
    %113 = memref.load %arg2[%c6_19] : memref<72xf32, #tpu.memory_space<smem>>
    %114 = vector.broadcast %113 : f32 to vector<2x6x128xf32>
    %115 = arith.mulf %112, %114 : vector<2x6x128xf32>
    %116 = arith.addf %111, %115 : vector<2x6x128xf32>
    %117 = vector.extract_strided_slice %1 {offsets = [4, 0, 0], sizes = [2, 6, 128], strides = [1, 1, 1]} : vector<8x6x128xf32> to vector<2x6x128xf32>
    %c7_20 = arith.constant 7 : index
    %118 = memref.load %arg2[%c7_20] : memref<72xf32, #tpu.memory_space<smem>>
    %119 = vector.broadcast %118 : f32 to vector<2x6x128xf32>
    %120 = arith.mulf %117, %119 : vector<2x6x128xf32>
    %121 = arith.addf %116, %120 : vector<2x6x128xf32>
    %122 = vector.extract_strided_slice %2 {offsets = [4, 0, 0], sizes = [2, 6, 128], strides = [1, 1, 1]} : vector<8x6x128xf32> to vector<2x6x128xf32>
    %c8_21 = arith.constant 8 : index
    %123 = memref.load %arg2[%c8_21] : memref<72xf32, #tpu.memory_space<smem>>
    %124 = vector.broadcast %123 : f32 to vector<2x6x128xf32>
    %125 = arith.mulf %122, %124 : vector<2x6x128xf32>
    %126 = arith.addf %121, %125 : vector<2x6x128xf32>
    %127 = vector.extract_strided_slice %126 {offsets = [0, 0, 0], sizes = [1, 6, 128], strides = [1, 1, 1]} : vector<2x6x128xf32> to vector<1x6x128xf32>
    %128 = vector.shape_cast %127 : vector<1x6x128xf32> to vector<6x128xf32>
    %129 = vector.extract_strided_slice %126 {offsets = [1, 0, 0], sizes = [1, 6, 128], strides = [1, 1, 1]} : vector<2x6x128xf32> to vector<1x6x128xf32>
    %130 = vector.shape_cast %129 : vector<1x6x128xf32> to vector<6x128xf32>
    %131 = arith.maximumf %128, %130 : vector<6x128xf32>
    %132 = vector.broadcast %5 : f32 to vector<6x128xf32>
    %133 = arith.addf %131, %132 : vector<6x128xf32>
    %cst_22 = arith.constant 0.000000e+00 : f32
    %134 = vector.broadcast %cst_22 : f32 to vector<6x128xf32>
    %135 = arith.maximumf %133, %134 : vector<6x128xf32>
    %136 = vector.extract_strided_slice %135 {offsets = [0, 0], sizes = [1, 128], strides = [1, 1]} : vector<6x128xf32> to vector<1x128xf32>
    %137 = vector.extract_strided_slice %135 {offsets = [1, 0], sizes = [1, 128], strides = [1, 1]} : vector<6x128xf32> to vector<1x128xf32>
    %138 = arith.maximumf %136, %137 : vector<1x128xf32>
    %139 = vector.extract_strided_slice %3 {offsets = [0, 3], sizes = [4, 1], strides = [1, 1]} : vector<4x72xf32> to vector<4x1xf32>
    %140 = vector.broadcast %138 : vector<1x128xf32> to vector<4x128xf32>
    %141 = vector.broadcast %139 : vector<4x1xf32> to vector<4x128xf32>
    %142 = arith.mulf %140, %141 : vector<4x128xf32>
    %143 = arith.addf %82, %142 : vector<4x128xf32>
    %144 = vector.extract_strided_slice %135 {offsets = [2, 0], sizes = [1, 128], strides = [1, 1]} : vector<6x128xf32> to vector<1x128xf32>
    %145 = vector.extract_strided_slice %135 {offsets = [3, 0], sizes = [1, 128], strides = [1, 1]} : vector<6x128xf32> to vector<1x128xf32>
    %146 = arith.maximumf %144, %145 : vector<1x128xf32>
    %147 = vector.extract_strided_slice %3 {offsets = [0, 4], sizes = [4, 1], strides = [1, 1]} : vector<4x72xf32> to vector<4x1xf32>
    %148 = vector.broadcast %146 : vector<1x128xf32> to vector<4x128xf32>
    %149 = vector.broadcast %147 : vector<4x1xf32> to vector<4x128xf32>
    %150 = arith.mulf %148, %149 : vector<4x128xf32>
    %151 = arith.addf %143, %150 : vector<4x128xf32>
    %152 = vector.extract_strided_slice %135 {offsets = [4, 0], sizes = [1, 128], strides = [1, 1]} : vector<6x128xf32> to vector<1x128xf32>
    %153 = vector.extract_strided_slice %135 {offsets = [5, 0], sizes = [1, 128], strides = [1, 1]} : vector<6x128xf32> to vector<1x128xf32>
    %154 = arith.maximumf %152, %153 : vector<1x128xf32>
    %155 = vector.extract_strided_slice %3 {offsets = [0, 5], sizes = [4, 1], strides = [1, 1]} : vector<4x72xf32> to vector<4x1xf32>
    %156 = vector.broadcast %154 : vector<1x128xf32> to vector<4x128xf32>
    %157 = vector.broadcast %155 : vector<4x1xf32> to vector<4x128xf32>
    %158 = arith.mulf %156, %157 : vector<4x128xf32>
    %159 = arith.addf %151, %158 : vector<4x128xf32>
    %160 = vector.extract_strided_slice %0 {offsets = [4, 0, 0], sizes = [2, 6, 128], strides = [1, 1, 1]} : vector<8x6x128xf32> to vector<2x6x128xf32>
    %c0_23 = arith.constant 0 : index
    %161 = memref.load %arg2[%c0_23] : memref<72xf32, #tpu.memory_space<smem>>
    %162 = vector.broadcast %161 : f32 to vector<2x6x128xf32>
    %163 = arith.mulf %160, %162 : vector<2x6x128xf32>
    %164 = vector.extract_strided_slice %1 {offsets = [4, 0, 0], sizes = [2, 6, 128], strides = [1, 1, 1]} : vector<8x6x128xf32> to vector<2x6x128xf32>
    %c1_24 = arith.constant 1 : index
    %165 = memref.load %arg2[%c1_24] : memref<72xf32, #tpu.memory_space<smem>>
    %166 = vector.broadcast %165 : f32 to vector<2x6x128xf32>
    %167 = arith.mulf %164, %166 : vector<2x6x128xf32>
    %168 = arith.addf %163, %167 : vector<2x6x128xf32>
    %169 = vector.extract_strided_slice %2 {offsets = [4, 0, 0], sizes = [2, 6, 128], strides = [1, 1, 1]} : vector<8x6x128xf32> to vector<2x6x128xf32>
    %c2_25 = arith.constant 2 : index
    %170 = memref.load %arg2[%c2_25] : memref<72xf32, #tpu.memory_space<smem>>
    %171 = vector.broadcast %170 : f32 to vector<2x6x128xf32>
    %172 = arith.mulf %169, %171 : vector<2x6x128xf32>
    %173 = arith.addf %168, %172 : vector<2x6x128xf32>
    %174 = vector.extract_strided_slice %0 {offsets = [5, 0, 0], sizes = [2, 6, 128], strides = [1, 1, 1]} : vector<8x6x128xf32> to vector<2x6x128xf32>
    %c3_26 = arith.constant 3 : index
    %175 = memref.load %arg2[%c3_26] : memref<72xf32, #tpu.memory_space<smem>>
    %176 = vector.broadcast %175 : f32 to vector<2x6x128xf32>
    %177 = arith.mulf %174, %176 : vector<2x6x128xf32>
    %178 = arith.addf %173, %177 : vector<2x6x128xf32>
    %179 = vector.extract_strided_slice %1 {offsets = [5, 0, 0], sizes = [2, 6, 128], strides = [1, 1, 1]} : vector<8x6x128xf32> to vector<2x6x128xf32>
    %c4_27 = arith.constant 4 : index
    %180 = memref.load %arg2[%c4_27] : memref<72xf32, #tpu.memory_space<smem>>
    %181 = vector.broadcast %180 : f32 to vector<2x6x128xf32>
    %182 = arith.mulf %179, %181 : vector<2x6x128xf32>
    %183 = arith.addf %178, %182 : vector<2x6x128xf32>
    %184 = vector.extract_strided_slice %2 {offsets = [5, 0, 0], sizes = [2, 6, 128], strides = [1, 1, 1]} : vector<8x6x128xf32> to vector<2x6x128xf32>
    %c5_28 = arith.constant 5 : index
    %185 = memref.load %arg2[%c5_28] : memref<72xf32, #tpu.memory_space<smem>>
    %186 = vector.broadcast %185 : f32 to vector<2x6x128xf32>
    %187 = arith.mulf %184, %186 : vector<2x6x128xf32>
    %188 = arith.addf %183, %187 : vector<2x6x128xf32>
    %189 = vector.extract_strided_slice %0 {offsets = [6, 0, 0], sizes = [2, 6, 128], strides = [1, 1, 1]} : vector<8x6x128xf32> to vector<2x6x128xf32>
    %c6_29 = arith.constant 6 : index
    %190 = memref.load %arg2[%c6_29] : memref<72xf32, #tpu.memory_space<smem>>
    %191 = vector.broadcast %190 : f32 to vector<2x6x128xf32>
    %192 = arith.mulf %189, %191 : vector<2x6x128xf32>
    %193 = arith.addf %188, %192 : vector<2x6x128xf32>
    %194 = vector.extract_strided_slice %1 {offsets = [6, 0, 0], sizes = [2, 6, 128], strides = [1, 1, 1]} : vector<8x6x128xf32> to vector<2x6x128xf32>
    %c7_30 = arith.constant 7 : index
    %195 = memref.load %arg2[%c7_30] : memref<72xf32, #tpu.memory_space<smem>>
    %196 = vector.broadcast %195 : f32 to vector<2x6x128xf32>
    %197 = arith.mulf %194, %196 : vector<2x6x128xf32>
    %198 = arith.addf %193, %197 : vector<2x6x128xf32>
    %199 = vector.extract_strided_slice %2 {offsets = [6, 0, 0], sizes = [2, 6, 128], strides = [1, 1, 1]} : vector<8x6x128xf32> to vector<2x6x128xf32>
    %c8_31 = arith.constant 8 : index
    %200 = memref.load %arg2[%c8_31] : memref<72xf32, #tpu.memory_space<smem>>
    %201 = vector.broadcast %200 : f32 to vector<2x6x128xf32>
    %202 = arith.mulf %199, %201 : vector<2x6x128xf32>
    %203 = arith.addf %198, %202 : vector<2x6x128xf32>
    %204 = vector.extract_strided_slice %203 {offsets = [0, 0, 0], sizes = [1, 6, 128], strides = [1, 1, 1]} : vector<2x6x128xf32> to vector<1x6x128xf32>
    %205 = vector.shape_cast %204 : vector<1x6x128xf32> to vector<6x128xf32>
    %206 = vector.extract_strided_slice %203 {offsets = [1, 0, 0], sizes = [1, 6, 128], strides = [1, 1, 1]} : vector<2x6x128xf32> to vector<1x6x128xf32>
    %207 = vector.shape_cast %206 : vector<1x6x128xf32> to vector<6x128xf32>
    %208 = arith.maximumf %205, %207 : vector<6x128xf32>
    %209 = vector.broadcast %5 : f32 to vector<6x128xf32>
    %210 = arith.addf %208, %209 : vector<6x128xf32>
    %cst_32 = arith.constant 0.000000e+00 : f32
    %211 = vector.broadcast %cst_32 : f32 to vector<6x128xf32>
    %212 = arith.maximumf %210, %211 : vector<6x128xf32>
    %213 = vector.extract_strided_slice %212 {offsets = [0, 0], sizes = [1, 128], strides = [1, 1]} : vector<6x128xf32> to vector<1x128xf32>
    %214 = vector.extract_strided_slice %212 {offsets = [1, 0], sizes = [1, 128], strides = [1, 1]} : vector<6x128xf32> to vector<1x128xf32>
    %215 = arith.maximumf %213, %214 : vector<1x128xf32>
    %216 = vector.extract_strided_slice %3 {offsets = [0, 6], sizes = [4, 1], strides = [1, 1]} : vector<4x72xf32> to vector<4x1xf32>
    %217 = vector.broadcast %215 : vector<1x128xf32> to vector<4x128xf32>
    %218 = vector.broadcast %216 : vector<4x1xf32> to vector<4x128xf32>
    %219 = arith.mulf %217, %218 : vector<4x128xf32>
    %220 = arith.addf %159, %219 : vector<4x128xf32>
    %221 = vector.extract_strided_slice %212 {offsets = [2, 0], sizes = [1, 128], strides = [1, 1]} : vector<6x128xf32> to vector<1x128xf32>
    %222 = vector.extract_strided_slice %212 {offsets = [3, 0], sizes = [1, 128], strides = [1, 1]} : vector<6x128xf32> to vector<1x128xf32>
    %223 = arith.maximumf %221, %222 : vector<1x128xf32>
    %224 = vector.extract_strided_slice %3 {offsets = [0, 7], sizes = [4, 1], strides = [1, 1]} : vector<4x72xf32> to vector<4x1xf32>
    %225 = vector.broadcast %223 : vector<1x128xf32> to vector<4x128xf32>
    %226 = vector.broadcast %224 : vector<4x1xf32> to vector<4x128xf32>
    %227 = arith.mulf %225, %226 : vector<4x128xf32>
    %228 = arith.addf %220, %227 : vector<4x128xf32>
    %229 = vector.extract_strided_slice %212 {offsets = [4, 0], sizes = [1, 128], strides = [1, 1]} : vector<6x128xf32> to vector<1x128xf32>
    %230 = vector.extract_strided_slice %212 {offsets = [5, 0], sizes = [1, 128], strides = [1, 1]} : vector<6x128xf32> to vector<1x128xf32>
    %231 = arith.maximumf %229, %230 : vector<1x128xf32>
    %232 = vector.extract_strided_slice %3 {offsets = [0, 8], sizes = [4, 1], strides = [1, 1]} : vector<4x72xf32> to vector<4x1xf32>
    %233 = vector.broadcast %231 : vector<1x128xf32> to vector<4x128xf32>
    %234 = vector.broadcast %232 : vector<4x1xf32> to vector<4x128xf32>
    %235 = arith.mulf %233, %234 : vector<4x128xf32>
    %236 = arith.addf %228, %235 : vector<4x128xf32>
    %c1_33 = arith.constant 1 : index
    %237 = memref.load %arg3[%c1_33] : memref<8xf32, #tpu.memory_space<smem>>
    %238 = vector.extract_strided_slice %0 {offsets = [0, 0, 0], sizes = [2, 6, 128], strides = [1, 1, 1]} : vector<8x6x128xf32> to vector<2x6x128xf32>
    %c9 = arith.constant 9 : index
    %239 = memref.load %arg2[%c9] : memref<72xf32, #tpu.memory_space<smem>>
    %240 = vector.broadcast %239 : f32 to vector<2x6x128xf32>
    %241 = arith.mulf %238, %240 : vector<2x6x128xf32>
    %242 = vector.extract_strided_slice %1 {offsets = [0, 0, 0], sizes = [2, 6, 128], strides = [1, 1, 1]} : vector<8x6x128xf32> to vector<2x6x128xf32>
    %c10 = arith.constant 10 : index
    %243 = memref.load %arg2[%c10] : memref<72xf32, #tpu.memory_space<smem>>
    %244 = vector.broadcast %243 : f32 to vector<2x6x128xf32>
    %245 = arith.mulf %242, %244 : vector<2x6x128xf32>
    %246 = arith.addf %241, %245 : vector<2x6x128xf32>
    %247 = vector.extract_strided_slice %2 {offsets = [0, 0, 0], sizes = [2, 6, 128], strides = [1, 1, 1]} : vector<8x6x128xf32> to vector<2x6x128xf32>
    %c11 = arith.constant 11 : index
    %248 = memref.load %arg2[%c11] : memref<72xf32, #tpu.memory_space<smem>>
    %249 = vector.broadcast %248 : f32 to vector<2x6x128xf32>
    %250 = arith.mulf %247, %249 : vector<2x6x128xf32>
    %251 = arith.addf %246, %250 : vector<2x6x128xf32>
    %252 = vector.extract_strided_slice %0 {offsets = [1, 0, 0], sizes = [2, 6, 128], strides = [1, 1, 1]} : vector<8x6x128xf32> to vector<2x6x128xf32>
    %c12 = arith.constant 12 : index
    %253 = memref.load %arg2[%c12] : memref<72xf32, #tpu.memory_space<smem>>
    %254 = vector.broadcast %253 : f32 to vector<2x6x128xf32>
    %255 = arith.mulf %252, %254 : vector<2x6x128xf32>
    %256 = arith.addf %251, %255 : vector<2x6x128xf32>
    %257 = vector.extract_strided_slice %1 {offsets = [1, 0, 0], sizes = [2, 6, 128], strides = [1, 1, 1]} : vector<8x6x128xf32> to vector<2x6x128xf32>
    %c13 = arith.constant 13 : index
    %258 = memref.load %arg2[%c13] : memref<72xf32, #tpu.memory_space<smem>>
    %259 = vector.broadcast %258 : f32 to vector<2x6x128xf32>
    %260 = arith.mulf %257, %259 : vector<2x6x128xf32>
    %261 = arith.addf %256, %260 : vector<2x6x128xf32>
    %262 = vector.extract_strided_slice %2 {offsets = [1, 0, 0], sizes = [2, 6, 128], strides = [1, 1, 1]} : vector<8x6x128xf32> to vector<2x6x128xf32>
    %c14 = arith.constant 14 : index
    %263 = memref.load %arg2[%c14] : memref<72xf32, #tpu.memory_space<smem>>
    %264 = vector.broadcast %263 : f32 to vector<2x6x128xf32>
    %265 = arith.mulf %262, %264 : vector<2x6x128xf32>
    %266 = arith.addf %261, %265 : vector<2x6x128xf32>
    %267 = vector.extract_strided_slice %0 {offsets = [2, 0, 0], sizes = [2, 6, 128], strides = [1, 1, 1]} : vector<8x6x128xf32> to vector<2x6x128xf32>
    %c15 = arith.constant 15 : index
    %268 = memref.load %arg2[%c15] : memref<72xf32, #tpu.memory_space<smem>>
    %269 = vector.broadcast %268 : f32 to vector<2x6x128xf32>
    %270 = arith.mulf %267, %269 : vector<2x6x128xf32>
    %271 = arith.addf %266, %270 : vector<2x6x128xf32>
    %272 = vector.extract_strided_slice %1 {offsets = [2, 0, 0], sizes = [2, 6, 128], strides = [1, 1, 1]} : vector<8x6x128xf32> to vector<2x6x128xf32>
    %c16 = arith.constant 16 : index
    %273 = memref.load %arg2[%c16] : memref<72xf32, #tpu.memory_space<smem>>
    %274 = vector.broadcast %273 : f32 to vector<2x6x128xf32>
    %275 = arith.mulf %272, %274 : vector<2x6x128xf32>
    %276 = arith.addf %271, %275 : vector<2x6x128xf32>
    %277 = vector.extract_strided_slice %2 {offsets = [2, 0, 0], sizes = [2, 6, 128], strides = [1, 1, 1]} : vector<8x6x128xf32> to vector<2x6x128xf32>
    %c17 = arith.constant 17 : index
    %278 = memref.load %arg2[%c17] : memref<72xf32, #tpu.memory_space<smem>>
    %279 = vector.broadcast %278 : f32 to vector<2x6x128xf32>
    %280 = arith.mulf %277, %279 : vector<2x6x128xf32>
    %281 = arith.addf %276, %280 : vector<2x6x128xf32>
    %282 = vector.extract_strided_slice %281 {offsets = [0, 0, 0], sizes = [1, 6, 128], strides = [1, 1, 1]} : vector<2x6x128xf32> to vector<1x6x128xf32>
    %283 = vector.shape_cast %282 : vector<1x6x128xf32> to vector<6x128xf32>
    %284 = vector.extract_strided_slice %281 {offsets = [1, 0, 0], sizes = [1, 6, 128], strides = [1, 1, 1]} : vector<2x6x128xf32> to vector<1x6x128xf32>
    %285 = vector.shape_cast %284 : vector<1x6x128xf32> to vector<6x128xf32>
    %286 = arith.maximumf %283, %285 : vector<6x128xf32>
    %287 = vector.broadcast %237 : f32 to vector<6x128xf32>
    %288 = arith.addf %286, %287 : vector<6x128xf32>
    %cst_34 = arith.constant 0.000000e+00 : f32
    %289 = vector.broadcast %cst_34 : f32 to vector<6x128xf32>
    %290 = arith.maximumf %288, %289 : vector<6x128xf32>
    %291 = vector.extract_strided_slice %290 {offsets = [0, 0], sizes = [1, 128], strides = [1, 1]} : vector<6x128xf32> to vector<1x128xf32>
    %292 = vector.extract_strided_slice %290 {offsets = [1, 0], sizes = [1, 128], strides = [1, 1]} : vector<6x128xf32> to vector<1x128xf32>
    %293 = arith.maximumf %291, %292 : vector<1x128xf32>
    %294 = vector.extract_strided_slice %3 {offsets = [0, 9], sizes = [4, 1], strides = [1, 1]} : vector<4x72xf32> to vector<4x1xf32>
    %295 = vector.broadcast %293 : vector<1x128xf32> to vector<4x128xf32>
    %296 = vector.broadcast %294 : vector<4x1xf32> to vector<4x128xf32>
    %297 = arith.mulf %295, %296 : vector<4x128xf32>
    %298 = arith.addf %236, %297 : vector<4x128xf32>
    %299 = vector.extract_strided_slice %290 {offsets = [2, 0], sizes = [1, 128], strides = [1, 1]} : vector<6x128xf32> to vector<1x128xf32>
    %300 = vector.extract_strided_slice %290 {offsets = [3, 0], sizes = [1, 128], strides = [1, 1]} : vector<6x128xf32> to vector<1x128xf32>
    %301 = arith.maximumf %299, %300 : vector<1x128xf32>
    %302 = vector.extract_strided_slice %3 {offsets = [0, 10], sizes = [4, 1], strides = [1, 1]} : vector<4x72xf32> to vector<4x1xf32>
    %303 = vector.broadcast %301 : vector<1x128xf32> to vector<4x128xf32>
    %304 = vector.broadcast %302 : vector<4x1xf32> to vector<4x128xf32>
    %305 = arith.mulf %303, %304 : vector<4x128xf32>
    %306 = arith.addf %298, %305 : vector<4x128xf32>
    %307 = vector.extract_strided_slice %290 {offsets = [4, 0], sizes = [1, 128], strides = [1, 1]} : vector<6x128xf32> to vector<1x128xf32>
    %308 = vector.extract_strided_slice %290 {offsets = [5, 0], sizes = [1, 128], strides = [1, 1]} : vector<6x128xf32> to vector<1x128xf32>
    %309 = arith.maximumf %307, %308 : vector<1x128xf32>
    %310 = vector.extract_strided_slice %3 {offsets = [0, 11], sizes = [4, 1], strides = [1, 1]} : vector<4x72xf32> to vector<4x1xf32>
    %311 = vector.broadcast %309 : vector<1x128xf32> to vector<4x128xf32>
    %312 = vector.broadcast %310 : vector<4x1xf32> to vector<4x128xf32>
    %313 = arith.mulf %311, %312 : vector<4x128xf32>
    %314 = arith.addf %306, %313 : vector<4x128xf32>
    %315 = vector.extract_strided_slice %0 {offsets = [2, 0, 0], sizes = [2, 6, 128], strides = [1, 1, 1]} : vector<8x6x128xf32> to vector<2x6x128xf32>
    %c9_35 = arith.constant 9 : index
    %316 = memref.load %arg2[%c9_35] : memref<72xf32, #tpu.memory_space<smem>>
    %317 = vector.broadcast %316 : f32 to vector<2x6x128xf32>
    %318 = arith.mulf %315, %317 : vector<2x6x128xf32>
    %319 = vector.extract_strided_slice %1 {offsets = [2, 0, 0], sizes = [2, 6, 128], strides = [1, 1, 1]} : vector<8x6x128xf32> to vector<2x6x128xf32>
    %c10_36 = arith.constant 10 : index
    %320 = memref.load %arg2[%c10_36] : memref<72xf32, #tpu.memory_space<smem>>
    %321 = vector.broadcast %320 : f32 to vector<2x6x128xf32>
    %322 = arith.mulf %319, %321 : vector<2x6x128xf32>
    %323 = arith.addf %318, %322 : vector<2x6x128xf32>
    %324 = vector.extract_strided_slice %2 {offsets = [2, 0, 0], sizes = [2, 6, 128], strides = [1, 1, 1]} : vector<8x6x128xf32> to vector<2x6x128xf32>
    %c11_37 = arith.constant 11 : index
    %325 = memref.load %arg2[%c11_37] : memref<72xf32, #tpu.memory_space<smem>>
    %326 = vector.broadcast %325 : f32 to vector<2x6x128xf32>
    %327 = arith.mulf %324, %326 : vector<2x6x128xf32>
    %328 = arith.addf %323, %327 : vector<2x6x128xf32>
    %329 = vector.extract_strided_slice %0 {offsets = [3, 0, 0], sizes = [2, 6, 128], strides = [1, 1, 1]} : vector<8x6x128xf32> to vector<2x6x128xf32>
    %c12_38 = arith.constant 12 : index
    %330 = memref.load %arg2[%c12_38] : memref<72xf32, #tpu.memory_space<smem>>
    %331 = vector.broadcast %330 : f32 to vector<2x6x128xf32>
    %332 = arith.mulf %329, %331 : vector<2x6x128xf32>
    %333 = arith.addf %328, %332 : vector<2x6x128xf32>
    %334 = vector.extract_strided_slice %1 {offsets = [3, 0, 0], sizes = [2, 6, 128], strides = [1, 1, 1]} : vector<8x6x128xf32> to vector<2x6x128xf32>
    %c13_39 = arith.constant 13 : index
    %335 = memref.load %arg2[%c13_39] : memref<72xf32, #tpu.memory_space<smem>>
    %336 = vector.broadcast %335 : f32 to vector<2x6x128xf32>
    %337 = arith.mulf %334, %336 : vector<2x6x128xf32>
    %338 = arith.addf %333, %337 : vector<2x6x128xf32>
    %339 = vector.extract_strided_slice %2 {offsets = [3, 0, 0], sizes = [2, 6, 128], strides = [1, 1, 1]} : vector<8x6x128xf32> to vector<2x6x128xf32>
    %c14_40 = arith.constant 14 : index
    %340 = memref.load %arg2[%c14_40] : memref<72xf32, #tpu.memory_space<smem>>
    %341 = vector.broadcast %340 : f32 to vector<2x6x128xf32>
    %342 = arith.mulf %339, %341 : vector<2x6x128xf32>
    %343 = arith.addf %338, %342 : vector<2x6x128xf32>
    %344 = vector.extract_strided_slice %0 {offsets = [4, 0, 0], sizes = [2, 6, 128], strides = [1, 1, 1]} : vector<8x6x128xf32> to vector<2x6x128xf32>
    %c15_41 = arith.constant 15 : index
    %345 = memref.load %arg2[%c15_41] : memref<72xf32, #tpu.memory_space<smem>>
    %346 = vector.broadcast %345 : f32 to vector<2x6x128xf32>
    %347 = arith.mulf %344, %346 : vector<2x6x128xf32>
    %348 = arith.addf %343, %347 : vector<2x6x128xf32>
    %349 = vector.extract_strided_slice %1 {offsets = [4, 0, 0], sizes = [2, 6, 128], strides = [1, 1, 1]} : vector<8x6x128xf32> to vector<2x6x128xf32>
    %c16_42 = arith.constant 16 : index
    %350 = memref.load %arg2[%c16_42] : memref<72xf32, #tpu.memory_space<smem>>
    %351 = vector.broadcast %350 : f32 to vector<2x6x128xf32>
    %352 = arith.mulf %349, %351 : vector<2x6x128xf32>
    %353 = arith.addf %348, %352 : vector<2x6x128xf32>
    %354 = vector.extract_strided_slice %2 {offsets = [4, 0, 0], sizes = [2, 6, 128], strides = [1, 1, 1]} : vector<8x6x128xf32> to vector<2x6x128xf32>
    %c17_43 = arith.constant 17 : index
    %355 = memref.load %arg2[%c17_43] : memref<72xf32, #tpu.memory_space<smem>>
    %356 = vector.broadcast %355 : f32 to vector<2x6x128xf32>
    %357 = arith.mulf %354, %356 : vector<2x6x128xf32>
    %358 = arith.addf %353, %357 : vector<2x6x128xf32>
    %359 = vector.extract_strided_slice %358 {offsets = [0, 0, 0], sizes = [1, 6, 128], strides = [1, 1, 1]} : vector<2x6x128xf32> to vector<1x6x128xf32>
    %360 = vector.shape_cast %359 : vector<1x6x128xf32> to vector<6x128xf32>
    %361 = vector.extract_strided_slice %358 {offsets = [1, 0, 0], sizes = [1, 6, 128], strides = [1, 1, 1]} : vector<2x6x128xf32> to vector<1x6x128xf32>
    %362 = vector.shape_cast %361 : vector<1x6x128xf32> to vector<6x128xf32>
    %363 = arith.maximumf %360, %362 : vector<6x128xf32>
    %364 = vector.broadcast %237 : f32 to vector<6x128xf32>
    %365 = arith.addf %363, %364 : vector<6x128xf32>
    %cst_44 = arith.constant 0.000000e+00 : f32
    %366 = vector.broadcast %cst_44 : f32 to vector<6x128xf32>
    %367 = arith.maximumf %365, %366 : vector<6x128xf32>
    %368 = vector.extract_strided_slice %367 {offsets = [0, 0], sizes = [1, 128], strides = [1, 1]} : vector<6x128xf32> to vector<1x128xf32>
    %369 = vector.extract_strided_slice %367 {offsets = [1, 0], sizes = [1, 128], strides = [1, 1]} : vector<6x128xf32> to vector<1x128xf32>
    %370 = arith.maximumf %368, %369 : vector<1x128xf32>
    %371 = vector.extract_strided_slice %3 {offsets = [0, 12], sizes = [4, 1], strides = [1, 1]} : vector<4x72xf32> to vector<4x1xf32>
    %372 = vector.broadcast %370 : vector<1x128xf32> to vector<4x128xf32>
    %373 = vector.broadcast %371 : vector<4x1xf32> to vector<4x128xf32>
    %374 = arith.mulf %372, %373 : vector<4x128xf32>
    %375 = arith.addf %314, %374 : vector<4x128xf32>
    %376 = vector.extract_strided_slice %367 {offsets = [2, 0], sizes = [1, 128], strides = [1, 1]} : vector<6x128xf32> to vector<1x128xf32>
    %377 = vector.extract_strided_slice %367 {offsets = [3, 0], sizes = [1, 128], strides = [1, 1]} : vector<6x128xf32> to vector<1x128xf32>
    %378 = arith.maximumf %376, %377 : vector<1x128xf32>
    %379 = vector.extract_strided_slice %3 {offsets = [0, 13], sizes = [4, 1], strides = [1, 1]} : vector<4x72xf32> to vector<4x1xf32>
    %380 = vector.broadcast %378 : vector<1x128xf32> to vector<4x128xf32>
    %381 = vector.broadcast %379 : vector<4x1xf32> to vector<4x128xf32>
    %382 = arith.mulf %380, %381 : vector<4x128xf32>
    %383 = arith.addf %375, %382 : vector<4x128xf32>
    %384 = vector.extract_strided_slice %367 {offsets = [4, 0], sizes = [1, 128], strides = [1, 1]} : vector<6x128xf32> to vector<1x128xf32>
    %385 = vector.extract_strided_slice %367 {offsets = [5, 0], sizes = [1, 128], strides = [1, 1]} : vector<6x128xf32> to vector<1x128xf32>
    %386 = arith.maximumf %384, %385 : vector<1x128xf32>
    %387 = vector.extract_strided_slice %3 {offsets = [0, 14], sizes = [4, 1], strides = [1, 1]} : vector<4x72xf32> to vector<4x1xf32>
    %388 = vector.broadcast %386 : vector<1x128xf32> to vector<4x128xf32>
    %389 = vector.broadcast %387 : vector<4x1xf32> to vector<4x128xf32>
    %390 = arith.mulf %388, %389 : vector<4x128xf32>
    %391 = arith.addf %383, %390 : vector<4x128xf32>
    %392 = vector.extract_strided_slice %0 {offsets = [4, 0, 0], sizes = [2, 6, 128], strides = [1, 1, 1]} : vector<8x6x128xf32> to vector<2x6x128xf32>
    %c9_45 = arith.constant 9 : index
    %393 = memref.load %arg2[%c9_45] : memref<72xf32, #tpu.memory_space<smem>>
    %394 = vector.broadcast %393 : f32 to vector<2x6x128xf32>
    %395 = arith.mulf %392, %394 : vector<2x6x128xf32>
    %396 = vector.extract_strided_slice %1 {offsets = [4, 0, 0], sizes = [2, 6, 128], strides = [1, 1, 1]} : vector<8x6x128xf32> to vector<2x6x128xf32>
    %c10_46 = arith.constant 10 : index
    %397 = memref.load %arg2[%c10_46] : memref<72xf32, #tpu.memory_space<smem>>
    %398 = vector.broadcast %397 : f32 to vector<2x6x128xf32>
    %399 = arith.mulf %396, %398 : vector<2x6x128xf32>
    %400 = arith.addf %395, %399 : vector<2x6x128xf32>
    %401 = vector.extract_strided_slice %2 {offsets = [4, 0, 0], sizes = [2, 6, 128], strides = [1, 1, 1]} : vector<8x6x128xf32> to vector<2x6x128xf32>
    %c11_47 = arith.constant 11 : index
    %402 = memref.load %arg2[%c11_47] : memref<72xf32, #tpu.memory_space<smem>>
    %403 = vector.broadcast %402 : f32 to vector<2x6x128xf32>
    %404 = arith.mulf %401, %403 : vector<2x6x128xf32>
    %405 = arith.addf %400, %404 : vector<2x6x128xf32>
    %406 = vector.extract_strided_slice %0 {offsets = [5, 0, 0], sizes = [2, 6, 128], strides = [1, 1, 1]} : vector<8x6x128xf32> to vector<2x6x128xf32>
    %c12_48 = arith.constant 12 : index
    %407 = memref.load %arg2[%c12_48] : memref<72xf32, #tpu.memory_space<smem>>
    %408 = vector.broadcast %407 : f32 to vector<2x6x128xf32>
    %409 = arith.mulf %406, %408 : vector<2x6x128xf32>
    %410 = arith.addf %405, %409 : vector<2x6x128xf32>
    %411 = vector.extract_strided_slice %1 {offsets = [5, 0, 0], sizes = [2, 6, 128], strides = [1, 1, 1]} : vector<8x6x128xf32> to vector<2x6x128xf32>
    %c13_49 = arith.constant 13 : index
    %412 = memref.load %arg2[%c13_49] : memref<72xf32, #tpu.memory_space<smem>>
    %413 = vector.broadcast %412 : f32 to vector<2x6x128xf32>
    %414 = arith.mulf %411, %413 : vector<2x6x128xf32>
    %415 = arith.addf %410, %414 : vector<2x6x128xf32>
    %416 = vector.extract_strided_slice %2 {offsets = [5, 0, 0], sizes = [2, 6, 128], strides = [1, 1, 1]} : vector<8x6x128xf32> to vector<2x6x128xf32>
    %c14_50 = arith.constant 14 : index
    %417 = memref.load %arg2[%c14_50] : memref<72xf32, #tpu.memory_space<smem>>
    %418 = vector.broadcast %417 : f32 to vector<2x6x128xf32>
    %419 = arith.mulf %416, %418 : vector<2x6x128xf32>
    %420 = arith.addf %415, %419 : vector<2x6x128xf32>
    %421 = vector.extract_strided_slice %0 {offsets = [6, 0, 0], sizes = [2, 6, 128], strides = [1, 1, 1]} : vector<8x6x128xf32> to vector<2x6x128xf32>
    %c15_51 = arith.constant 15 : index
    %422 = memref.load %arg2[%c15_51] : memref<72xf32, #tpu.memory_space<smem>>
    %423 = vector.broadcast %422 : f32 to vector<2x6x128xf32>
    %424 = arith.mulf %421, %423 : vector<2x6x128xf32>
    %425 = arith.addf %420, %424 : vector<2x6x128xf32>
    %426 = vector.extract_strided_slice %1 {offsets = [6, 0, 0], sizes = [2, 6, 128], strides = [1, 1, 1]} : vector<8x6x128xf32> to vector<2x6x128xf32>
    %c16_52 = arith.constant 16 : index
    %427 = memref.load %arg2[%c16_52] : memref<72xf32, #tpu.memory_space<smem>>
    %428 = vector.broadcast %427 : f32 to vector<2x6x128xf32>
    %429 = arith.mulf %426, %428 : vector<2x6x128xf32>
    %430 = arith.addf %425, %429 : vector<2x6x128xf32>
    %431 = vector.extract_strided_slice %2 {offsets = [6, 0, 0], sizes = [2, 6, 128], strides = [1, 1, 1]} : vector<8x6x128xf32> to vector<2x6x128xf32>
    %c17_53 = arith.constant 17 : index
    %432 = memref.load %arg2[%c17_53] : memref<72xf32, #tpu.memory_space<smem>>
    %433 = vector.broadcast %432 : f32 to vector<2x6x128xf32>
    %434 = arith.mulf %431, %433 : vector<2x6x128xf32>
    %435 = arith.addf %430, %434 : vector<2x6x128xf32>
    %436 = vector.extract_strided_slice %435 {offsets = [0, 0, 0], sizes = [1, 6, 128], strides = [1, 1, 1]} : vector<2x6x128xf32> to vector<1x6x128xf32>
    %437 = vector.shape_cast %436 : vector<1x6x128xf32> to vector<6x128xf32>
    %438 = vector.extract_strided_slice %435 {offsets = [1, 0, 0], sizes = [1, 6, 128], strides = [1, 1, 1]} : vector<2x6x128xf32> to vector<1x6x128xf32>
    %439 = vector.shape_cast %438 : vector<1x6x128xf32> to vector<6x128xf32>
    %440 = arith.maximumf %437, %439 : vector<6x128xf32>
    %441 = vector.broadcast %237 : f32 to vector<6x128xf32>
    %442 = arith.addf %440, %441 : vector<6x128xf32>
    %cst_54 = arith.constant 0.000000e+00 : f32
    %443 = vector.broadcast %cst_54 : f32 to vector<6x128xf32>
    %444 = arith.maximumf %442, %443 : vector<6x128xf32>
    %445 = vector.extract_strided_slice %444 {offsets = [0, 0], sizes = [1, 128], strides = [1, 1]} : vector<6x128xf32> to vector<1x128xf32>
    %446 = vector.extract_strided_slice %444 {offsets = [1, 0], sizes = [1, 128], strides = [1, 1]} : vector<6x128xf32> to vector<1x128xf32>
    %447 = arith.maximumf %445, %446 : vector<1x128xf32>
    %448 = vector.extract_strided_slice %3 {offsets = [0, 15], sizes = [4, 1], strides = [1, 1]} : vector<4x72xf32> to vector<4x1xf32>
    %449 = vector.broadcast %447 : vector<1x128xf32> to vector<4x128xf32>
    %450 = vector.broadcast %448 : vector<4x1xf32> to vector<4x128xf32>
    %451 = arith.mulf %449, %450 : vector<4x128xf32>
    %452 = arith.addf %391, %451 : vector<4x128xf32>
    %453 = vector.extract_strided_slice %444 {offsets = [2, 0], sizes = [1, 128], strides = [1, 1]} : vector<6x128xf32> to vector<1x128xf32>
    %454 = vector.extract_strided_slice %444 {offsets = [3, 0], sizes = [1, 128], strides = [1, 1]} : vector<6x128xf32> to vector<1x128xf32>
    %455 = arith.maximumf %453, %454 : vector<1x128xf32>
    %456 = vector.extract_strided_slice %3 {offsets = [0, 16], sizes = [4, 1], strides = [1, 1]} : vector<4x72xf32> to vector<4x1xf32>
    %457 = vector.broadcast %455 : vector<1x128xf32> to vector<4x128xf32>
    %458 = vector.broadcast %456 : vector<4x1xf32> to vector<4x128xf32>
    %459 = arith.mulf %457, %458 : vector<4x128xf32>
    %460 = arith.addf %452, %459 : vector<4x128xf32>
    %461 = vector.extract_strided_slice %444 {offsets = [4, 0], sizes = [1, 128], strides = [1, 1]} : vector<6x128xf32> to vector<1x128xf32>
    %462 = vector.extract_strided_slice %444 {offsets = [5, 0], sizes = [1, 128], strides = [1, 1]} : vector<6x128xf32> to vector<1x128xf32>
    %463 = arith.maximumf %461, %462 : vector<1x128xf32>
    %464 = vector.extract_strided_slice %3 {offsets = [0, 17], sizes = [4, 1], strides = [1, 1]} : vector<4x72xf32> to vector<4x1xf32>
    %465 = vector.broadcast %463 : vector<1x128xf32> to vector<4x128xf32>
    %466 = vector.broadcast %464 : vector<4x1xf32> to vector<4x128xf32>
    %467 = arith.mulf %465, %466 : vector<4x128xf32>
    %468 = arith.addf %460, %467 : vector<4x128xf32>
    %c2_55 = arith.constant 2 : index
    %469 = memref.load %arg3[%c2_55] : memref<8xf32, #tpu.memory_space<smem>>
    %470 = vector.extract_strided_slice %0 {offsets = [0, 0, 0], sizes = [2, 6, 128], strides = [1, 1, 1]} : vector<8x6x128xf32> to vector<2x6x128xf32>
    %c18 = arith.constant 18 : index
    %471 = memref.load %arg2[%c18] : memref<72xf32, #tpu.memory_space<smem>>
    %472 = vector.broadcast %471 : f32 to vector<2x6x128xf32>
    %473 = arith.mulf %470, %472 : vector<2x6x128xf32>
    %474 = vector.extract_strided_slice %1 {offsets = [0, 0, 0], sizes = [2, 6, 128], strides = [1, 1, 1]} : vector<8x6x128xf32> to vector<2x6x128xf32>
    %c19 = arith.constant 19 : index
    %475 = memref.load %arg2[%c19] : memref<72xf32, #tpu.memory_space<smem>>
    %476 = vector.broadcast %475 : f32 to vector<2x6x128xf32>
    %477 = arith.mulf %474, %476 : vector<2x6x128xf32>
    %478 = arith.addf %473, %477 : vector<2x6x128xf32>
    %479 = vector.extract_strided_slice %2 {offsets = [0, 0, 0], sizes = [2, 6, 128], strides = [1, 1, 1]} : vector<8x6x128xf32> to vector<2x6x128xf32>
    %c20 = arith.constant 20 : index
    %480 = memref.load %arg2[%c20] : memref<72xf32, #tpu.memory_space<smem>>
    %481 = vector.broadcast %480 : f32 to vector<2x6x128xf32>
    %482 = arith.mulf %479, %481 : vector<2x6x128xf32>
    %483 = arith.addf %478, %482 : vector<2x6x128xf32>
    %484 = vector.extract_strided_slice %0 {offsets = [1, 0, 0], sizes = [2, 6, 128], strides = [1, 1, 1]} : vector<8x6x128xf32> to vector<2x6x128xf32>
    %c21 = arith.constant 21 : index
    %485 = memref.load %arg2[%c21] : memref<72xf32, #tpu.memory_space<smem>>
    %486 = vector.broadcast %485 : f32 to vector<2x6x128xf32>
    %487 = arith.mulf %484, %486 : vector<2x6x128xf32>
    %488 = arith.addf %483, %487 : vector<2x6x128xf32>
    %489 = vector.extract_strided_slice %1 {offsets = [1, 0, 0], sizes = [2, 6, 128], strides = [1, 1, 1]} : vector<8x6x128xf32> to vector<2x6x128xf32>
    %c22 = arith.constant 22 : index
    %490 = memref.load %arg2[%c22] : memref<72xf32, #tpu.memory_space<smem>>
    %491 = vector.broadcast %490 : f32 to vector<2x6x128xf32>
    %492 = arith.mulf %489, %491 : vector<2x6x128xf32>
    %493 = arith.addf %488, %492 : vector<2x6x128xf32>
    %494 = vector.extract_strided_slice %2 {offsets = [1, 0, 0], sizes = [2, 6, 128], strides = [1, 1, 1]} : vector<8x6x128xf32> to vector<2x6x128xf32>
    %c23 = arith.constant 23 : index
    %495 = memref.load %arg2[%c23] : memref<72xf32, #tpu.memory_space<smem>>
    %496 = vector.broadcast %495 : f32 to vector<2x6x128xf32>
    %497 = arith.mulf %494, %496 : vector<2x6x128xf32>
    %498 = arith.addf %493, %497 : vector<2x6x128xf32>
    %499 = vector.extract_strided_slice %0 {offsets = [2, 0, 0], sizes = [2, 6, 128], strides = [1, 1, 1]} : vector<8x6x128xf32> to vector<2x6x128xf32>
    %c24 = arith.constant 24 : index
    %500 = memref.load %arg2[%c24] : memref<72xf32, #tpu.memory_space<smem>>
    %501 = vector.broadcast %500 : f32 to vector<2x6x128xf32>
    %502 = arith.mulf %499, %501 : vector<2x6x128xf32>
    %503 = arith.addf %498, %502 : vector<2x6x128xf32>
    %504 = vector.extract_strided_slice %1 {offsets = [2, 0, 0], sizes = [2, 6, 128], strides = [1, 1, 1]} : vector<8x6x128xf32> to vector<2x6x128xf32>
    %c25 = arith.constant 25 : index
    %505 = memref.load %arg2[%c25] : memref<72xf32, #tpu.memory_space<smem>>
    %506 = vector.broadcast %505 : f32 to vector<2x6x128xf32>
    %507 = arith.mulf %504, %506 : vector<2x6x128xf32>
    %508 = arith.addf %503, %507 : vector<2x6x128xf32>
    %509 = vector.extract_strided_slice %2 {offsets = [2, 0, 0], sizes = [2, 6, 128], strides = [1, 1, 1]} : vector<8x6x128xf32> to vector<2x6x128xf32>
    %c26 = arith.constant 26 : index
    %510 = memref.load %arg2[%c26] : memref<72xf32, #tpu.memory_space<smem>>
    %511 = vector.broadcast %510 : f32 to vector<2x6x128xf32>
    %512 = arith.mulf %509, %511 : vector<2x6x128xf32>
    %513 = arith.addf %508, %512 : vector<2x6x128xf32>
    %514 = vector.extract_strided_slice %513 {offsets = [0, 0, 0], sizes = [1, 6, 128], strides = [1, 1, 1]} : vector<2x6x128xf32> to vector<1x6x128xf32>
    %515 = vector.shape_cast %514 : vector<1x6x128xf32> to vector<6x128xf32>
    %516 = vector.extract_strided_slice %513 {offsets = [1, 0, 0], sizes = [1, 6, 128], strides = [1, 1, 1]} : vector<2x6x128xf32> to vector<1x6x128xf32>
    %517 = vector.shape_cast %516 : vector<1x6x128xf32> to vector<6x128xf32>
    %518 = arith.maximumf %515, %517 : vector<6x128xf32>
    %519 = vector.broadcast %469 : f32 to vector<6x128xf32>
    %520 = arith.addf %518, %519 : vector<6x128xf32>
    %cst_56 = arith.constant 0.000000e+00 : f32
    %521 = vector.broadcast %cst_56 : f32 to vector<6x128xf32>
    %522 = arith.maximumf %520, %521 : vector<6x128xf32>
    %523 = vector.extract_strided_slice %522 {offsets = [0, 0], sizes = [1, 128], strides = [1, 1]} : vector<6x128xf32> to vector<1x128xf32>
    %524 = vector.extract_strided_slice %522 {offsets = [1, 0], sizes = [1, 128], strides = [1, 1]} : vector<6x128xf32> to vector<1x128xf32>
    %525 = arith.maximumf %523, %524 : vector<1x128xf32>
    %526 = vector.extract_strided_slice %3 {offsets = [0, 18], sizes = [4, 1], strides = [1, 1]} : vector<4x72xf32> to vector<4x1xf32>
    %527 = vector.broadcast %525 : vector<1x128xf32> to vector<4x128xf32>
    %528 = vector.broadcast %526 : vector<4x1xf32> to vector<4x128xf32>
    %529 = arith.mulf %527, %528 : vector<4x128xf32>
    %530 = arith.addf %468, %529 : vector<4x128xf32>
    %531 = vector.extract_strided_slice %522 {offsets = [2, 0], sizes = [1, 128], strides = [1, 1]} : vector<6x128xf32> to vector<1x128xf32>
    %532 = vector.extract_strided_slice %522 {offsets = [3, 0], sizes = [1, 128], strides = [1, 1]} : vector<6x128xf32> to vector<1x128xf32>
    %533 = arith.maximumf %531, %532 : vector<1x128xf32>
    %534 = vector.extract_strided_slice %3 {offsets = [0, 19], sizes = [4, 1], strides = [1, 1]} : vector<4x72xf32> to vector<4x1xf32>
    %535 = vector.broadcast %533 : vector<1x128xf32> to vector<4x128xf32>
    %536 = vector.broadcast %534 : vector<4x1xf32> to vector<4x128xf32>
    %537 = arith.mulf %535, %536 : vector<4x128xf32>
    %538 = arith.addf %530, %537 : vector<4x128xf32>
    %539 = vector.extract_strided_slice %522 {offsets = [4, 0], sizes = [1, 128], strides = [1, 1]} : vector<6x128xf32> to vector<1x128xf32>
    %540 = vector.extract_strided_slice %522 {offsets = [5, 0], sizes = [1, 128], strides = [1, 1]} : vector<6x128xf32> to vector<1x128xf32>
    %541 = arith.maximumf %539, %540 : vector<1x128xf32>
    %542 = vector.extract_strided_slice %3 {offsets = [0, 20], sizes = [4, 1], strides = [1, 1]} : vector<4x72xf32> to vector<4x1xf32>
    %543 = vector.broadcast %541 : vector<1x128xf32> to vector<4x128xf32>
    %544 = vector.broadcast %542 : vector<4x1xf32> to vector<4x128xf32>
    %545 = arith.mulf %543, %544 : vector<4x128xf32>
    %546 = arith.addf %538, %545 : vector<4x128xf32>
    %547 = vector.extract_strided_slice %0 {offsets = [2, 0, 0], sizes = [2, 6, 128], strides = [1, 1, 1]} : vector<8x6x128xf32> to vector<2x6x128xf32>
    %c18_57 = arith.constant 18 : index
    %548 = memref.load %arg2[%c18_57] : memref<72xf32, #tpu.memory_space<smem>>
    %549 = vector.broadcast %548 : f32 to vector<2x6x128xf32>
    %550 = arith.mulf %547, %549 : vector<2x6x128xf32>
    %551 = vector.extract_strided_slice %1 {offsets = [2, 0, 0], sizes = [2, 6, 128], strides = [1, 1, 1]} : vector<8x6x128xf32> to vector<2x6x128xf32>
    %c19_58 = arith.constant 19 : index
    %552 = memref.load %arg2[%c19_58] : memref<72xf32, #tpu.memory_space<smem>>
    %553 = vector.broadcast %552 : f32 to vector<2x6x128xf32>
    %554 = arith.mulf %551, %553 : vector<2x6x128xf32>
    %555 = arith.addf %550, %554 : vector<2x6x128xf32>
    %556 = vector.extract_strided_slice %2 {offsets = [2, 0, 0], sizes = [2, 6, 128], strides = [1, 1, 1]} : vector<8x6x128xf32> to vector<2x6x128xf32>
    %c20_59 = arith.constant 20 : index
    %557 = memref.load %arg2[%c20_59] : memref<72xf32, #tpu.memory_space<smem>>
    %558 = vector.broadcast %557 : f32 to vector<2x6x128xf32>
    %559 = arith.mulf %556, %558 : vector<2x6x128xf32>
    %560 = arith.addf %555, %559 : vector<2x6x128xf32>
    %561 = vector.extract_strided_slice %0 {offsets = [3, 0, 0], sizes = [2, 6, 128], strides = [1, 1, 1]} : vector<8x6x128xf32> to vector<2x6x128xf32>
    %c21_60 = arith.constant 21 : index
    %562 = memref.load %arg2[%c21_60] : memref<72xf32, #tpu.memory_space<smem>>
    %563 = vector.broadcast %562 : f32 to vector<2x6x128xf32>
    %564 = arith.mulf %561, %563 : vector<2x6x128xf32>
    %565 = arith.addf %560, %564 : vector<2x6x128xf32>
    %566 = vector.extract_strided_slice %1 {offsets = [3, 0, 0], sizes = [2, 6, 128], strides = [1, 1, 1]} : vector<8x6x128xf32> to vector<2x6x128xf32>
    %c22_61 = arith.constant 22 : index
    %567 = memref.load %arg2[%c22_61] : memref<72xf32, #tpu.memory_space<smem>>
    %568 = vector.broadcast %567 : f32 to vector<2x6x128xf32>
    %569 = arith.mulf %566, %568 : vector<2x6x128xf32>
    %570 = arith.addf %565, %569 : vector<2x6x128xf32>
    %571 = vector.extract_strided_slice %2 {offsets = [3, 0, 0], sizes = [2, 6, 128], strides = [1, 1, 1]} : vector<8x6x128xf32> to vector<2x6x128xf32>
    %c23_62 = arith.constant 23 : index
    %572 = memref.load %arg2[%c23_62] : memref<72xf32, #tpu.memory_space<smem>>
    %573 = vector.broadcast %572 : f32 to vector<2x6x128xf32>
    %574 = arith.mulf %571, %573 : vector<2x6x128xf32>
    %575 = arith.addf %570, %574 : vector<2x6x128xf32>
    %576 = vector.extract_strided_slice %0 {offsets = [4, 0, 0], sizes = [2, 6, 128], strides = [1, 1, 1]} : vector<8x6x128xf32> to vector<2x6x128xf32>
    %c24_63 = arith.constant 24 : index
    %577 = memref.load %arg2[%c24_63] : memref<72xf32, #tpu.memory_space<smem>>
    %578 = vector.broadcast %577 : f32 to vector<2x6x128xf32>
    %579 = arith.mulf %576, %578 : vector<2x6x128xf32>
    %580 = arith.addf %575, %579 : vector<2x6x128xf32>
    %581 = vector.extract_strided_slice %1 {offsets = [4, 0, 0], sizes = [2, 6, 128], strides = [1, 1, 1]} : vector<8x6x128xf32> to vector<2x6x128xf32>
    %c25_64 = arith.constant 25 : index
    %582 = memref.load %arg2[%c25_64] : memref<72xf32, #tpu.memory_space<smem>>
    %583 = vector.broadcast %582 : f32 to vector<2x6x128xf32>
    %584 = arith.mulf %581, %583 : vector<2x6x128xf32>
    %585 = arith.addf %580, %584 : vector<2x6x128xf32>
    %586 = vector.extract_strided_slice %2 {offsets = [4, 0, 0], sizes = [2, 6, 128], strides = [1, 1, 1]} : vector<8x6x128xf32> to vector<2x6x128xf32>
    %c26_65 = arith.constant 26 : index
    %587 = memref.load %arg2[%c26_65] : memref<72xf32, #tpu.memory_space<smem>>
    %588 = vector.broadcast %587 : f32 to vector<2x6x128xf32>
    %589 = arith.mulf %586, %588 : vector<2x6x128xf32>
    %590 = arith.addf %585, %589 : vector<2x6x128xf32>
    %591 = vector.extract_strided_slice %590 {offsets = [0, 0, 0], sizes = [1, 6, 128], strides = [1, 1, 1]} : vector<2x6x128xf32> to vector<1x6x128xf32>
    %592 = vector.shape_cast %591 : vector<1x6x128xf32> to vector<6x128xf32>
    %593 = vector.extract_strided_slice %590 {offsets = [1, 0, 0], sizes = [1, 6, 128], strides = [1, 1, 1]} : vector<2x6x128xf32> to vector<1x6x128xf32>
    %594 = vector.shape_cast %593 : vector<1x6x128xf32> to vector<6x128xf32>
    %595 = arith.maximumf %592, %594 : vector<6x128xf32>
    %596 = vector.broadcast %469 : f32 to vector<6x128xf32>
    %597 = arith.addf %595, %596 : vector<6x128xf32>
    %cst_66 = arith.constant 0.000000e+00 : f32
    %598 = vector.broadcast %cst_66 : f32 to vector<6x128xf32>
    %599 = arith.maximumf %597, %598 : vector<6x128xf32>
    %600 = vector.extract_strided_slice %599 {offsets = [0, 0], sizes = [1, 128], strides = [1, 1]} : vector<6x128xf32> to vector<1x128xf32>
    %601 = vector.extract_strided_slice %599 {offsets = [1, 0], sizes = [1, 128], strides = [1, 1]} : vector<6x128xf32> to vector<1x128xf32>
    %602 = arith.maximumf %600, %601 : vector<1x128xf32>
    %603 = vector.extract_strided_slice %3 {offsets = [0, 21], sizes = [4, 1], strides = [1, 1]} : vector<4x72xf32> to vector<4x1xf32>
    %604 = vector.broadcast %602 : vector<1x128xf32> to vector<4x128xf32>
    %605 = vector.broadcast %603 : vector<4x1xf32> to vector<4x128xf32>
    %606 = arith.mulf %604, %605 : vector<4x128xf32>
    %607 = arith.addf %546, %606 : vector<4x128xf32>
    %608 = vector.extract_strided_slice %599 {offsets = [2, 0], sizes = [1, 128], strides = [1, 1]} : vector<6x128xf32> to vector<1x128xf32>
    %609 = vector.extract_strided_slice %599 {offsets = [3, 0], sizes = [1, 128], strides = [1, 1]} : vector<6x128xf32> to vector<1x128xf32>
    %610 = arith.maximumf %608, %609 : vector<1x128xf32>
    %611 = vector.extract_strided_slice %3 {offsets = [0, 22], sizes = [4, 1], strides = [1, 1]} : vector<4x72xf32> to vector<4x1xf32>
    %612 = vector.broadcast %610 : vector<1x128xf32> to vector<4x128xf32>
    %613 = vector.broadcast %611 : vector<4x1xf32> to vector<4x128xf32>
    %614 = arith.mulf %612, %613 : vector<4x128xf32>
    %615 = arith.addf %607, %614 : vector<4x128xf32>
    %616 = vector.extract_strided_slice %599 {offsets = [4, 0], sizes = [1, 128], strides = [1, 1]} : vector<6x128xf32> to vector<1x128xf32>
    %617 = vector.extract_strided_slice %599 {offsets = [5, 0], sizes = [1, 128], strides = [1, 1]} : vector<6x128xf32> to vector<1x128xf32>
    %618 = arith.maximumf %616, %617 : vector<1x128xf32>
    %619 = vector.extract_strided_slice %3 {offsets = [0, 23], sizes = [4, 1], strides = [1, 1]} : vector<4x72xf32> to vector<4x1xf32>
    %620 = vector.broadcast %618 : vector<1x128xf32> to vector<4x128xf32>
    %621 = vector.broadcast %619 : vector<4x1xf32> to vector<4x128xf32>
    %622 = arith.mulf %620, %621 : vector<4x128xf32>
    %623 = arith.addf %615, %622 : vector<4x128xf32>
    %624 = vector.extract_strided_slice %0 {offsets = [4, 0, 0], sizes = [2, 6, 128], strides = [1, 1, 1]} : vector<8x6x128xf32> to vector<2x6x128xf32>
    %c18_67 = arith.constant 18 : index
    %625 = memref.load %arg2[%c18_67] : memref<72xf32, #tpu.memory_space<smem>>
    %626 = vector.broadcast %625 : f32 to vector<2x6x128xf32>
    %627 = arith.mulf %624, %626 : vector<2x6x128xf32>
    %628 = vector.extract_strided_slice %1 {offsets = [4, 0, 0], sizes = [2, 6, 128], strides = [1, 1, 1]} : vector<8x6x128xf32> to vector<2x6x128xf32>
    %c19_68 = arith.constant 19 : index
    %629 = memref.load %arg2[%c19_68] : memref<72xf32, #tpu.memory_space<smem>>
    %630 = vector.broadcast %629 : f32 to vector<2x6x128xf32>
    %631 = arith.mulf %628, %630 : vector<2x6x128xf32>
    %632 = arith.addf %627, %631 : vector<2x6x128xf32>
    %633 = vector.extract_strided_slice %2 {offsets = [4, 0, 0], sizes = [2, 6, 128], strides = [1, 1, 1]} : vector<8x6x128xf32> to vector<2x6x128xf32>
    %c20_69 = arith.constant 20 : index
    %634 = memref.load %arg2[%c20_69] : memref<72xf32, #tpu.memory_space<smem>>
    %635 = vector.broadcast %634 : f32 to vector<2x6x128xf32>
    %636 = arith.mulf %633, %635 : vector<2x6x128xf32>
    %637 = arith.addf %632, %636 : vector<2x6x128xf32>
    %638 = vector.extract_strided_slice %0 {offsets = [5, 0, 0], sizes = [2, 6, 128], strides = [1, 1, 1]} : vector<8x6x128xf32> to vector<2x6x128xf32>
    %c21_70 = arith.constant 21 : index
    %639 = memref.load %arg2[%c21_70] : memref<72xf32, #tpu.memory_space<smem>>
    %640 = vector.broadcast %639 : f32 to vector<2x6x128xf32>
    %641 = arith.mulf %638, %640 : vector<2x6x128xf32>
    %642 = arith.addf %637, %641 : vector<2x6x128xf32>
    %643 = vector.extract_strided_slice %1 {offsets = [5, 0, 0], sizes = [2, 6, 128], strides = [1, 1, 1]} : vector<8x6x128xf32> to vector<2x6x128xf32>
    %c22_71 = arith.constant 22 : index
    %644 = memref.load %arg2[%c22_71] : memref<72xf32, #tpu.memory_space<smem>>
    %645 = vector.broadcast %644 : f32 to vector<2x6x128xf32>
    %646 = arith.mulf %643, %645 : vector<2x6x128xf32>
    %647 = arith.addf %642, %646 : vector<2x6x128xf32>
    %648 = vector.extract_strided_slice %2 {offsets = [5, 0, 0], sizes = [2, 6, 128], strides = [1, 1, 1]} : vector<8x6x128xf32> to vector<2x6x128xf32>
    %c23_72 = arith.constant 23 : index
    %649 = memref.load %arg2[%c23_72] : memref<72xf32, #tpu.memory_space<smem>>
    %650 = vector.broadcast %649 : f32 to vector<2x6x128xf32>
    %651 = arith.mulf %648, %650 : vector<2x6x128xf32>
    %652 = arith.addf %647, %651 : vector<2x6x128xf32>
    %653 = vector.extract_strided_slice %0 {offsets = [6, 0, 0], sizes = [2, 6, 128], strides = [1, 1, 1]} : vector<8x6x128xf32> to vector<2x6x128xf32>
    %c24_73 = arith.constant 24 : index
    %654 = memref.load %arg2[%c24_73] : memref<72xf32, #tpu.memory_space<smem>>
    %655 = vector.broadcast %654 : f32 to vector<2x6x128xf32>
    %656 = arith.mulf %653, %655 : vector<2x6x128xf32>
    %657 = arith.addf %652, %656 : vector<2x6x128xf32>
    %658 = vector.extract_strided_slice %1 {offsets = [6, 0, 0], sizes = [2, 6, 128], strides = [1, 1, 1]} : vector<8x6x128xf32> to vector<2x6x128xf32>
    %c25_74 = arith.constant 25 : index
    %659 = memref.load %arg2[%c25_74] : memref<72xf32, #tpu.memory_space<smem>>
    %660 = vector.broadcast %659 : f32 to vector<2x6x128xf32>
    %661 = arith.mulf %658, %660 : vector<2x6x128xf32>
    %662 = arith.addf %657, %661 : vector<2x6x128xf32>
    %663 = vector.extract_strided_slice %2 {offsets = [6, 0, 0], sizes = [2, 6, 128], strides = [1, 1, 1]} : vector<8x6x128xf32> to vector<2x6x128xf32>
    %c26_75 = arith.constant 26 : index
    %664 = memref.load %arg2[%c26_75] : memref<72xf32, #tpu.memory_space<smem>>
    %665 = vector.broadcast %664 : f32 to vector<2x6x128xf32>
    %666 = arith.mulf %663, %665 : vector<2x6x128xf32>
    %667 = arith.addf %662, %666 : vector<2x6x128xf32>
    %668 = vector.extract_strided_slice %667 {offsets = [0, 0, 0], sizes = [1, 6, 128], strides = [1, 1, 1]} : vector<2x6x128xf32> to vector<1x6x128xf32>
    %669 = vector.shape_cast %668 : vector<1x6x128xf32> to vector<6x128xf32>
    %670 = vector.extract_strided_slice %667 {offsets = [1, 0, 0], sizes = [1, 6, 128], strides = [1, 1, 1]} : vector<2x6x128xf32> to vector<1x6x128xf32>
    %671 = vector.shape_cast %670 : vector<1x6x128xf32> to vector<6x128xf32>
    %672 = arith.maximumf %669, %671 : vector<6x128xf32>
    %673 = vector.broadcast %469 : f32 to vector<6x128xf32>
    %674 = arith.addf %672, %673 : vector<6x128xf32>
    %cst_76 = arith.constant 0.000000e+00 : f32
    %675 = vector.broadcast %cst_76 : f32 to vector<6x128xf32>
    %676 = arith.maximumf %674, %675 : vector<6x128xf32>
    %677 = vector.extract_strided_slice %676 {offsets = [0, 0], sizes = [1, 128], strides = [1, 1]} : vector<6x128xf32> to vector<1x128xf32>
    %678 = vector.extract_strided_slice %676 {offsets = [1, 0], sizes = [1, 128], strides = [1, 1]} : vector<6x128xf32> to vector<1x128xf32>
    %679 = arith.maximumf %677, %678 : vector<1x128xf32>
    %680 = vector.extract_strided_slice %3 {offsets = [0, 24], sizes = [4, 1], strides = [1, 1]} : vector<4x72xf32> to vector<4x1xf32>
    %681 = vector.broadcast %679 : vector<1x128xf32> to vector<4x128xf32>
    %682 = vector.broadcast %680 : vector<4x1xf32> to vector<4x128xf32>
    %683 = arith.mulf %681, %682 : vector<4x128xf32>
    %684 = arith.addf %623, %683 : vector<4x128xf32>
    %685 = vector.extract_strided_slice %676 {offsets = [2, 0], sizes = [1, 128], strides = [1, 1]} : vector<6x128xf32> to vector<1x128xf32>
    %686 = vector.extract_strided_slice %676 {offsets = [3, 0], sizes = [1, 128], strides = [1, 1]} : vector<6x128xf32> to vector<1x128xf32>
    %687 = arith.maximumf %685, %686 : vector<1x128xf32>
    %688 = vector.extract_strided_slice %3 {offsets = [0, 25], sizes = [4, 1], strides = [1, 1]} : vector<4x72xf32> to vector<4x1xf32>
    %689 = vector.broadcast %687 : vector<1x128xf32> to vector<4x128xf32>
    %690 = vector.broadcast %688 : vector<4x1xf32> to vector<4x128xf32>
    %691 = arith.mulf %689, %690 : vector<4x128xf32>
    %692 = arith.addf %684, %691 : vector<4x128xf32>
    %693 = vector.extract_strided_slice %676 {offsets = [4, 0], sizes = [1, 128], strides = [1, 1]} : vector<6x128xf32> to vector<1x128xf32>
    %694 = vector.extract_strided_slice %676 {offsets = [5, 0], sizes = [1, 128], strides = [1, 1]} : vector<6x128xf32> to vector<1x128xf32>
    %695 = arith.maximumf %693, %694 : vector<1x128xf32>
    %696 = vector.extract_strided_slice %3 {offsets = [0, 26], sizes = [4, 1], strides = [1, 1]} : vector<4x72xf32> to vector<4x1xf32>
    %697 = vector.broadcast %695 : vector<1x128xf32> to vector<4x128xf32>
    %698 = vector.broadcast %696 : vector<4x1xf32> to vector<4x128xf32>
    %699 = arith.mulf %697, %698 : vector<4x128xf32>
    %700 = arith.addf %692, %699 : vector<4x128xf32>
    %c3_77 = arith.constant 3 : index
    %701 = memref.load %arg3[%c3_77] : memref<8xf32, #tpu.memory_space<smem>>
    %702 = vector.extract_strided_slice %0 {offsets = [0, 0, 0], sizes = [2, 6, 128], strides = [1, 1, 1]} : vector<8x6x128xf32> to vector<2x6x128xf32>
    %c27 = arith.constant 27 : index
    %703 = memref.load %arg2[%c27] : memref<72xf32, #tpu.memory_space<smem>>
    %704 = vector.broadcast %703 : f32 to vector<2x6x128xf32>
    %705 = arith.mulf %702, %704 : vector<2x6x128xf32>
    %706 = vector.extract_strided_slice %1 {offsets = [0, 0, 0], sizes = [2, 6, 128], strides = [1, 1, 1]} : vector<8x6x128xf32> to vector<2x6x128xf32>
    %c28 = arith.constant 28 : index
    %707 = memref.load %arg2[%c28] : memref<72xf32, #tpu.memory_space<smem>>
    %708 = vector.broadcast %707 : f32 to vector<2x6x128xf32>
    %709 = arith.mulf %706, %708 : vector<2x6x128xf32>
    %710 = arith.addf %705, %709 : vector<2x6x128xf32>
    %711 = vector.extract_strided_slice %2 {offsets = [0, 0, 0], sizes = [2, 6, 128], strides = [1, 1, 1]} : vector<8x6x128xf32> to vector<2x6x128xf32>
    %c29 = arith.constant 29 : index
    %712 = memref.load %arg2[%c29] : memref<72xf32, #tpu.memory_space<smem>>
    %713 = vector.broadcast %712 : f32 to vector<2x6x128xf32>
    %714 = arith.mulf %711, %713 : vector<2x6x128xf32>
    %715 = arith.addf %710, %714 : vector<2x6x128xf32>
    %716 = vector.extract_strided_slice %0 {offsets = [1, 0, 0], sizes = [2, 6, 128], strides = [1, 1, 1]} : vector<8x6x128xf32> to vector<2x6x128xf32>
    %c30 = arith.constant 30 : index
    %717 = memref.load %arg2[%c30] : memref<72xf32, #tpu.memory_space<smem>>
    %718 = vector.broadcast %717 : f32 to vector<2x6x128xf32>
    %719 = arith.mulf %716, %718 : vector<2x6x128xf32>
    %720 = arith.addf %715, %719 : vector<2x6x128xf32>
    %721 = vector.extract_strided_slice %1 {offsets = [1, 0, 0], sizes = [2, 6, 128], strides = [1, 1, 1]} : vector<8x6x128xf32> to vector<2x6x128xf32>
    %c31 = arith.constant 31 : index
    %722 = memref.load %arg2[%c31] : memref<72xf32, #tpu.memory_space<smem>>
    %723 = vector.broadcast %722 : f32 to vector<2x6x128xf32>
    %724 = arith.mulf %721, %723 : vector<2x6x128xf32>
    %725 = arith.addf %720, %724 : vector<2x6x128xf32>
    %726 = vector.extract_strided_slice %2 {offsets = [1, 0, 0], sizes = [2, 6, 128], strides = [1, 1, 1]} : vector<8x6x128xf32> to vector<2x6x128xf32>
    %c32 = arith.constant 32 : index
    %727 = memref.load %arg2[%c32] : memref<72xf32, #tpu.memory_space<smem>>
    %728 = vector.broadcast %727 : f32 to vector<2x6x128xf32>
    %729 = arith.mulf %726, %728 : vector<2x6x128xf32>
    %730 = arith.addf %725, %729 : vector<2x6x128xf32>
    %731 = vector.extract_strided_slice %0 {offsets = [2, 0, 0], sizes = [2, 6, 128], strides = [1, 1, 1]} : vector<8x6x128xf32> to vector<2x6x128xf32>
    %c33 = arith.constant 33 : index
    %732 = memref.load %arg2[%c33] : memref<72xf32, #tpu.memory_space<smem>>
    %733 = vector.broadcast %732 : f32 to vector<2x6x128xf32>
    %734 = arith.mulf %731, %733 : vector<2x6x128xf32>
    %735 = arith.addf %730, %734 : vector<2x6x128xf32>
    %736 = vector.extract_strided_slice %1 {offsets = [2, 0, 0], sizes = [2, 6, 128], strides = [1, 1, 1]} : vector<8x6x128xf32> to vector<2x6x128xf32>
    %c34 = arith.constant 34 : index
    %737 = memref.load %arg2[%c34] : memref<72xf32, #tpu.memory_space<smem>>
    %738 = vector.broadcast %737 : f32 to vector<2x6x128xf32>
    %739 = arith.mulf %736, %738 : vector<2x6x128xf32>
    %740 = arith.addf %735, %739 : vector<2x6x128xf32>
    %741 = vector.extract_strided_slice %2 {offsets = [2, 0, 0], sizes = [2, 6, 128], strides = [1, 1, 1]} : vector<8x6x128xf32> to vector<2x6x128xf32>
    %c35 = arith.constant 35 : index
    %742 = memref.load %arg2[%c35] : memref<72xf32, #tpu.memory_space<smem>>
    %743 = vector.broadcast %742 : f32 to vector<2x6x128xf32>
    %744 = arith.mulf %741, %743 : vector<2x6x128xf32>
    %745 = arith.addf %740, %744 : vector<2x6x128xf32>
    %746 = vector.extract_strided_slice %745 {offsets = [0, 0, 0], sizes = [1, 6, 128], strides = [1, 1, 1]} : vector<2x6x128xf32> to vector<1x6x128xf32>
    %747 = vector.shape_cast %746 : vector<1x6x128xf32> to vector<6x128xf32>
    %748 = vector.extract_strided_slice %745 {offsets = [1, 0, 0], sizes = [1, 6, 128], strides = [1, 1, 1]} : vector<2x6x128xf32> to vector<1x6x128xf32>
    %749 = vector.shape_cast %748 : vector<1x6x128xf32> to vector<6x128xf32>
    %750 = arith.maximumf %747, %749 : vector<6x128xf32>
    %751 = vector.broadcast %701 : f32 to vector<6x128xf32>
    %752 = arith.addf %750, %751 : vector<6x128xf32>
    %cst_78 = arith.constant 0.000000e+00 : f32
    %753 = vector.broadcast %cst_78 : f32 to vector<6x128xf32>
    %754 = arith.maximumf %752, %753 : vector<6x128xf32>
    %755 = vector.extract_strided_slice %754 {offsets = [0, 0], sizes = [1, 128], strides = [1, 1]} : vector<6x128xf32> to vector<1x128xf32>
    %756 = vector.extract_strided_slice %754 {offsets = [1, 0], sizes = [1, 128], strides = [1, 1]} : vector<6x128xf32> to vector<1x128xf32>
    %757 = arith.maximumf %755, %756 : vector<1x128xf32>
    %758 = vector.extract_strided_slice %3 {offsets = [0, 27], sizes = [4, 1], strides = [1, 1]} : vector<4x72xf32> to vector<4x1xf32>
    %759 = vector.broadcast %757 : vector<1x128xf32> to vector<4x128xf32>
    %760 = vector.broadcast %758 : vector<4x1xf32> to vector<4x128xf32>
    %761 = arith.mulf %759, %760 : vector<4x128xf32>
    %762 = arith.addf %700, %761 : vector<4x128xf32>
    %763 = vector.extract_strided_slice %754 {offsets = [2, 0], sizes = [1, 128], strides = [1, 1]} : vector<6x128xf32> to vector<1x128xf32>
    %764 = vector.extract_strided_slice %754 {offsets = [3, 0], sizes = [1, 128], strides = [1, 1]} : vector<6x128xf32> to vector<1x128xf32>
    %765 = arith.maximumf %763, %764 : vector<1x128xf32>
    %766 = vector.extract_strided_slice %3 {offsets = [0, 28], sizes = [4, 1], strides = [1, 1]} : vector<4x72xf32> to vector<4x1xf32>
    %767 = vector.broadcast %765 : vector<1x128xf32> to vector<4x128xf32>
    %768 = vector.broadcast %766 : vector<4x1xf32> to vector<4x128xf32>
    %769 = arith.mulf %767, %768 : vector<4x128xf32>
    %770 = arith.addf %762, %769 : vector<4x128xf32>
    %771 = vector.extract_strided_slice %754 {offsets = [4, 0], sizes = [1, 128], strides = [1, 1]} : vector<6x128xf32> to vector<1x128xf32>
    %772 = vector.extract_strided_slice %754 {offsets = [5, 0], sizes = [1, 128], strides = [1, 1]} : vector<6x128xf32> to vector<1x128xf32>
    %773 = arith.maximumf %771, %772 : vector<1x128xf32>
    %774 = vector.extract_strided_slice %3 {offsets = [0, 29], sizes = [4, 1], strides = [1, 1]} : vector<4x72xf32> to vector<4x1xf32>
    %775 = vector.broadcast %773 : vector<1x128xf32> to vector<4x128xf32>
    %776 = vector.broadcast %774 : vector<4x1xf32> to vector<4x128xf32>
    %777 = arith.mulf %775, %776 : vector<4x128xf32>
    %778 = arith.addf %770, %777 : vector<4x128xf32>
    %779 = vector.extract_strided_slice %0 {offsets = [2, 0, 0], sizes = [2, 6, 128], strides = [1, 1, 1]} : vector<8x6x128xf32> to vector<2x6x128xf32>
    %c27_79 = arith.constant 27 : index
    %780 = memref.load %arg2[%c27_79] : memref<72xf32, #tpu.memory_space<smem>>
    %781 = vector.broadcast %780 : f32 to vector<2x6x128xf32>
    %782 = arith.mulf %779, %781 : vector<2x6x128xf32>
    %783 = vector.extract_strided_slice %1 {offsets = [2, 0, 0], sizes = [2, 6, 128], strides = [1, 1, 1]} : vector<8x6x128xf32> to vector<2x6x128xf32>
    %c28_80 = arith.constant 28 : index
    %784 = memref.load %arg2[%c28_80] : memref<72xf32, #tpu.memory_space<smem>>
    %785 = vector.broadcast %784 : f32 to vector<2x6x128xf32>
    %786 = arith.mulf %783, %785 : vector<2x6x128xf32>
    %787 = arith.addf %782, %786 : vector<2x6x128xf32>
    %788 = vector.extract_strided_slice %2 {offsets = [2, 0, 0], sizes = [2, 6, 128], strides = [1, 1, 1]} : vector<8x6x128xf32> to vector<2x6x128xf32>
    %c29_81 = arith.constant 29 : index
    %789 = memref.load %arg2[%c29_81] : memref<72xf32, #tpu.memory_space<smem>>
    %790 = vector.broadcast %789 : f32 to vector<2x6x128xf32>
    %791 = arith.mulf %788, %790 : vector<2x6x128xf32>
    %792 = arith.addf %787, %791 : vector<2x6x128xf32>
    %793 = vector.extract_strided_slice %0 {offsets = [3, 0, 0], sizes = [2, 6, 128], strides = [1, 1, 1]} : vector<8x6x128xf32> to vector<2x6x128xf32>
    %c30_82 = arith.constant 30 : index
    %794 = memref.load %arg2[%c30_82] : memref<72xf32, #tpu.memory_space<smem>>
    %795 = vector.broadcast %794 : f32 to vector<2x6x128xf32>
    %796 = arith.mulf %793, %795 : vector<2x6x128xf32>
    %797 = arith.addf %792, %796 : vector<2x6x128xf32>
    %798 = vector.extract_strided_slice %1 {offsets = [3, 0, 0], sizes = [2, 6, 128], strides = [1, 1, 1]} : vector<8x6x128xf32> to vector<2x6x128xf32>
    %c31_83 = arith.constant 31 : index
    %799 = memref.load %arg2[%c31_83] : memref<72xf32, #tpu.memory_space<smem>>
    %800 = vector.broadcast %799 : f32 to vector<2x6x128xf32>
    %801 = arith.mulf %798, %800 : vector<2x6x128xf32>
    %802 = arith.addf %797, %801 : vector<2x6x128xf32>
    %803 = vector.extract_strided_slice %2 {offsets = [3, 0, 0], sizes = [2, 6, 128], strides = [1, 1, 1]} : vector<8x6x128xf32> to vector<2x6x128xf32>
    %c32_84 = arith.constant 32 : index
    %804 = memref.load %arg2[%c32_84] : memref<72xf32, #tpu.memory_space<smem>>
    %805 = vector.broadcast %804 : f32 to vector<2x6x128xf32>
    %806 = arith.mulf %803, %805 : vector<2x6x128xf32>
    %807 = arith.addf %802, %806 : vector<2x6x128xf32>
    %808 = vector.extract_strided_slice %0 {offsets = [4, 0, 0], sizes = [2, 6, 128], strides = [1, 1, 1]} : vector<8x6x128xf32> to vector<2x6x128xf32>
    %c33_85 = arith.constant 33 : index
    %809 = memref.load %arg2[%c33_85] : memref<72xf32, #tpu.memory_space<smem>>
    %810 = vector.broadcast %809 : f32 to vector<2x6x128xf32>
    %811 = arith.mulf %808, %810 : vector<2x6x128xf32>
    %812 = arith.addf %807, %811 : vector<2x6x128xf32>
    %813 = vector.extract_strided_slice %1 {offsets = [4, 0, 0], sizes = [2, 6, 128], strides = [1, 1, 1]} : vector<8x6x128xf32> to vector<2x6x128xf32>
    %c34_86 = arith.constant 34 : index
    %814 = memref.load %arg2[%c34_86] : memref<72xf32, #tpu.memory_space<smem>>
    %815 = vector.broadcast %814 : f32 to vector<2x6x128xf32>
    %816 = arith.mulf %813, %815 : vector<2x6x128xf32>
    %817 = arith.addf %812, %816 : vector<2x6x128xf32>
    %818 = vector.extract_strided_slice %2 {offsets = [4, 0, 0], sizes = [2, 6, 128], strides = [1, 1, 1]} : vector<8x6x128xf32> to vector<2x6x128xf32>
    %c35_87 = arith.constant 35 : index
    %819 = memref.load %arg2[%c35_87] : memref<72xf32, #tpu.memory_space<smem>>
    %820 = vector.broadcast %819 : f32 to vector<2x6x128xf32>
    %821 = arith.mulf %818, %820 : vector<2x6x128xf32>
    %822 = arith.addf %817, %821 : vector<2x6x128xf32>
    %823 = vector.extract_strided_slice %822 {offsets = [0, 0, 0], sizes = [1, 6, 128], strides = [1, 1, 1]} : vector<2x6x128xf32> to vector<1x6x128xf32>
    %824 = vector.shape_cast %823 : vector<1x6x128xf32> to vector<6x128xf32>
    %825 = vector.extract_strided_slice %822 {offsets = [1, 0, 0], sizes = [1, 6, 128], strides = [1, 1, 1]} : vector<2x6x128xf32> to vector<1x6x128xf32>
    %826 = vector.shape_cast %825 : vector<1x6x128xf32> to vector<6x128xf32>
    %827 = arith.maximumf %824, %826 : vector<6x128xf32>
    %828 = vector.broadcast %701 : f32 to vector<6x128xf32>
    %829 = arith.addf %827, %828 : vector<6x128xf32>
    %cst_88 = arith.constant 0.000000e+00 : f32
    %830 = vector.broadcast %cst_88 : f32 to vector<6x128xf32>
    %831 = arith.maximumf %829, %830 : vector<6x128xf32>
    %832 = vector.extract_strided_slice %831 {offsets = [0, 0], sizes = [1, 128], strides = [1, 1]} : vector<6x128xf32> to vector<1x128xf32>
    %833 = vector.extract_strided_slice %831 {offsets = [1, 0], sizes = [1, 128], strides = [1, 1]} : vector<6x128xf32> to vector<1x128xf32>
    %834 = arith.maximumf %832, %833 : vector<1x128xf32>
    %835 = vector.extract_strided_slice %3 {offsets = [0, 30], sizes = [4, 1], strides = [1, 1]} : vector<4x72xf32> to vector<4x1xf32>
    %836 = vector.broadcast %834 : vector<1x128xf32> to vector<4x128xf32>
    %837 = vector.broadcast %835 : vector<4x1xf32> to vector<4x128xf32>
    %838 = arith.mulf %836, %837 : vector<4x128xf32>
    %839 = arith.addf %778, %838 : vector<4x128xf32>
    %840 = vector.extract_strided_slice %831 {offsets = [2, 0], sizes = [1, 128], strides = [1, 1]} : vector<6x128xf32> to vector<1x128xf32>
    %841 = vector.extract_strided_slice %831 {offsets = [3, 0], sizes = [1, 128], strides = [1, 1]} : vector<6x128xf32> to vector<1x128xf32>
    %842 = arith.maximumf %840, %841 : vector<1x128xf32>
    %843 = vector.extract_strided_slice %3 {offsets = [0, 31], sizes = [4, 1], strides = [1, 1]} : vector<4x72xf32> to vector<4x1xf32>
    %844 = vector.broadcast %842 : vector<1x128xf32> to vector<4x128xf32>
    %845 = vector.broadcast %843 : vector<4x1xf32> to vector<4x128xf32>
    %846 = arith.mulf %844, %845 : vector<4x128xf32>
    %847 = arith.addf %839, %846 : vector<4x128xf32>
    %848 = vector.extract_strided_slice %831 {offsets = [4, 0], sizes = [1, 128], strides = [1, 1]} : vector<6x128xf32> to vector<1x128xf32>
    %849 = vector.extract_strided_slice %831 {offsets = [5, 0], sizes = [1, 128], strides = [1, 1]} : vector<6x128xf32> to vector<1x128xf32>
    %850 = arith.maximumf %848, %849 : vector<1x128xf32>
    %851 = vector.extract_strided_slice %3 {offsets = [0, 32], sizes = [4, 1], strides = [1, 1]} : vector<4x72xf32> to vector<4x1xf32>
    %852 = vector.broadcast %850 : vector<1x128xf32> to vector<4x128xf32>
    %853 = vector.broadcast %851 : vector<4x1xf32> to vector<4x128xf32>
    %854 = arith.mulf %852, %853 : vector<4x128xf32>
    %855 = arith.addf %847, %854 : vector<4x128xf32>
    %856 = vector.extract_strided_slice %0 {offsets = [4, 0, 0], sizes = [2, 6, 128], strides = [1, 1, 1]} : vector<8x6x128xf32> to vector<2x6x128xf32>
    %c27_89 = arith.constant 27 : index
    %857 = memref.load %arg2[%c27_89] : memref<72xf32, #tpu.memory_space<smem>>
    %858 = vector.broadcast %857 : f32 to vector<2x6x128xf32>
    %859 = arith.mulf %856, %858 : vector<2x6x128xf32>
    %860 = vector.extract_strided_slice %1 {offsets = [4, 0, 0], sizes = [2, 6, 128], strides = [1, 1, 1]} : vector<8x6x128xf32> to vector<2x6x128xf32>
    %c28_90 = arith.constant 28 : index
    %861 = memref.load %arg2[%c28_90] : memref<72xf32, #tpu.memory_space<smem>>
    %862 = vector.broadcast %861 : f32 to vector<2x6x128xf32>
    %863 = arith.mulf %860, %862 : vector<2x6x128xf32>
    %864 = arith.addf %859, %863 : vector<2x6x128xf32>
    %865 = vector.extract_strided_slice %2 {offsets = [4, 0, 0], sizes = [2, 6, 128], strides = [1, 1, 1]} : vector<8x6x128xf32> to vector<2x6x128xf32>
    %c29_91 = arith.constant 29 : index
    %866 = memref.load %arg2[%c29_91] : memref<72xf32, #tpu.memory_space<smem>>
    %867 = vector.broadcast %866 : f32 to vector<2x6x128xf32>
    %868 = arith.mulf %865, %867 : vector<2x6x128xf32>
    %869 = arith.addf %864, %868 : vector<2x6x128xf32>
    %870 = vector.extract_strided_slice %0 {offsets = [5, 0, 0], sizes = [2, 6, 128], strides = [1, 1, 1]} : vector<8x6x128xf32> to vector<2x6x128xf32>
    %c30_92 = arith.constant 30 : index
    %871 = memref.load %arg2[%c30_92] : memref<72xf32, #tpu.memory_space<smem>>
    %872 = vector.broadcast %871 : f32 to vector<2x6x128xf32>
    %873 = arith.mulf %870, %872 : vector<2x6x128xf32>
    %874 = arith.addf %869, %873 : vector<2x6x128xf32>
    %875 = vector.extract_strided_slice %1 {offsets = [5, 0, 0], sizes = [2, 6, 128], strides = [1, 1, 1]} : vector<8x6x128xf32> to vector<2x6x128xf32>
    %c31_93 = arith.constant 31 : index
    %876 = memref.load %arg2[%c31_93] : memref<72xf32, #tpu.memory_space<smem>>
    %877 = vector.broadcast %876 : f32 to vector<2x6x128xf32>
    %878 = arith.mulf %875, %877 : vector<2x6x128xf32>
    %879 = arith.addf %874, %878 : vector<2x6x128xf32>
    %880 = vector.extract_strided_slice %2 {offsets = [5, 0, 0], sizes = [2, 6, 128], strides = [1, 1, 1]} : vector<8x6x128xf32> to vector<2x6x128xf32>
    %c32_94 = arith.constant 32 : index
    %881 = memref.load %arg2[%c32_94] : memref<72xf32, #tpu.memory_space<smem>>
    %882 = vector.broadcast %881 : f32 to vector<2x6x128xf32>
    %883 = arith.mulf %880, %882 : vector<2x6x128xf32>
    %884 = arith.addf %879, %883 : vector<2x6x128xf32>
    %885 = vector.extract_strided_slice %0 {offsets = [6, 0, 0], sizes = [2, 6, 128], strides = [1, 1, 1]} : vector<8x6x128xf32> to vector<2x6x128xf32>
    %c33_95 = arith.constant 33 : index
    %886 = memref.load %arg2[%c33_95] : memref<72xf32, #tpu.memory_space<smem>>
    %887 = vector.broadcast %886 : f32 to vector<2x6x128xf32>
    %888 = arith.mulf %885, %887 : vector<2x6x128xf32>
    %889 = arith.addf %884, %888 : vector<2x6x128xf32>
    %890 = vector.extract_strided_slice %1 {offsets = [6, 0, 0], sizes = [2, 6, 128], strides = [1, 1, 1]} : vector<8x6x128xf32> to vector<2x6x128xf32>
    %c34_96 = arith.constant 34 : index
    %891 = memref.load %arg2[%c34_96] : memref<72xf32, #tpu.memory_space<smem>>
    %892 = vector.broadcast %891 : f32 to vector<2x6x128xf32>
    %893 = arith.mulf %890, %892 : vector<2x6x128xf32>
    %894 = arith.addf %889, %893 : vector<2x6x128xf32>
    %895 = vector.extract_strided_slice %2 {offsets = [6, 0, 0], sizes = [2, 6, 128], strides = [1, 1, 1]} : vector<8x6x128xf32> to vector<2x6x128xf32>
    %c35_97 = arith.constant 35 : index
    %896 = memref.load %arg2[%c35_97] : memref<72xf32, #tpu.memory_space<smem>>
    %897 = vector.broadcast %896 : f32 to vector<2x6x128xf32>
    %898 = arith.mulf %895, %897 : vector<2x6x128xf32>
    %899 = arith.addf %894, %898 : vector<2x6x128xf32>
    %900 = vector.extract_strided_slice %899 {offsets = [0, 0, 0], sizes = [1, 6, 128], strides = [1, 1, 1]} : vector<2x6x128xf32> to vector<1x6x128xf32>
    %901 = vector.shape_cast %900 : vector<1x6x128xf32> to vector<6x128xf32>
    %902 = vector.extract_strided_slice %899 {offsets = [1, 0, 0], sizes = [1, 6, 128], strides = [1, 1, 1]} : vector<2x6x128xf32> to vector<1x6x128xf32>
    %903 = vector.shape_cast %902 : vector<1x6x128xf32> to vector<6x128xf32>
    %904 = arith.maximumf %901, %903 : vector<6x128xf32>
    %905 = vector.broadcast %701 : f32 to vector<6x128xf32>
    %906 = arith.addf %904, %905 : vector<6x128xf32>
    %cst_98 = arith.constant 0.000000e+00 : f32
    %907 = vector.broadcast %cst_98 : f32 to vector<6x128xf32>
    %908 = arith.maximumf %906, %907 : vector<6x128xf32>
    %909 = vector.extract_strided_slice %908 {offsets = [0, 0], sizes = [1, 128], strides = [1, 1]} : vector<6x128xf32> to vector<1x128xf32>
    %910 = vector.extract_strided_slice %908 {offsets = [1, 0], sizes = [1, 128], strides = [1, 1]} : vector<6x128xf32> to vector<1x128xf32>
    %911 = arith.maximumf %909, %910 : vector<1x128xf32>
    %912 = vector.extract_strided_slice %3 {offsets = [0, 33], sizes = [4, 1], strides = [1, 1]} : vector<4x72xf32> to vector<4x1xf32>
    %913 = vector.broadcast %911 : vector<1x128xf32> to vector<4x128xf32>
    %914 = vector.broadcast %912 : vector<4x1xf32> to vector<4x128xf32>
    %915 = arith.mulf %913, %914 : vector<4x128xf32>
    %916 = arith.addf %855, %915 : vector<4x128xf32>
    %917 = vector.extract_strided_slice %908 {offsets = [2, 0], sizes = [1, 128], strides = [1, 1]} : vector<6x128xf32> to vector<1x128xf32>
    %918 = vector.extract_strided_slice %908 {offsets = [3, 0], sizes = [1, 128], strides = [1, 1]} : vector<6x128xf32> to vector<1x128xf32>
    %919 = arith.maximumf %917, %918 : vector<1x128xf32>
    %920 = vector.extract_strided_slice %3 {offsets = [0, 34], sizes = [4, 1], strides = [1, 1]} : vector<4x72xf32> to vector<4x1xf32>
    %921 = vector.broadcast %919 : vector<1x128xf32> to vector<4x128xf32>
    %922 = vector.broadcast %920 : vector<4x1xf32> to vector<4x128xf32>
    %923 = arith.mulf %921, %922 : vector<4x128xf32>
    %924 = arith.addf %916, %923 : vector<4x128xf32>
    %925 = vector.extract_strided_slice %908 {offsets = [4, 0], sizes = [1, 128], strides = [1, 1]} : vector<6x128xf32> to vector<1x128xf32>
    %926 = vector.extract_strided_slice %908 {offsets = [5, 0], sizes = [1, 128], strides = [1, 1]} : vector<6x128xf32> to vector<1x128xf32>
    %927 = arith.maximumf %925, %926 : vector<1x128xf32>
    %928 = vector.extract_strided_slice %3 {offsets = [0, 35], sizes = [4, 1], strides = [1, 1]} : vector<4x72xf32> to vector<4x1xf32>
    %929 = vector.broadcast %927 : vector<1x128xf32> to vector<4x128xf32>
    %930 = vector.broadcast %928 : vector<4x1xf32> to vector<4x128xf32>
    %931 = arith.mulf %929, %930 : vector<4x128xf32>
    %932 = arith.addf %924, %931 : vector<4x128xf32>
    %c4_99 = arith.constant 4 : index
    %933 = memref.load %arg3[%c4_99] : memref<8xf32, #tpu.memory_space<smem>>
    %934 = vector.extract_strided_slice %0 {offsets = [0, 0, 0], sizes = [2, 6, 128], strides = [1, 1, 1]} : vector<8x6x128xf32> to vector<2x6x128xf32>
    %c36 = arith.constant 36 : index
    %935 = memref.load %arg2[%c36] : memref<72xf32, #tpu.memory_space<smem>>
    %936 = vector.broadcast %935 : f32 to vector<2x6x128xf32>
    %937 = arith.mulf %934, %936 : vector<2x6x128xf32>
    %938 = vector.extract_strided_slice %1 {offsets = [0, 0, 0], sizes = [2, 6, 128], strides = [1, 1, 1]} : vector<8x6x128xf32> to vector<2x6x128xf32>
    %c37 = arith.constant 37 : index
    %939 = memref.load %arg2[%c37] : memref<72xf32, #tpu.memory_space<smem>>
    %940 = vector.broadcast %939 : f32 to vector<2x6x128xf32>
    %941 = arith.mulf %938, %940 : vector<2x6x128xf32>
    %942 = arith.addf %937, %941 : vector<2x6x128xf32>
    %943 = vector.extract_strided_slice %2 {offsets = [0, 0, 0], sizes = [2, 6, 128], strides = [1, 1, 1]} : vector<8x6x128xf32> to vector<2x6x128xf32>
    %c38 = arith.constant 38 : index
    %944 = memref.load %arg2[%c38] : memref<72xf32, #tpu.memory_space<smem>>
    %945 = vector.broadcast %944 : f32 to vector<2x6x128xf32>
    %946 = arith.mulf %943, %945 : vector<2x6x128xf32>
    %947 = arith.addf %942, %946 : vector<2x6x128xf32>
    %948 = vector.extract_strided_slice %0 {offsets = [1, 0, 0], sizes = [2, 6, 128], strides = [1, 1, 1]} : vector<8x6x128xf32> to vector<2x6x128xf32>
    %c39 = arith.constant 39 : index
    %949 = memref.load %arg2[%c39] : memref<72xf32, #tpu.memory_space<smem>>
    %950 = vector.broadcast %949 : f32 to vector<2x6x128xf32>
    %951 = arith.mulf %948, %950 : vector<2x6x128xf32>
    %952 = arith.addf %947, %951 : vector<2x6x128xf32>
    %953 = vector.extract_strided_slice %1 {offsets = [1, 0, 0], sizes = [2, 6, 128], strides = [1, 1, 1]} : vector<8x6x128xf32> to vector<2x6x128xf32>
    %c40 = arith.constant 40 : index
    %954 = memref.load %arg2[%c40] : memref<72xf32, #tpu.memory_space<smem>>
    %955 = vector.broadcast %954 : f32 to vector<2x6x128xf32>
    %956 = arith.mulf %953, %955 : vector<2x6x128xf32>
    %957 = arith.addf %952, %956 : vector<2x6x128xf32>
    %958 = vector.extract_strided_slice %2 {offsets = [1, 0, 0], sizes = [2, 6, 128], strides = [1, 1, 1]} : vector<8x6x128xf32> to vector<2x6x128xf32>
    %c41 = arith.constant 41 : index
    %959 = memref.load %arg2[%c41] : memref<72xf32, #tpu.memory_space<smem>>
    %960 = vector.broadcast %959 : f32 to vector<2x6x128xf32>
    %961 = arith.mulf %958, %960 : vector<2x6x128xf32>
    %962 = arith.addf %957, %961 : vector<2x6x128xf32>
    %963 = vector.extract_strided_slice %0 {offsets = [2, 0, 0], sizes = [2, 6, 128], strides = [1, 1, 1]} : vector<8x6x128xf32> to vector<2x6x128xf32>
    %c42 = arith.constant 42 : index
    %964 = memref.load %arg2[%c42] : memref<72xf32, #tpu.memory_space<smem>>
    %965 = vector.broadcast %964 : f32 to vector<2x6x128xf32>
    %966 = arith.mulf %963, %965 : vector<2x6x128xf32>
    %967 = arith.addf %962, %966 : vector<2x6x128xf32>
    %968 = vector.extract_strided_slice %1 {offsets = [2, 0, 0], sizes = [2, 6, 128], strides = [1, 1, 1]} : vector<8x6x128xf32> to vector<2x6x128xf32>
    %c43 = arith.constant 43 : index
    %969 = memref.load %arg2[%c43] : memref<72xf32, #tpu.memory_space<smem>>
    %970 = vector.broadcast %969 : f32 to vector<2x6x128xf32>
    %971 = arith.mulf %968, %970 : vector<2x6x128xf32>
    %972 = arith.addf %967, %971 : vector<2x6x128xf32>
    %973 = vector.extract_strided_slice %2 {offsets = [2, 0, 0], sizes = [2, 6, 128], strides = [1, 1, 1]} : vector<8x6x128xf32> to vector<2x6x128xf32>
    %c44 = arith.constant 44 : index
    %974 = memref.load %arg2[%c44] : memref<72xf32, #tpu.memory_space<smem>>
    %975 = vector.broadcast %974 : f32 to vector<2x6x128xf32>
    %976 = arith.mulf %973, %975 : vector<2x6x128xf32>
    %977 = arith.addf %972, %976 : vector<2x6x128xf32>
    %978 = vector.extract_strided_slice %977 {offsets = [0, 0, 0], sizes = [1, 6, 128], strides = [1, 1, 1]} : vector<2x6x128xf32> to vector<1x6x128xf32>
    %979 = vector.shape_cast %978 : vector<1x6x128xf32> to vector<6x128xf32>
    %980 = vector.extract_strided_slice %977 {offsets = [1, 0, 0], sizes = [1, 6, 128], strides = [1, 1, 1]} : vector<2x6x128xf32> to vector<1x6x128xf32>
    %981 = vector.shape_cast %980 : vector<1x6x128xf32> to vector<6x128xf32>
    %982 = arith.maximumf %979, %981 : vector<6x128xf32>
    %983 = vector.broadcast %933 : f32 to vector<6x128xf32>
    %984 = arith.addf %982, %983 : vector<6x128xf32>
    %cst_100 = arith.constant 0.000000e+00 : f32
    %985 = vector.broadcast %cst_100 : f32 to vector<6x128xf32>
    %986 = arith.maximumf %984, %985 : vector<6x128xf32>
    %987 = vector.extract_strided_slice %986 {offsets = [0, 0], sizes = [1, 128], strides = [1, 1]} : vector<6x128xf32> to vector<1x128xf32>
    %988 = vector.extract_strided_slice %986 {offsets = [1, 0], sizes = [1, 128], strides = [1, 1]} : vector<6x128xf32> to vector<1x128xf32>
    %989 = arith.maximumf %987, %988 : vector<1x128xf32>
    %990 = vector.extract_strided_slice %3 {offsets = [0, 36], sizes = [4, 1], strides = [1, 1]} : vector<4x72xf32> to vector<4x1xf32>
    %991 = vector.broadcast %989 : vector<1x128xf32> to vector<4x128xf32>
    %992 = vector.broadcast %990 : vector<4x1xf32> to vector<4x128xf32>
    %993 = arith.mulf %991, %992 : vector<4x128xf32>
    %994 = arith.addf %932, %993 : vector<4x128xf32>
    %995 = vector.extract_strided_slice %986 {offsets = [2, 0], sizes = [1, 128], strides = [1, 1]} : vector<6x128xf32> to vector<1x128xf32>
    %996 = vector.extract_strided_slice %986 {offsets = [3, 0], sizes = [1, 128], strides = [1, 1]} : vector<6x128xf32> to vector<1x128xf32>
    %997 = arith.maximumf %995, %996 : vector<1x128xf32>
    %998 = vector.extract_strided_slice %3 {offsets = [0, 37], sizes = [4, 1], strides = [1, 1]} : vector<4x72xf32> to vector<4x1xf32>
    %999 = vector.broadcast %997 : vector<1x128xf32> to vector<4x128xf32>
    %1000 = vector.broadcast %998 : vector<4x1xf32> to vector<4x128xf32>
    %1001 = arith.mulf %999, %1000 : vector<4x128xf32>
    %1002 = arith.addf %994, %1001 : vector<4x128xf32>
    %1003 = vector.extract_strided_slice %986 {offsets = [4, 0], sizes = [1, 128], strides = [1, 1]} : vector<6x128xf32> to vector<1x128xf32>
    %1004 = vector.extract_strided_slice %986 {offsets = [5, 0], sizes = [1, 128], strides = [1, 1]} : vector<6x128xf32> to vector<1x128xf32>
    %1005 = arith.maximumf %1003, %1004 : vector<1x128xf32>
    %1006 = vector.extract_strided_slice %3 {offsets = [0, 38], sizes = [4, 1], strides = [1, 1]} : vector<4x72xf32> to vector<4x1xf32>
    %1007 = vector.broadcast %1005 : vector<1x128xf32> to vector<4x128xf32>
    %1008 = vector.broadcast %1006 : vector<4x1xf32> to vector<4x128xf32>
    %1009 = arith.mulf %1007, %1008 : vector<4x128xf32>
    %1010 = arith.addf %1002, %1009 : vector<4x128xf32>
    %1011 = vector.extract_strided_slice %0 {offsets = [2, 0, 0], sizes = [2, 6, 128], strides = [1, 1, 1]} : vector<8x6x128xf32> to vector<2x6x128xf32>
    %c36_101 = arith.constant 36 : index
    %1012 = memref.load %arg2[%c36_101] : memref<72xf32, #tpu.memory_space<smem>>
    %1013 = vector.broadcast %1012 : f32 to vector<2x6x128xf32>
    %1014 = arith.mulf %1011, %1013 : vector<2x6x128xf32>
    %1015 = vector.extract_strided_slice %1 {offsets = [2, 0, 0], sizes = [2, 6, 128], strides = [1, 1, 1]} : vector<8x6x128xf32> to vector<2x6x128xf32>
    %c37_102 = arith.constant 37 : index
    %1016 = memref.load %arg2[%c37_102] : memref<72xf32, #tpu.memory_space<smem>>
    %1017 = vector.broadcast %1016 : f32 to vector<2x6x128xf32>
    %1018 = arith.mulf %1015, %1017 : vector<2x6x128xf32>
    %1019 = arith.addf %1014, %1018 : vector<2x6x128xf32>
    %1020 = vector.extract_strided_slice %2 {offsets = [2, 0, 0], sizes = [2, 6, 128], strides = [1, 1, 1]} : vector<8x6x128xf32> to vector<2x6x128xf32>
    %c38_103 = arith.constant 38 : index
    %1021 = memref.load %arg2[%c38_103] : memref<72xf32, #tpu.memory_space<smem>>
    %1022 = vector.broadcast %1021 : f32 to vector<2x6x128xf32>
    %1023 = arith.mulf %1020, %1022 : vector<2x6x128xf32>
    %1024 = arith.addf %1019, %1023 : vector<2x6x128xf32>
    %1025 = vector.extract_strided_slice %0 {offsets = [3, 0, 0], sizes = [2, 6, 128], strides = [1, 1, 1]} : vector<8x6x128xf32> to vector<2x6x128xf32>
    %c39_104 = arith.constant 39 : index
    %1026 = memref.load %arg2[%c39_104] : memref<72xf32, #tpu.memory_space<smem>>
    %1027 = vector.broadcast %1026 : f32 to vector<2x6x128xf32>
    %1028 = arith.mulf %1025, %1027 : vector<2x6x128xf32>
    %1029 = arith.addf %1024, %1028 : vector<2x6x128xf32>
    %1030 = vector.extract_strided_slice %1 {offsets = [3, 0, 0], sizes = [2, 6, 128], strides = [1, 1, 1]} : vector<8x6x128xf32> to vector<2x6x128xf32>
    %c40_105 = arith.constant 40 : index
    %1031 = memref.load %arg2[%c40_105] : memref<72xf32, #tpu.memory_space<smem>>
    %1032 = vector.broadcast %1031 : f32 to vector<2x6x128xf32>
    %1033 = arith.mulf %1030, %1032 : vector<2x6x128xf32>
    %1034 = arith.addf %1029, %1033 : vector<2x6x128xf32>
    %1035 = vector.extract_strided_slice %2 {offsets = [3, 0, 0], sizes = [2, 6, 128], strides = [1, 1, 1]} : vector<8x6x128xf32> to vector<2x6x128xf32>
    %c41_106 = arith.constant 41 : index
    %1036 = memref.load %arg2[%c41_106] : memref<72xf32, #tpu.memory_space<smem>>
    %1037 = vector.broadcast %1036 : f32 to vector<2x6x128xf32>
    %1038 = arith.mulf %1035, %1037 : vector<2x6x128xf32>
    %1039 = arith.addf %1034, %1038 : vector<2x6x128xf32>
    %1040 = vector.extract_strided_slice %0 {offsets = [4, 0, 0], sizes = [2, 6, 128], strides = [1, 1, 1]} : vector<8x6x128xf32> to vector<2x6x128xf32>
    %c42_107 = arith.constant 42 : index
    %1041 = memref.load %arg2[%c42_107] : memref<72xf32, #tpu.memory_space<smem>>
    %1042 = vector.broadcast %1041 : f32 to vector<2x6x128xf32>
    %1043 = arith.mulf %1040, %1042 : vector<2x6x128xf32>
    %1044 = arith.addf %1039, %1043 : vector<2x6x128xf32>
    %1045 = vector.extract_strided_slice %1 {offsets = [4, 0, 0], sizes = [2, 6, 128], strides = [1, 1, 1]} : vector<8x6x128xf32> to vector<2x6x128xf32>
    %c43_108 = arith.constant 43 : index
    %1046 = memref.load %arg2[%c43_108] : memref<72xf32, #tpu.memory_space<smem>>
    %1047 = vector.broadcast %1046 : f32 to vector<2x6x128xf32>
    %1048 = arith.mulf %1045, %1047 : vector<2x6x128xf32>
    %1049 = arith.addf %1044, %1048 : vector<2x6x128xf32>
    %1050 = vector.extract_strided_slice %2 {offsets = [4, 0, 0], sizes = [2, 6, 128], strides = [1, 1, 1]} : vector<8x6x128xf32> to vector<2x6x128xf32>
    %c44_109 = arith.constant 44 : index
    %1051 = memref.load %arg2[%c44_109] : memref<72xf32, #tpu.memory_space<smem>>
    %1052 = vector.broadcast %1051 : f32 to vector<2x6x128xf32>
    %1053 = arith.mulf %1050, %1052 : vector<2x6x128xf32>
    %1054 = arith.addf %1049, %1053 : vector<2x6x128xf32>
    %1055 = vector.extract_strided_slice %1054 {offsets = [0, 0, 0], sizes = [1, 6, 128], strides = [1, 1, 1]} : vector<2x6x128xf32> to vector<1x6x128xf32>
    %1056 = vector.shape_cast %1055 : vector<1x6x128xf32> to vector<6x128xf32>
    %1057 = vector.extract_strided_slice %1054 {offsets = [1, 0, 0], sizes = [1, 6, 128], strides = [1, 1, 1]} : vector<2x6x128xf32> to vector<1x6x128xf32>
    %1058 = vector.shape_cast %1057 : vector<1x6x128xf32> to vector<6x128xf32>
    %1059 = arith.maximumf %1056, %1058 : vector<6x128xf32>
    %1060 = vector.broadcast %933 : f32 to vector<6x128xf32>
    %1061 = arith.addf %1059, %1060 : vector<6x128xf32>
    %cst_110 = arith.constant 0.000000e+00 : f32
    %1062 = vector.broadcast %cst_110 : f32 to vector<6x128xf32>
    %1063 = arith.maximumf %1061, %1062 : vector<6x128xf32>
    %1064 = vector.extract_strided_slice %1063 {offsets = [0, 0], sizes = [1, 128], strides = [1, 1]} : vector<6x128xf32> to vector<1x128xf32>
    %1065 = vector.extract_strided_slice %1063 {offsets = [1, 0], sizes = [1, 128], strides = [1, 1]} : vector<6x128xf32> to vector<1x128xf32>
    %1066 = arith.maximumf %1064, %1065 : vector<1x128xf32>
    %1067 = vector.extract_strided_slice %3 {offsets = [0, 39], sizes = [4, 1], strides = [1, 1]} : vector<4x72xf32> to vector<4x1xf32>
    %1068 = vector.broadcast %1066 : vector<1x128xf32> to vector<4x128xf32>
    %1069 = vector.broadcast %1067 : vector<4x1xf32> to vector<4x128xf32>
    %1070 = arith.mulf %1068, %1069 : vector<4x128xf32>
    %1071 = arith.addf %1010, %1070 : vector<4x128xf32>
    %1072 = vector.extract_strided_slice %1063 {offsets = [2, 0], sizes = [1, 128], strides = [1, 1]} : vector<6x128xf32> to vector<1x128xf32>
    %1073 = vector.extract_strided_slice %1063 {offsets = [3, 0], sizes = [1, 128], strides = [1, 1]} : vector<6x128xf32> to vector<1x128xf32>
    %1074 = arith.maximumf %1072, %1073 : vector<1x128xf32>
    %1075 = vector.extract_strided_slice %3 {offsets = [0, 40], sizes = [4, 1], strides = [1, 1]} : vector<4x72xf32> to vector<4x1xf32>
    %1076 = vector.broadcast %1074 : vector<1x128xf32> to vector<4x128xf32>
    %1077 = vector.broadcast %1075 : vector<4x1xf32> to vector<4x128xf32>
    %1078 = arith.mulf %1076, %1077 : vector<4x128xf32>
    %1079 = arith.addf %1071, %1078 : vector<4x128xf32>
    %1080 = vector.extract_strided_slice %1063 {offsets = [4, 0], sizes = [1, 128], strides = [1, 1]} : vector<6x128xf32> to vector<1x128xf32>
    %1081 = vector.extract_strided_slice %1063 {offsets = [5, 0], sizes = [1, 128], strides = [1, 1]} : vector<6x128xf32> to vector<1x128xf32>
    %1082 = arith.maximumf %1080, %1081 : vector<1x128xf32>
    %1083 = vector.extract_strided_slice %3 {offsets = [0, 41], sizes = [4, 1], strides = [1, 1]} : vector<4x72xf32> to vector<4x1xf32>
    %1084 = vector.broadcast %1082 : vector<1x128xf32> to vector<4x128xf32>
    %1085 = vector.broadcast %1083 : vector<4x1xf32> to vector<4x128xf32>
    %1086 = arith.mulf %1084, %1085 : vector<4x128xf32>
    %1087 = arith.addf %1079, %1086 : vector<4x128xf32>
    %1088 = vector.extract_strided_slice %0 {offsets = [4, 0, 0], sizes = [2, 6, 128], strides = [1, 1, 1]} : vector<8x6x128xf32> to vector<2x6x128xf32>
    %c36_111 = arith.constant 36 : index
    %1089 = memref.load %arg2[%c36_111] : memref<72xf32, #tpu.memory_space<smem>>
    %1090 = vector.broadcast %1089 : f32 to vector<2x6x128xf32>
    %1091 = arith.mulf %1088, %1090 : vector<2x6x128xf32>
    %1092 = vector.extract_strided_slice %1 {offsets = [4, 0, 0], sizes = [2, 6, 128], strides = [1, 1, 1]} : vector<8x6x128xf32> to vector<2x6x128xf32>
    %c37_112 = arith.constant 37 : index
    %1093 = memref.load %arg2[%c37_112] : memref<72xf32, #tpu.memory_space<smem>>
    %1094 = vector.broadcast %1093 : f32 to vector<2x6x128xf32>
    %1095 = arith.mulf %1092, %1094 : vector<2x6x128xf32>
    %1096 = arith.addf %1091, %1095 : vector<2x6x128xf32>
    %1097 = vector.extract_strided_slice %2 {offsets = [4, 0, 0], sizes = [2, 6, 128], strides = [1, 1, 1]} : vector<8x6x128xf32> to vector<2x6x128xf32>
    %c38_113 = arith.constant 38 : index
    %1098 = memref.load %arg2[%c38_113] : memref<72xf32, #tpu.memory_space<smem>>
    %1099 = vector.broadcast %1098 : f32 to vector<2x6x128xf32>
    %1100 = arith.mulf %1097, %1099 : vector<2x6x128xf32>
    %1101 = arith.addf %1096, %1100 : vector<2x6x128xf32>
    %1102 = vector.extract_strided_slice %0 {offsets = [5, 0, 0], sizes = [2, 6, 128], strides = [1, 1, 1]} : vector<8x6x128xf32> to vector<2x6x128xf32>
    %c39_114 = arith.constant 39 : index
    %1103 = memref.load %arg2[%c39_114] : memref<72xf32, #tpu.memory_space<smem>>
    %1104 = vector.broadcast %1103 : f32 to vector<2x6x128xf32>
    %1105 = arith.mulf %1102, %1104 : vector<2x6x128xf32>
    %1106 = arith.addf %1101, %1105 : vector<2x6x128xf32>
    %1107 = vector.extract_strided_slice %1 {offsets = [5, 0, 0], sizes = [2, 6, 128], strides = [1, 1, 1]} : vector<8x6x128xf32> to vector<2x6x128xf32>
    %c40_115 = arith.constant 40 : index
    %1108 = memref.load %arg2[%c40_115] : memref<72xf32, #tpu.memory_space<smem>>
    %1109 = vector.broadcast %1108 : f32 to vector<2x6x128xf32>
    %1110 = arith.mulf %1107, %1109 : vector<2x6x128xf32>
    %1111 = arith.addf %1106, %1110 : vector<2x6x128xf32>
    %1112 = vector.extract_strided_slice %2 {offsets = [5, 0, 0], sizes = [2, 6, 128], strides = [1, 1, 1]} : vector<8x6x128xf32> to vector<2x6x128xf32>
    %c41_116 = arith.constant 41 : index
    %1113 = memref.load %arg2[%c41_116] : memref<72xf32, #tpu.memory_space<smem>>
    %1114 = vector.broadcast %1113 : f32 to vector<2x6x128xf32>
    %1115 = arith.mulf %1112, %1114 : vector<2x6x128xf32>
    %1116 = arith.addf %1111, %1115 : vector<2x6x128xf32>
    %1117 = vector.extract_strided_slice %0 {offsets = [6, 0, 0], sizes = [2, 6, 128], strides = [1, 1, 1]} : vector<8x6x128xf32> to vector<2x6x128xf32>
    %c42_117 = arith.constant 42 : index
    %1118 = memref.load %arg2[%c42_117] : memref<72xf32, #tpu.memory_space<smem>>
    %1119 = vector.broadcast %1118 : f32 to vector<2x6x128xf32>
    %1120 = arith.mulf %1117, %1119 : vector<2x6x128xf32>
    %1121 = arith.addf %1116, %1120 : vector<2x6x128xf32>
    %1122 = vector.extract_strided_slice %1 {offsets = [6, 0, 0], sizes = [2, 6, 128], strides = [1, 1, 1]} : vector<8x6x128xf32> to vector<2x6x128xf32>
    %c43_118 = arith.constant 43 : index
    %1123 = memref.load %arg2[%c43_118] : memref<72xf32, #tpu.memory_space<smem>>
    %1124 = vector.broadcast %1123 : f32 to vector<2x6x128xf32>
    %1125 = arith.mulf %1122, %1124 : vector<2x6x128xf32>
    %1126 = arith.addf %1121, %1125 : vector<2x6x128xf32>
    %1127 = vector.extract_strided_slice %2 {offsets = [6, 0, 0], sizes = [2, 6, 128], strides = [1, 1, 1]} : vector<8x6x128xf32> to vector<2x6x128xf32>
    %c44_119 = arith.constant 44 : index
    %1128 = memref.load %arg2[%c44_119] : memref<72xf32, #tpu.memory_space<smem>>
    %1129 = vector.broadcast %1128 : f32 to vector<2x6x128xf32>
    %1130 = arith.mulf %1127, %1129 : vector<2x6x128xf32>
    %1131 = arith.addf %1126, %1130 : vector<2x6x128xf32>
    %1132 = vector.extract_strided_slice %1131 {offsets = [0, 0, 0], sizes = [1, 6, 128], strides = [1, 1, 1]} : vector<2x6x128xf32> to vector<1x6x128xf32>
    %1133 = vector.shape_cast %1132 : vector<1x6x128xf32> to vector<6x128xf32>
    %1134 = vector.extract_strided_slice %1131 {offsets = [1, 0, 0], sizes = [1, 6, 128], strides = [1, 1, 1]} : vector<2x6x128xf32> to vector<1x6x128xf32>
    %1135 = vector.shape_cast %1134 : vector<1x6x128xf32> to vector<6x128xf32>
    %1136 = arith.maximumf %1133, %1135 : vector<6x128xf32>
    %1137 = vector.broadcast %933 : f32 to vector<6x128xf32>
    %1138 = arith.addf %1136, %1137 : vector<6x128xf32>
    %cst_120 = arith.constant 0.000000e+00 : f32
    %1139 = vector.broadcast %cst_120 : f32 to vector<6x128xf32>
    %1140 = arith.maximumf %1138, %1139 : vector<6x128xf32>
    %1141 = vector.extract_strided_slice %1140 {offsets = [0, 0], sizes = [1, 128], strides = [1, 1]} : vector<6x128xf32> to vector<1x128xf32>
    %1142 = vector.extract_strided_slice %1140 {offsets = [1, 0], sizes = [1, 128], strides = [1, 1]} : vector<6x128xf32> to vector<1x128xf32>
    %1143 = arith.maximumf %1141, %1142 : vector<1x128xf32>
    %1144 = vector.extract_strided_slice %3 {offsets = [0, 42], sizes = [4, 1], strides = [1, 1]} : vector<4x72xf32> to vector<4x1xf32>
    %1145 = vector.broadcast %1143 : vector<1x128xf32> to vector<4x128xf32>
    %1146 = vector.broadcast %1144 : vector<4x1xf32> to vector<4x128xf32>
    %1147 = arith.mulf %1145, %1146 : vector<4x128xf32>
    %1148 = arith.addf %1087, %1147 : vector<4x128xf32>
    %1149 = vector.extract_strided_slice %1140 {offsets = [2, 0], sizes = [1, 128], strides = [1, 1]} : vector<6x128xf32> to vector<1x128xf32>
    %1150 = vector.extract_strided_slice %1140 {offsets = [3, 0], sizes = [1, 128], strides = [1, 1]} : vector<6x128xf32> to vector<1x128xf32>
    %1151 = arith.maximumf %1149, %1150 : vector<1x128xf32>
    %1152 = vector.extract_strided_slice %3 {offsets = [0, 43], sizes = [4, 1], strides = [1, 1]} : vector<4x72xf32> to vector<4x1xf32>
    %1153 = vector.broadcast %1151 : vector<1x128xf32> to vector<4x128xf32>
    %1154 = vector.broadcast %1152 : vector<4x1xf32> to vector<4x128xf32>
    %1155 = arith.mulf %1153, %1154 : vector<4x128xf32>
    %1156 = arith.addf %1148, %1155 : vector<4x128xf32>
    %1157 = vector.extract_strided_slice %1140 {offsets = [4, 0], sizes = [1, 128], strides = [1, 1]} : vector<6x128xf32> to vector<1x128xf32>
    %1158 = vector.extract_strided_slice %1140 {offsets = [5, 0], sizes = [1, 128], strides = [1, 1]} : vector<6x128xf32> to vector<1x128xf32>
    %1159 = arith.maximumf %1157, %1158 : vector<1x128xf32>
    %1160 = vector.extract_strided_slice %3 {offsets = [0, 44], sizes = [4, 1], strides = [1, 1]} : vector<4x72xf32> to vector<4x1xf32>
    %1161 = vector.broadcast %1159 : vector<1x128xf32> to vector<4x128xf32>
    %1162 = vector.broadcast %1160 : vector<4x1xf32> to vector<4x128xf32>
    %1163 = arith.mulf %1161, %1162 : vector<4x128xf32>
    %1164 = arith.addf %1156, %1163 : vector<4x128xf32>
    %c5_121 = arith.constant 5 : index
    %1165 = memref.load %arg3[%c5_121] : memref<8xf32, #tpu.memory_space<smem>>
    %1166 = vector.extract_strided_slice %0 {offsets = [0, 0, 0], sizes = [2, 6, 128], strides = [1, 1, 1]} : vector<8x6x128xf32> to vector<2x6x128xf32>
    %c45 = arith.constant 45 : index
    %1167 = memref.load %arg2[%c45] : memref<72xf32, #tpu.memory_space<smem>>
    %1168 = vector.broadcast %1167 : f32 to vector<2x6x128xf32>
    %1169 = arith.mulf %1166, %1168 : vector<2x6x128xf32>
    %1170 = vector.extract_strided_slice %1 {offsets = [0, 0, 0], sizes = [2, 6, 128], strides = [1, 1, 1]} : vector<8x6x128xf32> to vector<2x6x128xf32>
    %c46 = arith.constant 46 : index
    %1171 = memref.load %arg2[%c46] : memref<72xf32, #tpu.memory_space<smem>>
    %1172 = vector.broadcast %1171 : f32 to vector<2x6x128xf32>
    %1173 = arith.mulf %1170, %1172 : vector<2x6x128xf32>
    %1174 = arith.addf %1169, %1173 : vector<2x6x128xf32>
    %1175 = vector.extract_strided_slice %2 {offsets = [0, 0, 0], sizes = [2, 6, 128], strides = [1, 1, 1]} : vector<8x6x128xf32> to vector<2x6x128xf32>
    %c47 = arith.constant 47 : index
    %1176 = memref.load %arg2[%c47] : memref<72xf32, #tpu.memory_space<smem>>
    %1177 = vector.broadcast %1176 : f32 to vector<2x6x128xf32>
    %1178 = arith.mulf %1175, %1177 : vector<2x6x128xf32>
    %1179 = arith.addf %1174, %1178 : vector<2x6x128xf32>
    %1180 = vector.extract_strided_slice %0 {offsets = [1, 0, 0], sizes = [2, 6, 128], strides = [1, 1, 1]} : vector<8x6x128xf32> to vector<2x6x128xf32>
    %c48 = arith.constant 48 : index
    %1181 = memref.load %arg2[%c48] : memref<72xf32, #tpu.memory_space<smem>>
    %1182 = vector.broadcast %1181 : f32 to vector<2x6x128xf32>
    %1183 = arith.mulf %1180, %1182 : vector<2x6x128xf32>
    %1184 = arith.addf %1179, %1183 : vector<2x6x128xf32>
    %1185 = vector.extract_strided_slice %1 {offsets = [1, 0, 0], sizes = [2, 6, 128], strides = [1, 1, 1]} : vector<8x6x128xf32> to vector<2x6x128xf32>
    %c49 = arith.constant 49 : index
    %1186 = memref.load %arg2[%c49] : memref<72xf32, #tpu.memory_space<smem>>
    %1187 = vector.broadcast %1186 : f32 to vector<2x6x128xf32>
    %1188 = arith.mulf %1185, %1187 : vector<2x6x128xf32>
    %1189 = arith.addf %1184, %1188 : vector<2x6x128xf32>
    %1190 = vector.extract_strided_slice %2 {offsets = [1, 0, 0], sizes = [2, 6, 128], strides = [1, 1, 1]} : vector<8x6x128xf32> to vector<2x6x128xf32>
    %c50 = arith.constant 50 : index
    %1191 = memref.load %arg2[%c50] : memref<72xf32, #tpu.memory_space<smem>>
    %1192 = vector.broadcast %1191 : f32 to vector<2x6x128xf32>
    %1193 = arith.mulf %1190, %1192 : vector<2x6x128xf32>
    %1194 = arith.addf %1189, %1193 : vector<2x6x128xf32>
    %1195 = vector.extract_strided_slice %0 {offsets = [2, 0, 0], sizes = [2, 6, 128], strides = [1, 1, 1]} : vector<8x6x128xf32> to vector<2x6x128xf32>
    %c51 = arith.constant 51 : index
    %1196 = memref.load %arg2[%c51] : memref<72xf32, #tpu.memory_space<smem>>
    %1197 = vector.broadcast %1196 : f32 to vector<2x6x128xf32>
    %1198 = arith.mulf %1195, %1197 : vector<2x6x128xf32>
    %1199 = arith.addf %1194, %1198 : vector<2x6x128xf32>
    %1200 = vector.extract_strided_slice %1 {offsets = [2, 0, 0], sizes = [2, 6, 128], strides = [1, 1, 1]} : vector<8x6x128xf32> to vector<2x6x128xf32>
    %c52 = arith.constant 52 : index
    %1201 = memref.load %arg2[%c52] : memref<72xf32, #tpu.memory_space<smem>>
    %1202 = vector.broadcast %1201 : f32 to vector<2x6x128xf32>
    %1203 = arith.mulf %1200, %1202 : vector<2x6x128xf32>
    %1204 = arith.addf %1199, %1203 : vector<2x6x128xf32>
    %1205 = vector.extract_strided_slice %2 {offsets = [2, 0, 0], sizes = [2, 6, 128], strides = [1, 1, 1]} : vector<8x6x128xf32> to vector<2x6x128xf32>
    %c53 = arith.constant 53 : index
    %1206 = memref.load %arg2[%c53] : memref<72xf32, #tpu.memory_space<smem>>
    %1207 = vector.broadcast %1206 : f32 to vector<2x6x128xf32>
    %1208 = arith.mulf %1205, %1207 : vector<2x6x128xf32>
    %1209 = arith.addf %1204, %1208 : vector<2x6x128xf32>
    %1210 = vector.extract_strided_slice %1209 {offsets = [0, 0, 0], sizes = [1, 6, 128], strides = [1, 1, 1]} : vector<2x6x128xf32> to vector<1x6x128xf32>
    %1211 = vector.shape_cast %1210 : vector<1x6x128xf32> to vector<6x128xf32>
    %1212 = vector.extract_strided_slice %1209 {offsets = [1, 0, 0], sizes = [1, 6, 128], strides = [1, 1, 1]} : vector<2x6x128xf32> to vector<1x6x128xf32>
    %1213 = vector.shape_cast %1212 : vector<1x6x128xf32> to vector<6x128xf32>
    %1214 = arith.maximumf %1211, %1213 : vector<6x128xf32>
    %1215 = vector.broadcast %1165 : f32 to vector<6x128xf32>
    %1216 = arith.addf %1214, %1215 : vector<6x128xf32>
    %cst_122 = arith.constant 0.000000e+00 : f32
    %1217 = vector.broadcast %cst_122 : f32 to vector<6x128xf32>
    %1218 = arith.maximumf %1216, %1217 : vector<6x128xf32>
    %1219 = vector.extract_strided_slice %1218 {offsets = [0, 0], sizes = [1, 128], strides = [1, 1]} : vector<6x128xf32> to vector<1x128xf32>
    %1220 = vector.extract_strided_slice %1218 {offsets = [1, 0], sizes = [1, 128], strides = [1, 1]} : vector<6x128xf32> to vector<1x128xf32>
    %1221 = arith.maximumf %1219, %1220 : vector<1x128xf32>
    %1222 = vector.extract_strided_slice %3 {offsets = [0, 45], sizes = [4, 1], strides = [1, 1]} : vector<4x72xf32> to vector<4x1xf32>
    %1223 = vector.broadcast %1221 : vector<1x128xf32> to vector<4x128xf32>
    %1224 = vector.broadcast %1222 : vector<4x1xf32> to vector<4x128xf32>
    %1225 = arith.mulf %1223, %1224 : vector<4x128xf32>
    %1226 = arith.addf %1164, %1225 : vector<4x128xf32>
    %1227 = vector.extract_strided_slice %1218 {offsets = [2, 0], sizes = [1, 128], strides = [1, 1]} : vector<6x128xf32> to vector<1x128xf32>
    %1228 = vector.extract_strided_slice %1218 {offsets = [3, 0], sizes = [1, 128], strides = [1, 1]} : vector<6x128xf32> to vector<1x128xf32>
    %1229 = arith.maximumf %1227, %1228 : vector<1x128xf32>
    %1230 = vector.extract_strided_slice %3 {offsets = [0, 46], sizes = [4, 1], strides = [1, 1]} : vector<4x72xf32> to vector<4x1xf32>
    %1231 = vector.broadcast %1229 : vector<1x128xf32> to vector<4x128xf32>
    %1232 = vector.broadcast %1230 : vector<4x1xf32> to vector<4x128xf32>
    %1233 = arith.mulf %1231, %1232 : vector<4x128xf32>
    %1234 = arith.addf %1226, %1233 : vector<4x128xf32>
    %1235 = vector.extract_strided_slice %1218 {offsets = [4, 0], sizes = [1, 128], strides = [1, 1]} : vector<6x128xf32> to vector<1x128xf32>
    %1236 = vector.extract_strided_slice %1218 {offsets = [5, 0], sizes = [1, 128], strides = [1, 1]} : vector<6x128xf32> to vector<1x128xf32>
    %1237 = arith.maximumf %1235, %1236 : vector<1x128xf32>
    %1238 = vector.extract_strided_slice %3 {offsets = [0, 47], sizes = [4, 1], strides = [1, 1]} : vector<4x72xf32> to vector<4x1xf32>
    %1239 = vector.broadcast %1237 : vector<1x128xf32> to vector<4x128xf32>
    %1240 = vector.broadcast %1238 : vector<4x1xf32> to vector<4x128xf32>
    %1241 = arith.mulf %1239, %1240 : vector<4x128xf32>
    %1242 = arith.addf %1234, %1241 : vector<4x128xf32>
    %1243 = vector.extract_strided_slice %0 {offsets = [2, 0, 0], sizes = [2, 6, 128], strides = [1, 1, 1]} : vector<8x6x128xf32> to vector<2x6x128xf32>
    %c45_123 = arith.constant 45 : index
    %1244 = memref.load %arg2[%c45_123] : memref<72xf32, #tpu.memory_space<smem>>
    %1245 = vector.broadcast %1244 : f32 to vector<2x6x128xf32>
    %1246 = arith.mulf %1243, %1245 : vector<2x6x128xf32>
    %1247 = vector.extract_strided_slice %1 {offsets = [2, 0, 0], sizes = [2, 6, 128], strides = [1, 1, 1]} : vector<8x6x128xf32> to vector<2x6x128xf32>
    %c46_124 = arith.constant 46 : index
    %1248 = memref.load %arg2[%c46_124] : memref<72xf32, #tpu.memory_space<smem>>
    %1249 = vector.broadcast %1248 : f32 to vector<2x6x128xf32>
    %1250 = arith.mulf %1247, %1249 : vector<2x6x128xf32>
    %1251 = arith.addf %1246, %1250 : vector<2x6x128xf32>
    %1252 = vector.extract_strided_slice %2 {offsets = [2, 0, 0], sizes = [2, 6, 128], strides = [1, 1, 1]} : vector<8x6x128xf32> to vector<2x6x128xf32>
    %c47_125 = arith.constant 47 : index
    %1253 = memref.load %arg2[%c47_125] : memref<72xf32, #tpu.memory_space<smem>>
    %1254 = vector.broadcast %1253 : f32 to vector<2x6x128xf32>
    %1255 = arith.mulf %1252, %1254 : vector<2x6x128xf32>
    %1256 = arith.addf %1251, %1255 : vector<2x6x128xf32>
    %1257 = vector.extract_strided_slice %0 {offsets = [3, 0, 0], sizes = [2, 6, 128], strides = [1, 1, 1]} : vector<8x6x128xf32> to vector<2x6x128xf32>
    %c48_126 = arith.constant 48 : index
    %1258 = memref.load %arg2[%c48_126] : memref<72xf32, #tpu.memory_space<smem>>
    %1259 = vector.broadcast %1258 : f32 to vector<2x6x128xf32>
    %1260 = arith.mulf %1257, %1259 : vector<2x6x128xf32>
    %1261 = arith.addf %1256, %1260 : vector<2x6x128xf32>
    %1262 = vector.extract_strided_slice %1 {offsets = [3, 0, 0], sizes = [2, 6, 128], strides = [1, 1, 1]} : vector<8x6x128xf32> to vector<2x6x128xf32>
    %c49_127 = arith.constant 49 : index
    %1263 = memref.load %arg2[%c49_127] : memref<72xf32, #tpu.memory_space<smem>>
    %1264 = vector.broadcast %1263 : f32 to vector<2x6x128xf32>
    %1265 = arith.mulf %1262, %1264 : vector<2x6x128xf32>
    %1266 = arith.addf %1261, %1265 : vector<2x6x128xf32>
    %1267 = vector.extract_strided_slice %2 {offsets = [3, 0, 0], sizes = [2, 6, 128], strides = [1, 1, 1]} : vector<8x6x128xf32> to vector<2x6x128xf32>
    %c50_128 = arith.constant 50 : index
    %1268 = memref.load %arg2[%c50_128] : memref<72xf32, #tpu.memory_space<smem>>
    %1269 = vector.broadcast %1268 : f32 to vector<2x6x128xf32>
    %1270 = arith.mulf %1267, %1269 : vector<2x6x128xf32>
    %1271 = arith.addf %1266, %1270 : vector<2x6x128xf32>
    %1272 = vector.extract_strided_slice %0 {offsets = [4, 0, 0], sizes = [2, 6, 128], strides = [1, 1, 1]} : vector<8x6x128xf32> to vector<2x6x128xf32>
    %c51_129 = arith.constant 51 : index
    %1273 = memref.load %arg2[%c51_129] : memref<72xf32, #tpu.memory_space<smem>>
    %1274 = vector.broadcast %1273 : f32 to vector<2x6x128xf32>
    %1275 = arith.mulf %1272, %1274 : vector<2x6x128xf32>
    %1276 = arith.addf %1271, %1275 : vector<2x6x128xf32>
    %1277 = vector.extract_strided_slice %1 {offsets = [4, 0, 0], sizes = [2, 6, 128], strides = [1, 1, 1]} : vector<8x6x128xf32> to vector<2x6x128xf32>
    %c52_130 = arith.constant 52 : index
    %1278 = memref.load %arg2[%c52_130] : memref<72xf32, #tpu.memory_space<smem>>
    %1279 = vector.broadcast %1278 : f32 to vector<2x6x128xf32>
    %1280 = arith.mulf %1277, %1279 : vector<2x6x128xf32>
    %1281 = arith.addf %1276, %1280 : vector<2x6x128xf32>
    %1282 = vector.extract_strided_slice %2 {offsets = [4, 0, 0], sizes = [2, 6, 128], strides = [1, 1, 1]} : vector<8x6x128xf32> to vector<2x6x128xf32>
    %c53_131 = arith.constant 53 : index
    %1283 = memref.load %arg2[%c53_131] : memref<72xf32, #tpu.memory_space<smem>>
    %1284 = vector.broadcast %1283 : f32 to vector<2x6x128xf32>
    %1285 = arith.mulf %1282, %1284 : vector<2x6x128xf32>
    %1286 = arith.addf %1281, %1285 : vector<2x6x128xf32>
    %1287 = vector.extract_strided_slice %1286 {offsets = [0, 0, 0], sizes = [1, 6, 128], strides = [1, 1, 1]} : vector<2x6x128xf32> to vector<1x6x128xf32>
    %1288 = vector.shape_cast %1287 : vector<1x6x128xf32> to vector<6x128xf32>
    %1289 = vector.extract_strided_slice %1286 {offsets = [1, 0, 0], sizes = [1, 6, 128], strides = [1, 1, 1]} : vector<2x6x128xf32> to vector<1x6x128xf32>
    %1290 = vector.shape_cast %1289 : vector<1x6x128xf32> to vector<6x128xf32>
    %1291 = arith.maximumf %1288, %1290 : vector<6x128xf32>
    %1292 = vector.broadcast %1165 : f32 to vector<6x128xf32>
    %1293 = arith.addf %1291, %1292 : vector<6x128xf32>
    %cst_132 = arith.constant 0.000000e+00 : f32
    %1294 = vector.broadcast %cst_132 : f32 to vector<6x128xf32>
    %1295 = arith.maximumf %1293, %1294 : vector<6x128xf32>
    %1296 = vector.extract_strided_slice %1295 {offsets = [0, 0], sizes = [1, 128], strides = [1, 1]} : vector<6x128xf32> to vector<1x128xf32>
    %1297 = vector.extract_strided_slice %1295 {offsets = [1, 0], sizes = [1, 128], strides = [1, 1]} : vector<6x128xf32> to vector<1x128xf32>
    %1298 = arith.maximumf %1296, %1297 : vector<1x128xf32>
    %1299 = vector.extract_strided_slice %3 {offsets = [0, 48], sizes = [4, 1], strides = [1, 1]} : vector<4x72xf32> to vector<4x1xf32>
    %1300 = vector.broadcast %1298 : vector<1x128xf32> to vector<4x128xf32>
    %1301 = vector.broadcast %1299 : vector<4x1xf32> to vector<4x128xf32>
    %1302 = arith.mulf %1300, %1301 : vector<4x128xf32>
    %1303 = arith.addf %1242, %1302 : vector<4x128xf32>
    %1304 = vector.extract_strided_slice %1295 {offsets = [2, 0], sizes = [1, 128], strides = [1, 1]} : vector<6x128xf32> to vector<1x128xf32>
    %1305 = vector.extract_strided_slice %1295 {offsets = [3, 0], sizes = [1, 128], strides = [1, 1]} : vector<6x128xf32> to vector<1x128xf32>
    %1306 = arith.maximumf %1304, %1305 : vector<1x128xf32>
    %1307 = vector.extract_strided_slice %3 {offsets = [0, 49], sizes = [4, 1], strides = [1, 1]} : vector<4x72xf32> to vector<4x1xf32>
    %1308 = vector.broadcast %1306 : vector<1x128xf32> to vector<4x128xf32>
    %1309 = vector.broadcast %1307 : vector<4x1xf32> to vector<4x128xf32>
    %1310 = arith.mulf %1308, %1309 : vector<4x128xf32>
    %1311 = arith.addf %1303, %1310 : vector<4x128xf32>
    %1312 = vector.extract_strided_slice %1295 {offsets = [4, 0], sizes = [1, 128], strides = [1, 1]} : vector<6x128xf32> to vector<1x128xf32>
    %1313 = vector.extract_strided_slice %1295 {offsets = [5, 0], sizes = [1, 128], strides = [1, 1]} : vector<6x128xf32> to vector<1x128xf32>
    %1314 = arith.maximumf %1312, %1313 : vector<1x128xf32>
    %1315 = vector.extract_strided_slice %3 {offsets = [0, 50], sizes = [4, 1], strides = [1, 1]} : vector<4x72xf32> to vector<4x1xf32>
    %1316 = vector.broadcast %1314 : vector<1x128xf32> to vector<4x128xf32>
    %1317 = vector.broadcast %1315 : vector<4x1xf32> to vector<4x128xf32>
    %1318 = arith.mulf %1316, %1317 : vector<4x128xf32>
    %1319 = arith.addf %1311, %1318 : vector<4x128xf32>
    %1320 = vector.extract_strided_slice %0 {offsets = [4, 0, 0], sizes = [2, 6, 128], strides = [1, 1, 1]} : vector<8x6x128xf32> to vector<2x6x128xf32>
    %c45_133 = arith.constant 45 : index
    %1321 = memref.load %arg2[%c45_133] : memref<72xf32, #tpu.memory_space<smem>>
    %1322 = vector.broadcast %1321 : f32 to vector<2x6x128xf32>
    %1323 = arith.mulf %1320, %1322 : vector<2x6x128xf32>
    %1324 = vector.extract_strided_slice %1 {offsets = [4, 0, 0], sizes = [2, 6, 128], strides = [1, 1, 1]} : vector<8x6x128xf32> to vector<2x6x128xf32>
    %c46_134 = arith.constant 46 : index
    %1325 = memref.load %arg2[%c46_134] : memref<72xf32, #tpu.memory_space<smem>>
    %1326 = vector.broadcast %1325 : f32 to vector<2x6x128xf32>
    %1327 = arith.mulf %1324, %1326 : vector<2x6x128xf32>
    %1328 = arith.addf %1323, %1327 : vector<2x6x128xf32>
    %1329 = vector.extract_strided_slice %2 {offsets = [4, 0, 0], sizes = [2, 6, 128], strides = [1, 1, 1]} : vector<8x6x128xf32> to vector<2x6x128xf32>
    %c47_135 = arith.constant 47 : index
    %1330 = memref.load %arg2[%c47_135] : memref<72xf32, #tpu.memory_space<smem>>
    %1331 = vector.broadcast %1330 : f32 to vector<2x6x128xf32>
    %1332 = arith.mulf %1329, %1331 : vector<2x6x128xf32>
    %1333 = arith.addf %1328, %1332 : vector<2x6x128xf32>
    %1334 = vector.extract_strided_slice %0 {offsets = [5, 0, 0], sizes = [2, 6, 128], strides = [1, 1, 1]} : vector<8x6x128xf32> to vector<2x6x128xf32>
    %c48_136 = arith.constant 48 : index
    %1335 = memref.load %arg2[%c48_136] : memref<72xf32, #tpu.memory_space<smem>>
    %1336 = vector.broadcast %1335 : f32 to vector<2x6x128xf32>
    %1337 = arith.mulf %1334, %1336 : vector<2x6x128xf32>
    %1338 = arith.addf %1333, %1337 : vector<2x6x128xf32>
    %1339 = vector.extract_strided_slice %1 {offsets = [5, 0, 0], sizes = [2, 6, 128], strides = [1, 1, 1]} : vector<8x6x128xf32> to vector<2x6x128xf32>
    %c49_137 = arith.constant 49 : index
    %1340 = memref.load %arg2[%c49_137] : memref<72xf32, #tpu.memory_space<smem>>
    %1341 = vector.broadcast %1340 : f32 to vector<2x6x128xf32>
    %1342 = arith.mulf %1339, %1341 : vector<2x6x128xf32>
    %1343 = arith.addf %1338, %1342 : vector<2x6x128xf32>
    %1344 = vector.extract_strided_slice %2 {offsets = [5, 0, 0], sizes = [2, 6, 128], strides = [1, 1, 1]} : vector<8x6x128xf32> to vector<2x6x128xf32>
    %c50_138 = arith.constant 50 : index
    %1345 = memref.load %arg2[%c50_138] : memref<72xf32, #tpu.memory_space<smem>>
    %1346 = vector.broadcast %1345 : f32 to vector<2x6x128xf32>
    %1347 = arith.mulf %1344, %1346 : vector<2x6x128xf32>
    %1348 = arith.addf %1343, %1347 : vector<2x6x128xf32>
    %1349 = vector.extract_strided_slice %0 {offsets = [6, 0, 0], sizes = [2, 6, 128], strides = [1, 1, 1]} : vector<8x6x128xf32> to vector<2x6x128xf32>
    %c51_139 = arith.constant 51 : index
    %1350 = memref.load %arg2[%c51_139] : memref<72xf32, #tpu.memory_space<smem>>
    %1351 = vector.broadcast %1350 : f32 to vector<2x6x128xf32>
    %1352 = arith.mulf %1349, %1351 : vector<2x6x128xf32>
    %1353 = arith.addf %1348, %1352 : vector<2x6x128xf32>
    %1354 = vector.extract_strided_slice %1 {offsets = [6, 0, 0], sizes = [2, 6, 128], strides = [1, 1, 1]} : vector<8x6x128xf32> to vector<2x6x128xf32>
    %c52_140 = arith.constant 52 : index
    %1355 = memref.load %arg2[%c52_140] : memref<72xf32, #tpu.memory_space<smem>>
    %1356 = vector.broadcast %1355 : f32 to vector<2x6x128xf32>
    %1357 = arith.mulf %1354, %1356 : vector<2x6x128xf32>
    %1358 = arith.addf %1353, %1357 : vector<2x6x128xf32>
    %1359 = vector.extract_strided_slice %2 {offsets = [6, 0, 0], sizes = [2, 6, 128], strides = [1, 1, 1]} : vector<8x6x128xf32> to vector<2x6x128xf32>
    %c53_141 = arith.constant 53 : index
    %1360 = memref.load %arg2[%c53_141] : memref<72xf32, #tpu.memory_space<smem>>
    %1361 = vector.broadcast %1360 : f32 to vector<2x6x128xf32>
    %1362 = arith.mulf %1359, %1361 : vector<2x6x128xf32>
    %1363 = arith.addf %1358, %1362 : vector<2x6x128xf32>
    %1364 = vector.extract_strided_slice %1363 {offsets = [0, 0, 0], sizes = [1, 6, 128], strides = [1, 1, 1]} : vector<2x6x128xf32> to vector<1x6x128xf32>
    %1365 = vector.shape_cast %1364 : vector<1x6x128xf32> to vector<6x128xf32>
    %1366 = vector.extract_strided_slice %1363 {offsets = [1, 0, 0], sizes = [1, 6, 128], strides = [1, 1, 1]} : vector<2x6x128xf32> to vector<1x6x128xf32>
    %1367 = vector.shape_cast %1366 : vector<1x6x128xf32> to vector<6x128xf32>
    %1368 = arith.maximumf %1365, %1367 : vector<6x128xf32>
    %1369 = vector.broadcast %1165 : f32 to vector<6x128xf32>
    %1370 = arith.addf %1368, %1369 : vector<6x128xf32>
    %cst_142 = arith.constant 0.000000e+00 : f32
    %1371 = vector.broadcast %cst_142 : f32 to vector<6x128xf32>
    %1372 = arith.maximumf %1370, %1371 : vector<6x128xf32>
    %1373 = vector.extract_strided_slice %1372 {offsets = [0, 0], sizes = [1, 128], strides = [1, 1]} : vector<6x128xf32> to vector<1x128xf32>
    %1374 = vector.extract_strided_slice %1372 {offsets = [1, 0], sizes = [1, 128], strides = [1, 1]} : vector<6x128xf32> to vector<1x128xf32>
    %1375 = arith.maximumf %1373, %1374 : vector<1x128xf32>
    %1376 = vector.extract_strided_slice %3 {offsets = [0, 51], sizes = [4, 1], strides = [1, 1]} : vector<4x72xf32> to vector<4x1xf32>
    %1377 = vector.broadcast %1375 : vector<1x128xf32> to vector<4x128xf32>
    %1378 = vector.broadcast %1376 : vector<4x1xf32> to vector<4x128xf32>
    %1379 = arith.mulf %1377, %1378 : vector<4x128xf32>
    %1380 = arith.addf %1319, %1379 : vector<4x128xf32>
    %1381 = vector.extract_strided_slice %1372 {offsets = [2, 0], sizes = [1, 128], strides = [1, 1]} : vector<6x128xf32> to vector<1x128xf32>
    %1382 = vector.extract_strided_slice %1372 {offsets = [3, 0], sizes = [1, 128], strides = [1, 1]} : vector<6x128xf32> to vector<1x128xf32>
    %1383 = arith.maximumf %1381, %1382 : vector<1x128xf32>
    %1384 = vector.extract_strided_slice %3 {offsets = [0, 52], sizes = [4, 1], strides = [1, 1]} : vector<4x72xf32> to vector<4x1xf32>
    %1385 = vector.broadcast %1383 : vector<1x128xf32> to vector<4x128xf32>
    %1386 = vector.broadcast %1384 : vector<4x1xf32> to vector<4x128xf32>
    %1387 = arith.mulf %1385, %1386 : vector<4x128xf32>
    %1388 = arith.addf %1380, %1387 : vector<4x128xf32>
    %1389 = vector.extract_strided_slice %1372 {offsets = [4, 0], sizes = [1, 128], strides = [1, 1]} : vector<6x128xf32> to vector<1x128xf32>
    %1390 = vector.extract_strided_slice %1372 {offsets = [5, 0], sizes = [1, 128], strides = [1, 1]} : vector<6x128xf32> to vector<1x128xf32>
    %1391 = arith.maximumf %1389, %1390 : vector<1x128xf32>
    %1392 = vector.extract_strided_slice %3 {offsets = [0, 53], sizes = [4, 1], strides = [1, 1]} : vector<4x72xf32> to vector<4x1xf32>
    %1393 = vector.broadcast %1391 : vector<1x128xf32> to vector<4x128xf32>
    %1394 = vector.broadcast %1392 : vector<4x1xf32> to vector<4x128xf32>
    %1395 = arith.mulf %1393, %1394 : vector<4x128xf32>
    %1396 = arith.addf %1388, %1395 : vector<4x128xf32>
    %c6_143 = arith.constant 6 : index
    %1397 = memref.load %arg3[%c6_143] : memref<8xf32, #tpu.memory_space<smem>>
    %1398 = vector.extract_strided_slice %0 {offsets = [0, 0, 0], sizes = [2, 6, 128], strides = [1, 1, 1]} : vector<8x6x128xf32> to vector<2x6x128xf32>
    %c54 = arith.constant 54 : index
    %1399 = memref.load %arg2[%c54] : memref<72xf32, #tpu.memory_space<smem>>
    %1400 = vector.broadcast %1399 : f32 to vector<2x6x128xf32>
    %1401 = arith.mulf %1398, %1400 : vector<2x6x128xf32>
    %1402 = vector.extract_strided_slice %1 {offsets = [0, 0, 0], sizes = [2, 6, 128], strides = [1, 1, 1]} : vector<8x6x128xf32> to vector<2x6x128xf32>
    %c55 = arith.constant 55 : index
    %1403 = memref.load %arg2[%c55] : memref<72xf32, #tpu.memory_space<smem>>
    %1404 = vector.broadcast %1403 : f32 to vector<2x6x128xf32>
    %1405 = arith.mulf %1402, %1404 : vector<2x6x128xf32>
    %1406 = arith.addf %1401, %1405 : vector<2x6x128xf32>
    %1407 = vector.extract_strided_slice %2 {offsets = [0, 0, 0], sizes = [2, 6, 128], strides = [1, 1, 1]} : vector<8x6x128xf32> to vector<2x6x128xf32>
    %c56 = arith.constant 56 : index
    %1408 = memref.load %arg2[%c56] : memref<72xf32, #tpu.memory_space<smem>>
    %1409 = vector.broadcast %1408 : f32 to vector<2x6x128xf32>
    %1410 = arith.mulf %1407, %1409 : vector<2x6x128xf32>
    %1411 = arith.addf %1406, %1410 : vector<2x6x128xf32>
    %1412 = vector.extract_strided_slice %0 {offsets = [1, 0, 0], sizes = [2, 6, 128], strides = [1, 1, 1]} : vector<8x6x128xf32> to vector<2x6x128xf32>
    %c57 = arith.constant 57 : index
    %1413 = memref.load %arg2[%c57] : memref<72xf32, #tpu.memory_space<smem>>
    %1414 = vector.broadcast %1413 : f32 to vector<2x6x128xf32>
    %1415 = arith.mulf %1412, %1414 : vector<2x6x128xf32>
    %1416 = arith.addf %1411, %1415 : vector<2x6x128xf32>
    %1417 = vector.extract_strided_slice %1 {offsets = [1, 0, 0], sizes = [2, 6, 128], strides = [1, 1, 1]} : vector<8x6x128xf32> to vector<2x6x128xf32>
    %c58 = arith.constant 58 : index
    %1418 = memref.load %arg2[%c58] : memref<72xf32, #tpu.memory_space<smem>>
    %1419 = vector.broadcast %1418 : f32 to vector<2x6x128xf32>
    %1420 = arith.mulf %1417, %1419 : vector<2x6x128xf32>
    %1421 = arith.addf %1416, %1420 : vector<2x6x128xf32>
    %1422 = vector.extract_strided_slice %2 {offsets = [1, 0, 0], sizes = [2, 6, 128], strides = [1, 1, 1]} : vector<8x6x128xf32> to vector<2x6x128xf32>
    %c59 = arith.constant 59 : index
    %1423 = memref.load %arg2[%c59] : memref<72xf32, #tpu.memory_space<smem>>
    %1424 = vector.broadcast %1423 : f32 to vector<2x6x128xf32>
    %1425 = arith.mulf %1422, %1424 : vector<2x6x128xf32>
    %1426 = arith.addf %1421, %1425 : vector<2x6x128xf32>
    %1427 = vector.extract_strided_slice %0 {offsets = [2, 0, 0], sizes = [2, 6, 128], strides = [1, 1, 1]} : vector<8x6x128xf32> to vector<2x6x128xf32>
    %c60 = arith.constant 60 : index
    %1428 = memref.load %arg2[%c60] : memref<72xf32, #tpu.memory_space<smem>>
    %1429 = vector.broadcast %1428 : f32 to vector<2x6x128xf32>
    %1430 = arith.mulf %1427, %1429 : vector<2x6x128xf32>
    %1431 = arith.addf %1426, %1430 : vector<2x6x128xf32>
    %1432 = vector.extract_strided_slice %1 {offsets = [2, 0, 0], sizes = [2, 6, 128], strides = [1, 1, 1]} : vector<8x6x128xf32> to vector<2x6x128xf32>
    %c61 = arith.constant 61 : index
    %1433 = memref.load %arg2[%c61] : memref<72xf32, #tpu.memory_space<smem>>
    %1434 = vector.broadcast %1433 : f32 to vector<2x6x128xf32>
    %1435 = arith.mulf %1432, %1434 : vector<2x6x128xf32>
    %1436 = arith.addf %1431, %1435 : vector<2x6x128xf32>
    %1437 = vector.extract_strided_slice %2 {offsets = [2, 0, 0], sizes = [2, 6, 128], strides = [1, 1, 1]} : vector<8x6x128xf32> to vector<2x6x128xf32>
    %c62 = arith.constant 62 : index
    %1438 = memref.load %arg2[%c62] : memref<72xf32, #tpu.memory_space<smem>>
    %1439 = vector.broadcast %1438 : f32 to vector<2x6x128xf32>
    %1440 = arith.mulf %1437, %1439 : vector<2x6x128xf32>
    %1441 = arith.addf %1436, %1440 : vector<2x6x128xf32>
    %1442 = vector.extract_strided_slice %1441 {offsets = [0, 0, 0], sizes = [1, 6, 128], strides = [1, 1, 1]} : vector<2x6x128xf32> to vector<1x6x128xf32>
    %1443 = vector.shape_cast %1442 : vector<1x6x128xf32> to vector<6x128xf32>
    %1444 = vector.extract_strided_slice %1441 {offsets = [1, 0, 0], sizes = [1, 6, 128], strides = [1, 1, 1]} : vector<2x6x128xf32> to vector<1x6x128xf32>
    %1445 = vector.shape_cast %1444 : vector<1x6x128xf32> to vector<6x128xf32>
    %1446 = arith.maximumf %1443, %1445 : vector<6x128xf32>
    %1447 = vector.broadcast %1397 : f32 to vector<6x128xf32>
    %1448 = arith.addf %1446, %1447 : vector<6x128xf32>
    %cst_144 = arith.constant 0.000000e+00 : f32
    %1449 = vector.broadcast %cst_144 : f32 to vector<6x128xf32>
    %1450 = arith.maximumf %1448, %1449 : vector<6x128xf32>
    %1451 = vector.extract_strided_slice %1450 {offsets = [0, 0], sizes = [1, 128], strides = [1, 1]} : vector<6x128xf32> to vector<1x128xf32>
    %1452 = vector.extract_strided_slice %1450 {offsets = [1, 0], sizes = [1, 128], strides = [1, 1]} : vector<6x128xf32> to vector<1x128xf32>
    %1453 = arith.maximumf %1451, %1452 : vector<1x128xf32>
    %1454 = vector.extract_strided_slice %3 {offsets = [0, 54], sizes = [4, 1], strides = [1, 1]} : vector<4x72xf32> to vector<4x1xf32>
    %1455 = vector.broadcast %1453 : vector<1x128xf32> to vector<4x128xf32>
    %1456 = vector.broadcast %1454 : vector<4x1xf32> to vector<4x128xf32>
    %1457 = arith.mulf %1455, %1456 : vector<4x128xf32>
    %1458 = arith.addf %1396, %1457 : vector<4x128xf32>
    %1459 = vector.extract_strided_slice %1450 {offsets = [2, 0], sizes = [1, 128], strides = [1, 1]} : vector<6x128xf32> to vector<1x128xf32>
    %1460 = vector.extract_strided_slice %1450 {offsets = [3, 0], sizes = [1, 128], strides = [1, 1]} : vector<6x128xf32> to vector<1x128xf32>
    %1461 = arith.maximumf %1459, %1460 : vector<1x128xf32>
    %1462 = vector.extract_strided_slice %3 {offsets = [0, 55], sizes = [4, 1], strides = [1, 1]} : vector<4x72xf32> to vector<4x1xf32>
    %1463 = vector.broadcast %1461 : vector<1x128xf32> to vector<4x128xf32>
    %1464 = vector.broadcast %1462 : vector<4x1xf32> to vector<4x128xf32>
    %1465 = arith.mulf %1463, %1464 : vector<4x128xf32>
    %1466 = arith.addf %1458, %1465 : vector<4x128xf32>
    %1467 = vector.extract_strided_slice %1450 {offsets = [4, 0], sizes = [1, 128], strides = [1, 1]} : vector<6x128xf32> to vector<1x128xf32>
    %1468 = vector.extract_strided_slice %1450 {offsets = [5, 0], sizes = [1, 128], strides = [1, 1]} : vector<6x128xf32> to vector<1x128xf32>
    %1469 = arith.maximumf %1467, %1468 : vector<1x128xf32>
    %1470 = vector.extract_strided_slice %3 {offsets = [0, 56], sizes = [4, 1], strides = [1, 1]} : vector<4x72xf32> to vector<4x1xf32>
    %1471 = vector.broadcast %1469 : vector<1x128xf32> to vector<4x128xf32>
    %1472 = vector.broadcast %1470 : vector<4x1xf32> to vector<4x128xf32>
    %1473 = arith.mulf %1471, %1472 : vector<4x128xf32>
    %1474 = arith.addf %1466, %1473 : vector<4x128xf32>
    %1475 = vector.extract_strided_slice %0 {offsets = [2, 0, 0], sizes = [2, 6, 128], strides = [1, 1, 1]} : vector<8x6x128xf32> to vector<2x6x128xf32>
    %c54_145 = arith.constant 54 : index
    %1476 = memref.load %arg2[%c54_145] : memref<72xf32, #tpu.memory_space<smem>>
    %1477 = vector.broadcast %1476 : f32 to vector<2x6x128xf32>
    %1478 = arith.mulf %1475, %1477 : vector<2x6x128xf32>
    %1479 = vector.extract_strided_slice %1 {offsets = [2, 0, 0], sizes = [2, 6, 128], strides = [1, 1, 1]} : vector<8x6x128xf32> to vector<2x6x128xf32>
    %c55_146 = arith.constant 55 : index
    %1480 = memref.load %arg2[%c55_146] : memref<72xf32, #tpu.memory_space<smem>>
    %1481 = vector.broadcast %1480 : f32 to vector<2x6x128xf32>
    %1482 = arith.mulf %1479, %1481 : vector<2x6x128xf32>
    %1483 = arith.addf %1478, %1482 : vector<2x6x128xf32>
    %1484 = vector.extract_strided_slice %2 {offsets = [2, 0, 0], sizes = [2, 6, 128], strides = [1, 1, 1]} : vector<8x6x128xf32> to vector<2x6x128xf32>
    %c56_147 = arith.constant 56 : index
    %1485 = memref.load %arg2[%c56_147] : memref<72xf32, #tpu.memory_space<smem>>
    %1486 = vector.broadcast %1485 : f32 to vector<2x6x128xf32>
    %1487 = arith.mulf %1484, %1486 : vector<2x6x128xf32>
    %1488 = arith.addf %1483, %1487 : vector<2x6x128xf32>
    %1489 = vector.extract_strided_slice %0 {offsets = [3, 0, 0], sizes = [2, 6, 128], strides = [1, 1, 1]} : vector<8x6x128xf32> to vector<2x6x128xf32>
    %c57_148 = arith.constant 57 : index
    %1490 = memref.load %arg2[%c57_148] : memref<72xf32, #tpu.memory_space<smem>>
    %1491 = vector.broadcast %1490 : f32 to vector<2x6x128xf32>
    %1492 = arith.mulf %1489, %1491 : vector<2x6x128xf32>
    %1493 = arith.addf %1488, %1492 : vector<2x6x128xf32>
    %1494 = vector.extract_strided_slice %1 {offsets = [3, 0, 0], sizes = [2, 6, 128], strides = [1, 1, 1]} : vector<8x6x128xf32> to vector<2x6x128xf32>
    %c58_149 = arith.constant 58 : index
    %1495 = memref.load %arg2[%c58_149] : memref<72xf32, #tpu.memory_space<smem>>
    %1496 = vector.broadcast %1495 : f32 to vector<2x6x128xf32>
    %1497 = arith.mulf %1494, %1496 : vector<2x6x128xf32>
    %1498 = arith.addf %1493, %1497 : vector<2x6x128xf32>
    %1499 = vector.extract_strided_slice %2 {offsets = [3, 0, 0], sizes = [2, 6, 128], strides = [1, 1, 1]} : vector<8x6x128xf32> to vector<2x6x128xf32>
    %c59_150 = arith.constant 59 : index
    %1500 = memref.load %arg2[%c59_150] : memref<72xf32, #tpu.memory_space<smem>>
    %1501 = vector.broadcast %1500 : f32 to vector<2x6x128xf32>
    %1502 = arith.mulf %1499, %1501 : vector<2x6x128xf32>
    %1503 = arith.addf %1498, %1502 : vector<2x6x128xf32>
    %1504 = vector.extract_strided_slice %0 {offsets = [4, 0, 0], sizes = [2, 6, 128], strides = [1, 1, 1]} : vector<8x6x128xf32> to vector<2x6x128xf32>
    %c60_151 = arith.constant 60 : index
    %1505 = memref.load %arg2[%c60_151] : memref<72xf32, #tpu.memory_space<smem>>
    %1506 = vector.broadcast %1505 : f32 to vector<2x6x128xf32>
    %1507 = arith.mulf %1504, %1506 : vector<2x6x128xf32>
    %1508 = arith.addf %1503, %1507 : vector<2x6x128xf32>
    %1509 = vector.extract_strided_slice %1 {offsets = [4, 0, 0], sizes = [2, 6, 128], strides = [1, 1, 1]} : vector<8x6x128xf32> to vector<2x6x128xf32>
    %c61_152 = arith.constant 61 : index
    %1510 = memref.load %arg2[%c61_152] : memref<72xf32, #tpu.memory_space<smem>>
    %1511 = vector.broadcast %1510 : f32 to vector<2x6x128xf32>
    %1512 = arith.mulf %1509, %1511 : vector<2x6x128xf32>
    %1513 = arith.addf %1508, %1512 : vector<2x6x128xf32>
    %1514 = vector.extract_strided_slice %2 {offsets = [4, 0, 0], sizes = [2, 6, 128], strides = [1, 1, 1]} : vector<8x6x128xf32> to vector<2x6x128xf32>
    %c62_153 = arith.constant 62 : index
    %1515 = memref.load %arg2[%c62_153] : memref<72xf32, #tpu.memory_space<smem>>
    %1516 = vector.broadcast %1515 : f32 to vector<2x6x128xf32>
    %1517 = arith.mulf %1514, %1516 : vector<2x6x128xf32>
    %1518 = arith.addf %1513, %1517 : vector<2x6x128xf32>
    %1519 = vector.extract_strided_slice %1518 {offsets = [0, 0, 0], sizes = [1, 6, 128], strides = [1, 1, 1]} : vector<2x6x128xf32> to vector<1x6x128xf32>
    %1520 = vector.shape_cast %1519 : vector<1x6x128xf32> to vector<6x128xf32>
    %1521 = vector.extract_strided_slice %1518 {offsets = [1, 0, 0], sizes = [1, 6, 128], strides = [1, 1, 1]} : vector<2x6x128xf32> to vector<1x6x128xf32>
    %1522 = vector.shape_cast %1521 : vector<1x6x128xf32> to vector<6x128xf32>
    %1523 = arith.maximumf %1520, %1522 : vector<6x128xf32>
    %1524 = vector.broadcast %1397 : f32 to vector<6x128xf32>
    %1525 = arith.addf %1523, %1524 : vector<6x128xf32>
    %cst_154 = arith.constant 0.000000e+00 : f32
    %1526 = vector.broadcast %cst_154 : f32 to vector<6x128xf32>
    %1527 = arith.maximumf %1525, %1526 : vector<6x128xf32>
    %1528 = vector.extract_strided_slice %1527 {offsets = [0, 0], sizes = [1, 128], strides = [1, 1]} : vector<6x128xf32> to vector<1x128xf32>
    %1529 = vector.extract_strided_slice %1527 {offsets = [1, 0], sizes = [1, 128], strides = [1, 1]} : vector<6x128xf32> to vector<1x128xf32>
    %1530 = arith.maximumf %1528, %1529 : vector<1x128xf32>
    %1531 = vector.extract_strided_slice %3 {offsets = [0, 57], sizes = [4, 1], strides = [1, 1]} : vector<4x72xf32> to vector<4x1xf32>
    %1532 = vector.broadcast %1530 : vector<1x128xf32> to vector<4x128xf32>
    %1533 = vector.broadcast %1531 : vector<4x1xf32> to vector<4x128xf32>
    %1534 = arith.mulf %1532, %1533 : vector<4x128xf32>
    %1535 = arith.addf %1474, %1534 : vector<4x128xf32>
    %1536 = vector.extract_strided_slice %1527 {offsets = [2, 0], sizes = [1, 128], strides = [1, 1]} : vector<6x128xf32> to vector<1x128xf32>
    %1537 = vector.extract_strided_slice %1527 {offsets = [3, 0], sizes = [1, 128], strides = [1, 1]} : vector<6x128xf32> to vector<1x128xf32>
    %1538 = arith.maximumf %1536, %1537 : vector<1x128xf32>
    %1539 = vector.extract_strided_slice %3 {offsets = [0, 58], sizes = [4, 1], strides = [1, 1]} : vector<4x72xf32> to vector<4x1xf32>
    %1540 = vector.broadcast %1538 : vector<1x128xf32> to vector<4x128xf32>
    %1541 = vector.broadcast %1539 : vector<4x1xf32> to vector<4x128xf32>
    %1542 = arith.mulf %1540, %1541 : vector<4x128xf32>
    %1543 = arith.addf %1535, %1542 : vector<4x128xf32>
    %1544 = vector.extract_strided_slice %1527 {offsets = [4, 0], sizes = [1, 128], strides = [1, 1]} : vector<6x128xf32> to vector<1x128xf32>
    %1545 = vector.extract_strided_slice %1527 {offsets = [5, 0], sizes = [1, 128], strides = [1, 1]} : vector<6x128xf32> to vector<1x128xf32>
    %1546 = arith.maximumf %1544, %1545 : vector<1x128xf32>
    %1547 = vector.extract_strided_slice %3 {offsets = [0, 59], sizes = [4, 1], strides = [1, 1]} : vector<4x72xf32> to vector<4x1xf32>
    %1548 = vector.broadcast %1546 : vector<1x128xf32> to vector<4x128xf32>
    %1549 = vector.broadcast %1547 : vector<4x1xf32> to vector<4x128xf32>
    %1550 = arith.mulf %1548, %1549 : vector<4x128xf32>
    %1551 = arith.addf %1543, %1550 : vector<4x128xf32>
    %1552 = vector.extract_strided_slice %0 {offsets = [4, 0, 0], sizes = [2, 6, 128], strides = [1, 1, 1]} : vector<8x6x128xf32> to vector<2x6x128xf32>
    %c54_155 = arith.constant 54 : index
    %1553 = memref.load %arg2[%c54_155] : memref<72xf32, #tpu.memory_space<smem>>
    %1554 = vector.broadcast %1553 : f32 to vector<2x6x128xf32>
    %1555 = arith.mulf %1552, %1554 : vector<2x6x128xf32>
    %1556 = vector.extract_strided_slice %1 {offsets = [4, 0, 0], sizes = [2, 6, 128], strides = [1, 1, 1]} : vector<8x6x128xf32> to vector<2x6x128xf32>
    %c55_156 = arith.constant 55 : index
    %1557 = memref.load %arg2[%c55_156] : memref<72xf32, #tpu.memory_space<smem>>
    %1558 = vector.broadcast %1557 : f32 to vector<2x6x128xf32>
    %1559 = arith.mulf %1556, %1558 : vector<2x6x128xf32>
    %1560 = arith.addf %1555, %1559 : vector<2x6x128xf32>
    %1561 = vector.extract_strided_slice %2 {offsets = [4, 0, 0], sizes = [2, 6, 128], strides = [1, 1, 1]} : vector<8x6x128xf32> to vector<2x6x128xf32>
    %c56_157 = arith.constant 56 : index
    %1562 = memref.load %arg2[%c56_157] : memref<72xf32, #tpu.memory_space<smem>>
    %1563 = vector.broadcast %1562 : f32 to vector<2x6x128xf32>
    %1564 = arith.mulf %1561, %1563 : vector<2x6x128xf32>
    %1565 = arith.addf %1560, %1564 : vector<2x6x128xf32>
    %1566 = vector.extract_strided_slice %0 {offsets = [5, 0, 0], sizes = [2, 6, 128], strides = [1, 1, 1]} : vector<8x6x128xf32> to vector<2x6x128xf32>
    %c57_158 = arith.constant 57 : index
    %1567 = memref.load %arg2[%c57_158] : memref<72xf32, #tpu.memory_space<smem>>
    %1568 = vector.broadcast %1567 : f32 to vector<2x6x128xf32>
    %1569 = arith.mulf %1566, %1568 : vector<2x6x128xf32>
    %1570 = arith.addf %1565, %1569 : vector<2x6x128xf32>
    %1571 = vector.extract_strided_slice %1 {offsets = [5, 0, 0], sizes = [2, 6, 128], strides = [1, 1, 1]} : vector<8x6x128xf32> to vector<2x6x128xf32>
    %c58_159 = arith.constant 58 : index
    %1572 = memref.load %arg2[%c58_159] : memref<72xf32, #tpu.memory_space<smem>>
    %1573 = vector.broadcast %1572 : f32 to vector<2x6x128xf32>
    %1574 = arith.mulf %1571, %1573 : vector<2x6x128xf32>
    %1575 = arith.addf %1570, %1574 : vector<2x6x128xf32>
    %1576 = vector.extract_strided_slice %2 {offsets = [5, 0, 0], sizes = [2, 6, 128], strides = [1, 1, 1]} : vector<8x6x128xf32> to vector<2x6x128xf32>
    %c59_160 = arith.constant 59 : index
    %1577 = memref.load %arg2[%c59_160] : memref<72xf32, #tpu.memory_space<smem>>
    %1578 = vector.broadcast %1577 : f32 to vector<2x6x128xf32>
    %1579 = arith.mulf %1576, %1578 : vector<2x6x128xf32>
    %1580 = arith.addf %1575, %1579 : vector<2x6x128xf32>
    %1581 = vector.extract_strided_slice %0 {offsets = [6, 0, 0], sizes = [2, 6, 128], strides = [1, 1, 1]} : vector<8x6x128xf32> to vector<2x6x128xf32>
    %c60_161 = arith.constant 60 : index
    %1582 = memref.load %arg2[%c60_161] : memref<72xf32, #tpu.memory_space<smem>>
    %1583 = vector.broadcast %1582 : f32 to vector<2x6x128xf32>
    %1584 = arith.mulf %1581, %1583 : vector<2x6x128xf32>
    %1585 = arith.addf %1580, %1584 : vector<2x6x128xf32>
    %1586 = vector.extract_strided_slice %1 {offsets = [6, 0, 0], sizes = [2, 6, 128], strides = [1, 1, 1]} : vector<8x6x128xf32> to vector<2x6x128xf32>
    %c61_162 = arith.constant 61 : index
    %1587 = memref.load %arg2[%c61_162] : memref<72xf32, #tpu.memory_space<smem>>
    %1588 = vector.broadcast %1587 : f32 to vector<2x6x128xf32>
    %1589 = arith.mulf %1586, %1588 : vector<2x6x128xf32>
    %1590 = arith.addf %1585, %1589 : vector<2x6x128xf32>
    %1591 = vector.extract_strided_slice %2 {offsets = [6, 0, 0], sizes = [2, 6, 128], strides = [1, 1, 1]} : vector<8x6x128xf32> to vector<2x6x128xf32>
    %c62_163 = arith.constant 62 : index
    %1592 = memref.load %arg2[%c62_163] : memref<72xf32, #tpu.memory_space<smem>>
    %1593 = vector.broadcast %1592 : f32 to vector<2x6x128xf32>
    %1594 = arith.mulf %1591, %1593 : vector<2x6x128xf32>
    %1595 = arith.addf %1590, %1594 : vector<2x6x128xf32>
    %1596 = vector.extract_strided_slice %1595 {offsets = [0, 0, 0], sizes = [1, 6, 128], strides = [1, 1, 1]} : vector<2x6x128xf32> to vector<1x6x128xf32>
    %1597 = vector.shape_cast %1596 : vector<1x6x128xf32> to vector<6x128xf32>
    %1598 = vector.extract_strided_slice %1595 {offsets = [1, 0, 0], sizes = [1, 6, 128], strides = [1, 1, 1]} : vector<2x6x128xf32> to vector<1x6x128xf32>
    %1599 = vector.shape_cast %1598 : vector<1x6x128xf32> to vector<6x128xf32>
    %1600 = arith.maximumf %1597, %1599 : vector<6x128xf32>
    %1601 = vector.broadcast %1397 : f32 to vector<6x128xf32>
    %1602 = arith.addf %1600, %1601 : vector<6x128xf32>
    %cst_164 = arith.constant 0.000000e+00 : f32
    %1603 = vector.broadcast %cst_164 : f32 to vector<6x128xf32>
    %1604 = arith.maximumf %1602, %1603 : vector<6x128xf32>
    %1605 = vector.extract_strided_slice %1604 {offsets = [0, 0], sizes = [1, 128], strides = [1, 1]} : vector<6x128xf32> to vector<1x128xf32>
    %1606 = vector.extract_strided_slice %1604 {offsets = [1, 0], sizes = [1, 128], strides = [1, 1]} : vector<6x128xf32> to vector<1x128xf32>
    %1607 = arith.maximumf %1605, %1606 : vector<1x128xf32>
    %1608 = vector.extract_strided_slice %3 {offsets = [0, 60], sizes = [4, 1], strides = [1, 1]} : vector<4x72xf32> to vector<4x1xf32>
    %1609 = vector.broadcast %1607 : vector<1x128xf32> to vector<4x128xf32>
    %1610 = vector.broadcast %1608 : vector<4x1xf32> to vector<4x128xf32>
    %1611 = arith.mulf %1609, %1610 : vector<4x128xf32>
    %1612 = arith.addf %1551, %1611 : vector<4x128xf32>
    %1613 = vector.extract_strided_slice %1604 {offsets = [2, 0], sizes = [1, 128], strides = [1, 1]} : vector<6x128xf32> to vector<1x128xf32>
    %1614 = vector.extract_strided_slice %1604 {offsets = [3, 0], sizes = [1, 128], strides = [1, 1]} : vector<6x128xf32> to vector<1x128xf32>
    %1615 = arith.maximumf %1613, %1614 : vector<1x128xf32>
    %1616 = vector.extract_strided_slice %3 {offsets = [0, 61], sizes = [4, 1], strides = [1, 1]} : vector<4x72xf32> to vector<4x1xf32>
    %1617 = vector.broadcast %1615 : vector<1x128xf32> to vector<4x128xf32>
    %1618 = vector.broadcast %1616 : vector<4x1xf32> to vector<4x128xf32>
    %1619 = arith.mulf %1617, %1618 : vector<4x128xf32>
    %1620 = arith.addf %1612, %1619 : vector<4x128xf32>
    %1621 = vector.extract_strided_slice %1604 {offsets = [4, 0], sizes = [1, 128], strides = [1, 1]} : vector<6x128xf32> to vector<1x128xf32>
    %1622 = vector.extract_strided_slice %1604 {offsets = [5, 0], sizes = [1, 128], strides = [1, 1]} : vector<6x128xf32> to vector<1x128xf32>
    %1623 = arith.maximumf %1621, %1622 : vector<1x128xf32>
    %1624 = vector.extract_strided_slice %3 {offsets = [0, 62], sizes = [4, 1], strides = [1, 1]} : vector<4x72xf32> to vector<4x1xf32>
    %1625 = vector.broadcast %1623 : vector<1x128xf32> to vector<4x128xf32>
    %1626 = vector.broadcast %1624 : vector<4x1xf32> to vector<4x128xf32>
    %1627 = arith.mulf %1625, %1626 : vector<4x128xf32>
    %1628 = arith.addf %1620, %1627 : vector<4x128xf32>
    %c7_165 = arith.constant 7 : index
    %1629 = memref.load %arg3[%c7_165] : memref<8xf32, #tpu.memory_space<smem>>
    %1630 = vector.extract_strided_slice %0 {offsets = [0, 0, 0], sizes = [2, 6, 128], strides = [1, 1, 1]} : vector<8x6x128xf32> to vector<2x6x128xf32>
    %c63 = arith.constant 63 : index
    %1631 = memref.load %arg2[%c63] : memref<72xf32, #tpu.memory_space<smem>>
    %1632 = vector.broadcast %1631 : f32 to vector<2x6x128xf32>
    %1633 = arith.mulf %1630, %1632 : vector<2x6x128xf32>
    %1634 = vector.extract_strided_slice %1 {offsets = [0, 0, 0], sizes = [2, 6, 128], strides = [1, 1, 1]} : vector<8x6x128xf32> to vector<2x6x128xf32>
    %c64 = arith.constant 64 : index
    %1635 = memref.load %arg2[%c64] : memref<72xf32, #tpu.memory_space<smem>>
    %1636 = vector.broadcast %1635 : f32 to vector<2x6x128xf32>
    %1637 = arith.mulf %1634, %1636 : vector<2x6x128xf32>
    %1638 = arith.addf %1633, %1637 : vector<2x6x128xf32>
    %1639 = vector.extract_strided_slice %2 {offsets = [0, 0, 0], sizes = [2, 6, 128], strides = [1, 1, 1]} : vector<8x6x128xf32> to vector<2x6x128xf32>
    %c65 = arith.constant 65 : index
    %1640 = memref.load %arg2[%c65] : memref<72xf32, #tpu.memory_space<smem>>
    %1641 = vector.broadcast %1640 : f32 to vector<2x6x128xf32>
    %1642 = arith.mulf %1639, %1641 : vector<2x6x128xf32>
    %1643 = arith.addf %1638, %1642 : vector<2x6x128xf32>
    %1644 = vector.extract_strided_slice %0 {offsets = [1, 0, 0], sizes = [2, 6, 128], strides = [1, 1, 1]} : vector<8x6x128xf32> to vector<2x6x128xf32>
    %c66 = arith.constant 66 : index
    %1645 = memref.load %arg2[%c66] : memref<72xf32, #tpu.memory_space<smem>>
    %1646 = vector.broadcast %1645 : f32 to vector<2x6x128xf32>
    %1647 = arith.mulf %1644, %1646 : vector<2x6x128xf32>
    %1648 = arith.addf %1643, %1647 : vector<2x6x128xf32>
    %1649 = vector.extract_strided_slice %1 {offsets = [1, 0, 0], sizes = [2, 6, 128], strides = [1, 1, 1]} : vector<8x6x128xf32> to vector<2x6x128xf32>
    %c67 = arith.constant 67 : index
    %1650 = memref.load %arg2[%c67] : memref<72xf32, #tpu.memory_space<smem>>
    %1651 = vector.broadcast %1650 : f32 to vector<2x6x128xf32>
    %1652 = arith.mulf %1649, %1651 : vector<2x6x128xf32>
    %1653 = arith.addf %1648, %1652 : vector<2x6x128xf32>
    %1654 = vector.extract_strided_slice %2 {offsets = [1, 0, 0], sizes = [2, 6, 128], strides = [1, 1, 1]} : vector<8x6x128xf32> to vector<2x6x128xf32>
    %c68 = arith.constant 68 : index
    %1655 = memref.load %arg2[%c68] : memref<72xf32, #tpu.memory_space<smem>>
    %1656 = vector.broadcast %1655 : f32 to vector<2x6x128xf32>
    %1657 = arith.mulf %1654, %1656 : vector<2x6x128xf32>
    %1658 = arith.addf %1653, %1657 : vector<2x6x128xf32>
    %1659 = vector.extract_strided_slice %0 {offsets = [2, 0, 0], sizes = [2, 6, 128], strides = [1, 1, 1]} : vector<8x6x128xf32> to vector<2x6x128xf32>
    %c69 = arith.constant 69 : index
    %1660 = memref.load %arg2[%c69] : memref<72xf32, #tpu.memory_space<smem>>
    %1661 = vector.broadcast %1660 : f32 to vector<2x6x128xf32>
    %1662 = arith.mulf %1659, %1661 : vector<2x6x128xf32>
    %1663 = arith.addf %1658, %1662 : vector<2x6x128xf32>
    %1664 = vector.extract_strided_slice %1 {offsets = [2, 0, 0], sizes = [2, 6, 128], strides = [1, 1, 1]} : vector<8x6x128xf32> to vector<2x6x128xf32>
    %c70 = arith.constant 70 : index
    %1665 = memref.load %arg2[%c70] : memref<72xf32, #tpu.memory_space<smem>>
    %1666 = vector.broadcast %1665 : f32 to vector<2x6x128xf32>
    %1667 = arith.mulf %1664, %1666 : vector<2x6x128xf32>
    %1668 = arith.addf %1663, %1667 : vector<2x6x128xf32>
    %1669 = vector.extract_strided_slice %2 {offsets = [2, 0, 0], sizes = [2, 6, 128], strides = [1, 1, 1]} : vector<8x6x128xf32> to vector<2x6x128xf32>
    %c71 = arith.constant 71 : index
    %1670 = memref.load %arg2[%c71] : memref<72xf32, #tpu.memory_space<smem>>
    %1671 = vector.broadcast %1670 : f32 to vector<2x6x128xf32>
    %1672 = arith.mulf %1669, %1671 : vector<2x6x128xf32>
    %1673 = arith.addf %1668, %1672 : vector<2x6x128xf32>
    %1674 = vector.extract_strided_slice %1673 {offsets = [0, 0, 0], sizes = [1, 6, 128], strides = [1, 1, 1]} : vector<2x6x128xf32> to vector<1x6x128xf32>
    %1675 = vector.shape_cast %1674 : vector<1x6x128xf32> to vector<6x128xf32>
    %1676 = vector.extract_strided_slice %1673 {offsets = [1, 0, 0], sizes = [1, 6, 128], strides = [1, 1, 1]} : vector<2x6x128xf32> to vector<1x6x128xf32>
    %1677 = vector.shape_cast %1676 : vector<1x6x128xf32> to vector<6x128xf32>
    %1678 = arith.maximumf %1675, %1677 : vector<6x128xf32>
    %1679 = vector.broadcast %1629 : f32 to vector<6x128xf32>
    %1680 = arith.addf %1678, %1679 : vector<6x128xf32>
    %cst_166 = arith.constant 0.000000e+00 : f32
    %1681 = vector.broadcast %cst_166 : f32 to vector<6x128xf32>
    %1682 = arith.maximumf %1680, %1681 : vector<6x128xf32>
    %1683 = vector.extract_strided_slice %1682 {offsets = [0, 0], sizes = [1, 128], strides = [1, 1]} : vector<6x128xf32> to vector<1x128xf32>
    %1684 = vector.extract_strided_slice %1682 {offsets = [1, 0], sizes = [1, 128], strides = [1, 1]} : vector<6x128xf32> to vector<1x128xf32>
    %1685 = arith.maximumf %1683, %1684 : vector<1x128xf32>
    %1686 = vector.extract_strided_slice %3 {offsets = [0, 63], sizes = [4, 1], strides = [1, 1]} : vector<4x72xf32> to vector<4x1xf32>
    %1687 = vector.broadcast %1685 : vector<1x128xf32> to vector<4x128xf32>
    %1688 = vector.broadcast %1686 : vector<4x1xf32> to vector<4x128xf32>
    %1689 = arith.mulf %1687, %1688 : vector<4x128xf32>
    %1690 = arith.addf %1628, %1689 : vector<4x128xf32>
    %1691 = vector.extract_strided_slice %1682 {offsets = [2, 0], sizes = [1, 128], strides = [1, 1]} : vector<6x128xf32> to vector<1x128xf32>
    %1692 = vector.extract_strided_slice %1682 {offsets = [3, 0], sizes = [1, 128], strides = [1, 1]} : vector<6x128xf32> to vector<1x128xf32>
    %1693 = arith.maximumf %1691, %1692 : vector<1x128xf32>
    %1694 = vector.extract_strided_slice %3 {offsets = [0, 64], sizes = [4, 1], strides = [1, 1]} : vector<4x72xf32> to vector<4x1xf32>
    %1695 = vector.broadcast %1693 : vector<1x128xf32> to vector<4x128xf32>
    %1696 = vector.broadcast %1694 : vector<4x1xf32> to vector<4x128xf32>
    %1697 = arith.mulf %1695, %1696 : vector<4x128xf32>
    %1698 = arith.addf %1690, %1697 : vector<4x128xf32>
    %1699 = vector.extract_strided_slice %1682 {offsets = [4, 0], sizes = [1, 128], strides = [1, 1]} : vector<6x128xf32> to vector<1x128xf32>
    %1700 = vector.extract_strided_slice %1682 {offsets = [5, 0], sizes = [1, 128], strides = [1, 1]} : vector<6x128xf32> to vector<1x128xf32>
    %1701 = arith.maximumf %1699, %1700 : vector<1x128xf32>
    %1702 = vector.extract_strided_slice %3 {offsets = [0, 65], sizes = [4, 1], strides = [1, 1]} : vector<4x72xf32> to vector<4x1xf32>
    %1703 = vector.broadcast %1701 : vector<1x128xf32> to vector<4x128xf32>
    %1704 = vector.broadcast %1702 : vector<4x1xf32> to vector<4x128xf32>
    %1705 = arith.mulf %1703, %1704 : vector<4x128xf32>
    %1706 = arith.addf %1698, %1705 : vector<4x128xf32>
    %1707 = vector.extract_strided_slice %0 {offsets = [2, 0, 0], sizes = [2, 6, 128], strides = [1, 1, 1]} : vector<8x6x128xf32> to vector<2x6x128xf32>
    %c63_167 = arith.constant 63 : index
    %1708 = memref.load %arg2[%c63_167] : memref<72xf32, #tpu.memory_space<smem>>
    %1709 = vector.broadcast %1708 : f32 to vector<2x6x128xf32>
    %1710 = arith.mulf %1707, %1709 : vector<2x6x128xf32>
    %1711 = vector.extract_strided_slice %1 {offsets = [2, 0, 0], sizes = [2, 6, 128], strides = [1, 1, 1]} : vector<8x6x128xf32> to vector<2x6x128xf32>
    %c64_168 = arith.constant 64 : index
    %1712 = memref.load %arg2[%c64_168] : memref<72xf32, #tpu.memory_space<smem>>
    %1713 = vector.broadcast %1712 : f32 to vector<2x6x128xf32>
    %1714 = arith.mulf %1711, %1713 : vector<2x6x128xf32>
    %1715 = arith.addf %1710, %1714 : vector<2x6x128xf32>
    %1716 = vector.extract_strided_slice %2 {offsets = [2, 0, 0], sizes = [2, 6, 128], strides = [1, 1, 1]} : vector<8x6x128xf32> to vector<2x6x128xf32>
    %c65_169 = arith.constant 65 : index
    %1717 = memref.load %arg2[%c65_169] : memref<72xf32, #tpu.memory_space<smem>>
    %1718 = vector.broadcast %1717 : f32 to vector<2x6x128xf32>
    %1719 = arith.mulf %1716, %1718 : vector<2x6x128xf32>
    %1720 = arith.addf %1715, %1719 : vector<2x6x128xf32>
    %1721 = vector.extract_strided_slice %0 {offsets = [3, 0, 0], sizes = [2, 6, 128], strides = [1, 1, 1]} : vector<8x6x128xf32> to vector<2x6x128xf32>
    %c66_170 = arith.constant 66 : index
    %1722 = memref.load %arg2[%c66_170] : memref<72xf32, #tpu.memory_space<smem>>
    %1723 = vector.broadcast %1722 : f32 to vector<2x6x128xf32>
    %1724 = arith.mulf %1721, %1723 : vector<2x6x128xf32>
    %1725 = arith.addf %1720, %1724 : vector<2x6x128xf32>
    %1726 = vector.extract_strided_slice %1 {offsets = [3, 0, 0], sizes = [2, 6, 128], strides = [1, 1, 1]} : vector<8x6x128xf32> to vector<2x6x128xf32>
    %c67_171 = arith.constant 67 : index
    %1727 = memref.load %arg2[%c67_171] : memref<72xf32, #tpu.memory_space<smem>>
    %1728 = vector.broadcast %1727 : f32 to vector<2x6x128xf32>
    %1729 = arith.mulf %1726, %1728 : vector<2x6x128xf32>
    %1730 = arith.addf %1725, %1729 : vector<2x6x128xf32>
    %1731 = vector.extract_strided_slice %2 {offsets = [3, 0, 0], sizes = [2, 6, 128], strides = [1, 1, 1]} : vector<8x6x128xf32> to vector<2x6x128xf32>
    %c68_172 = arith.constant 68 : index
    %1732 = memref.load %arg2[%c68_172] : memref<72xf32, #tpu.memory_space<smem>>
    %1733 = vector.broadcast %1732 : f32 to vector<2x6x128xf32>
    %1734 = arith.mulf %1731, %1733 : vector<2x6x128xf32>
    %1735 = arith.addf %1730, %1734 : vector<2x6x128xf32>
    %1736 = vector.extract_strided_slice %0 {offsets = [4, 0, 0], sizes = [2, 6, 128], strides = [1, 1, 1]} : vector<8x6x128xf32> to vector<2x6x128xf32>
    %c69_173 = arith.constant 69 : index
    %1737 = memref.load %arg2[%c69_173] : memref<72xf32, #tpu.memory_space<smem>>
    %1738 = vector.broadcast %1737 : f32 to vector<2x6x128xf32>
    %1739 = arith.mulf %1736, %1738 : vector<2x6x128xf32>
    %1740 = arith.addf %1735, %1739 : vector<2x6x128xf32>
    %1741 = vector.extract_strided_slice %1 {offsets = [4, 0, 0], sizes = [2, 6, 128], strides = [1, 1, 1]} : vector<8x6x128xf32> to vector<2x6x128xf32>
    %c70_174 = arith.constant 70 : index
    %1742 = memref.load %arg2[%c70_174] : memref<72xf32, #tpu.memory_space<smem>>
    %1743 = vector.broadcast %1742 : f32 to vector<2x6x128xf32>
    %1744 = arith.mulf %1741, %1743 : vector<2x6x128xf32>
    %1745 = arith.addf %1740, %1744 : vector<2x6x128xf32>
    %1746 = vector.extract_strided_slice %2 {offsets = [4, 0, 0], sizes = [2, 6, 128], strides = [1, 1, 1]} : vector<8x6x128xf32> to vector<2x6x128xf32>
    %c71_175 = arith.constant 71 : index
    %1747 = memref.load %arg2[%c71_175] : memref<72xf32, #tpu.memory_space<smem>>
    %1748 = vector.broadcast %1747 : f32 to vector<2x6x128xf32>
    %1749 = arith.mulf %1746, %1748 : vector<2x6x128xf32>
    %1750 = arith.addf %1745, %1749 : vector<2x6x128xf32>
    %1751 = vector.extract_strided_slice %1750 {offsets = [0, 0, 0], sizes = [1, 6, 128], strides = [1, 1, 1]} : vector<2x6x128xf32> to vector<1x6x128xf32>
    %1752 = vector.shape_cast %1751 : vector<1x6x128xf32> to vector<6x128xf32>
    %1753 = vector.extract_strided_slice %1750 {offsets = [1, 0, 0], sizes = [1, 6, 128], strides = [1, 1, 1]} : vector<2x6x128xf32> to vector<1x6x128xf32>
    %1754 = vector.shape_cast %1753 : vector<1x6x128xf32> to vector<6x128xf32>
    %1755 = arith.maximumf %1752, %1754 : vector<6x128xf32>
    %1756 = vector.broadcast %1629 : f32 to vector<6x128xf32>
    %1757 = arith.addf %1755, %1756 : vector<6x128xf32>
    %cst_176 = arith.constant 0.000000e+00 : f32
    %1758 = vector.broadcast %cst_176 : f32 to vector<6x128xf32>
    %1759 = arith.maximumf %1757, %1758 : vector<6x128xf32>
    %1760 = vector.extract_strided_slice %1759 {offsets = [0, 0], sizes = [1, 128], strides = [1, 1]} : vector<6x128xf32> to vector<1x128xf32>
    %1761 = vector.extract_strided_slice %1759 {offsets = [1, 0], sizes = [1, 128], strides = [1, 1]} : vector<6x128xf32> to vector<1x128xf32>
    %1762 = arith.maximumf %1760, %1761 : vector<1x128xf32>
    %1763 = vector.extract_strided_slice %3 {offsets = [0, 66], sizes = [4, 1], strides = [1, 1]} : vector<4x72xf32> to vector<4x1xf32>
    %1764 = vector.broadcast %1762 : vector<1x128xf32> to vector<4x128xf32>
    %1765 = vector.broadcast %1763 : vector<4x1xf32> to vector<4x128xf32>
    %1766 = arith.mulf %1764, %1765 : vector<4x128xf32>
    %1767 = arith.addf %1706, %1766 : vector<4x128xf32>
    %1768 = vector.extract_strided_slice %1759 {offsets = [2, 0], sizes = [1, 128], strides = [1, 1]} : vector<6x128xf32> to vector<1x128xf32>
    %1769 = vector.extract_strided_slice %1759 {offsets = [3, 0], sizes = [1, 128], strides = [1, 1]} : vector<6x128xf32> to vector<1x128xf32>
    %1770 = arith.maximumf %1768, %1769 : vector<1x128xf32>
    %1771 = vector.extract_strided_slice %3 {offsets = [0, 67], sizes = [4, 1], strides = [1, 1]} : vector<4x72xf32> to vector<4x1xf32>
    %1772 = vector.broadcast %1770 : vector<1x128xf32> to vector<4x128xf32>
    %1773 = vector.broadcast %1771 : vector<4x1xf32> to vector<4x128xf32>
    %1774 = arith.mulf %1772, %1773 : vector<4x128xf32>
    %1775 = arith.addf %1767, %1774 : vector<4x128xf32>
    %1776 = vector.extract_strided_slice %1759 {offsets = [4, 0], sizes = [1, 128], strides = [1, 1]} : vector<6x128xf32> to vector<1x128xf32>
    %1777 = vector.extract_strided_slice %1759 {offsets = [5, 0], sizes = [1, 128], strides = [1, 1]} : vector<6x128xf32> to vector<1x128xf32>
    %1778 = arith.maximumf %1776, %1777 : vector<1x128xf32>
    %1779 = vector.extract_strided_slice %3 {offsets = [0, 68], sizes = [4, 1], strides = [1, 1]} : vector<4x72xf32> to vector<4x1xf32>
    %1780 = vector.broadcast %1778 : vector<1x128xf32> to vector<4x128xf32>
    %1781 = vector.broadcast %1779 : vector<4x1xf32> to vector<4x128xf32>
    %1782 = arith.mulf %1780, %1781 : vector<4x128xf32>
    %1783 = arith.addf %1775, %1782 : vector<4x128xf32>
    %1784 = vector.extract_strided_slice %0 {offsets = [4, 0, 0], sizes = [2, 6, 128], strides = [1, 1, 1]} : vector<8x6x128xf32> to vector<2x6x128xf32>
    %c63_177 = arith.constant 63 : index
    %1785 = memref.load %arg2[%c63_177] : memref<72xf32, #tpu.memory_space<smem>>
    %1786 = vector.broadcast %1785 : f32 to vector<2x6x128xf32>
    %1787 = arith.mulf %1784, %1786 : vector<2x6x128xf32>
    %1788 = vector.extract_strided_slice %1 {offsets = [4, 0, 0], sizes = [2, 6, 128], strides = [1, 1, 1]} : vector<8x6x128xf32> to vector<2x6x128xf32>
    %c64_178 = arith.constant 64 : index
    %1789 = memref.load %arg2[%c64_178] : memref<72xf32, #tpu.memory_space<smem>>
    %1790 = vector.broadcast %1789 : f32 to vector<2x6x128xf32>
    %1791 = arith.mulf %1788, %1790 : vector<2x6x128xf32>
    %1792 = arith.addf %1787, %1791 : vector<2x6x128xf32>
    %1793 = vector.extract_strided_slice %2 {offsets = [4, 0, 0], sizes = [2, 6, 128], strides = [1, 1, 1]} : vector<8x6x128xf32> to vector<2x6x128xf32>
    %c65_179 = arith.constant 65 : index
    %1794 = memref.load %arg2[%c65_179] : memref<72xf32, #tpu.memory_space<smem>>
    %1795 = vector.broadcast %1794 : f32 to vector<2x6x128xf32>
    %1796 = arith.mulf %1793, %1795 : vector<2x6x128xf32>
    %1797 = arith.addf %1792, %1796 : vector<2x6x128xf32>
    %1798 = vector.extract_strided_slice %0 {offsets = [5, 0, 0], sizes = [2, 6, 128], strides = [1, 1, 1]} : vector<8x6x128xf32> to vector<2x6x128xf32>
    %c66_180 = arith.constant 66 : index
    %1799 = memref.load %arg2[%c66_180] : memref<72xf32, #tpu.memory_space<smem>>
    %1800 = vector.broadcast %1799 : f32 to vector<2x6x128xf32>
    %1801 = arith.mulf %1798, %1800 : vector<2x6x128xf32>
    %1802 = arith.addf %1797, %1801 : vector<2x6x128xf32>
    %1803 = vector.extract_strided_slice %1 {offsets = [5, 0, 0], sizes = [2, 6, 128], strides = [1, 1, 1]} : vector<8x6x128xf32> to vector<2x6x128xf32>
    %c67_181 = arith.constant 67 : index
    %1804 = memref.load %arg2[%c67_181] : memref<72xf32, #tpu.memory_space<smem>>
    %1805 = vector.broadcast %1804 : f32 to vector<2x6x128xf32>
    %1806 = arith.mulf %1803, %1805 : vector<2x6x128xf32>
    %1807 = arith.addf %1802, %1806 : vector<2x6x128xf32>
    %1808 = vector.extract_strided_slice %2 {offsets = [5, 0, 0], sizes = [2, 6, 128], strides = [1, 1, 1]} : vector<8x6x128xf32> to vector<2x6x128xf32>
    %c68_182 = arith.constant 68 : index
    %1809 = memref.load %arg2[%c68_182] : memref<72xf32, #tpu.memory_space<smem>>
    %1810 = vector.broadcast %1809 : f32 to vector<2x6x128xf32>
    %1811 = arith.mulf %1808, %1810 : vector<2x6x128xf32>
    %1812 = arith.addf %1807, %1811 : vector<2x6x128xf32>
    %1813 = vector.extract_strided_slice %0 {offsets = [6, 0, 0], sizes = [2, 6, 128], strides = [1, 1, 1]} : vector<8x6x128xf32> to vector<2x6x128xf32>
    %c69_183 = arith.constant 69 : index
    %1814 = memref.load %arg2[%c69_183] : memref<72xf32, #tpu.memory_space<smem>>
    %1815 = vector.broadcast %1814 : f32 to vector<2x6x128xf32>
    %1816 = arith.mulf %1813, %1815 : vector<2x6x128xf32>
    %1817 = arith.addf %1812, %1816 : vector<2x6x128xf32>
    %1818 = vector.extract_strided_slice %1 {offsets = [6, 0, 0], sizes = [2, 6, 128], strides = [1, 1, 1]} : vector<8x6x128xf32> to vector<2x6x128xf32>
    %c70_184 = arith.constant 70 : index
    %1819 = memref.load %arg2[%c70_184] : memref<72xf32, #tpu.memory_space<smem>>
    %1820 = vector.broadcast %1819 : f32 to vector<2x6x128xf32>
    %1821 = arith.mulf %1818, %1820 : vector<2x6x128xf32>
    %1822 = arith.addf %1817, %1821 : vector<2x6x128xf32>
    %1823 = vector.extract_strided_slice %2 {offsets = [6, 0, 0], sizes = [2, 6, 128], strides = [1, 1, 1]} : vector<8x6x128xf32> to vector<2x6x128xf32>
    %c71_185 = arith.constant 71 : index
    %1824 = memref.load %arg2[%c71_185] : memref<72xf32, #tpu.memory_space<smem>>
    %1825 = vector.broadcast %1824 : f32 to vector<2x6x128xf32>
    %1826 = arith.mulf %1823, %1825 : vector<2x6x128xf32>
    %1827 = arith.addf %1822, %1826 : vector<2x6x128xf32>
    %1828 = vector.extract_strided_slice %1827 {offsets = [0, 0, 0], sizes = [1, 6, 128], strides = [1, 1, 1]} : vector<2x6x128xf32> to vector<1x6x128xf32>
    %1829 = vector.shape_cast %1828 : vector<1x6x128xf32> to vector<6x128xf32>
    %1830 = vector.extract_strided_slice %1827 {offsets = [1, 0, 0], sizes = [1, 6, 128], strides = [1, 1, 1]} : vector<2x6x128xf32> to vector<1x6x128xf32>
    %1831 = vector.shape_cast %1830 : vector<1x6x128xf32> to vector<6x128xf32>
    %1832 = arith.maximumf %1829, %1831 : vector<6x128xf32>
    %1833 = vector.broadcast %1629 : f32 to vector<6x128xf32>
    %1834 = arith.addf %1832, %1833 : vector<6x128xf32>
    %cst_186 = arith.constant 0.000000e+00 : f32
    %1835 = vector.broadcast %cst_186 : f32 to vector<6x128xf32>
    %1836 = arith.maximumf %1834, %1835 : vector<6x128xf32>
    %1837 = vector.extract_strided_slice %1836 {offsets = [0, 0], sizes = [1, 128], strides = [1, 1]} : vector<6x128xf32> to vector<1x128xf32>
    %1838 = vector.extract_strided_slice %1836 {offsets = [1, 0], sizes = [1, 128], strides = [1, 1]} : vector<6x128xf32> to vector<1x128xf32>
    %1839 = arith.maximumf %1837, %1838 : vector<1x128xf32>
    %1840 = vector.extract_strided_slice %3 {offsets = [0, 69], sizes = [4, 1], strides = [1, 1]} : vector<4x72xf32> to vector<4x1xf32>
    %1841 = vector.broadcast %1839 : vector<1x128xf32> to vector<4x128xf32>
    %1842 = vector.broadcast %1840 : vector<4x1xf32> to vector<4x128xf32>
    %1843 = arith.mulf %1841, %1842 : vector<4x128xf32>
    %1844 = arith.addf %1783, %1843 : vector<4x128xf32>
    %1845 = vector.extract_strided_slice %1836 {offsets = [2, 0], sizes = [1, 128], strides = [1, 1]} : vector<6x128xf32> to vector<1x128xf32>
    %1846 = vector.extract_strided_slice %1836 {offsets = [3, 0], sizes = [1, 128], strides = [1, 1]} : vector<6x128xf32> to vector<1x128xf32>
    %1847 = arith.maximumf %1845, %1846 : vector<1x128xf32>
    %1848 = vector.extract_strided_slice %3 {offsets = [0, 70], sizes = [4, 1], strides = [1, 1]} : vector<4x72xf32> to vector<4x1xf32>
    %1849 = vector.broadcast %1847 : vector<1x128xf32> to vector<4x128xf32>
    %1850 = vector.broadcast %1848 : vector<4x1xf32> to vector<4x128xf32>
    %1851 = arith.mulf %1849, %1850 : vector<4x128xf32>
    %1852 = arith.addf %1844, %1851 : vector<4x128xf32>
    %1853 = vector.extract_strided_slice %1836 {offsets = [4, 0], sizes = [1, 128], strides = [1, 1]} : vector<6x128xf32> to vector<1x128xf32>
    %1854 = vector.extract_strided_slice %1836 {offsets = [5, 0], sizes = [1, 128], strides = [1, 1]} : vector<6x128xf32> to vector<1x128xf32>
    %1855 = arith.maximumf %1853, %1854 : vector<1x128xf32>
    %1856 = vector.extract_strided_slice %3 {offsets = [0, 71], sizes = [4, 1], strides = [1, 1]} : vector<4x72xf32> to vector<4x1xf32>
    %1857 = vector.broadcast %1855 : vector<1x128xf32> to vector<4x128xf32>
    %1858 = vector.broadcast %1856 : vector<4x1xf32> to vector<4x128xf32>
    %1859 = arith.mulf %1857, %1858 : vector<4x128xf32>
    %1860 = arith.addf %1852, %1859 : vector<4x128xf32>
    %c0_187 = arith.constant 0 : index
    %c0_188 = arith.constant 0 : index
    %1861 = vector.load %arg5[%c0_187, %c0_188] : memref<4x1xf32, #tpu.memory_space<vmem>>, vector<4x1xf32>
    %1862 = vector.broadcast %1861 : vector<4x1xf32> to vector<4x128xf32>
    %1863 = arith.addf %1860, %1862 : vector<4x128xf32>
    %cst_189 = arith.constant 0.000000e+00 : f32
    %1864 = vector.broadcast %cst_189 : f32 to vector<4x128xf32>
    %1865 = arith.maximumf %1863, %1864 : vector<4x128xf32>
    %c0_190 = arith.constant 0 : index
    %c0_191 = arith.constant 0 : index
    %1866 = vector.load %arg6[%c0_190, %c0_191] : memref<10x4xf32, #tpu.memory_space<vmem>>, vector<10x4xf32>
    %c0_192 = arith.constant 0 : index
    %c0_193 = arith.constant 0 : index
    %1867 = vector.load %arg7[%c0_192, %c0_193] : memref<10x1xf32, #tpu.memory_space<vmem>>, vector<10x1xf32>
    %1868 = vector.extract_strided_slice %1865 {offsets = [0, 0], sizes = [1, 128], strides = [1, 1]} : vector<4x128xf32> to vector<1x128xf32>
    %1869 = vector.extract_strided_slice %1866 {offsets = [0, 0], sizes = [10, 1], strides = [1, 1]} : vector<10x4xf32> to vector<10x1xf32>
    %1870 = vector.broadcast %1868 : vector<1x128xf32> to vector<10x128xf32>
    %1871 = vector.broadcast %1869 : vector<10x1xf32> to vector<10x128xf32>
    %1872 = arith.mulf %1870, %1871 : vector<10x128xf32>
    %1873 = vector.broadcast %1867 : vector<10x1xf32> to vector<10x128xf32>
    %1874 = arith.addf %1873, %1872 : vector<10x128xf32>
    %1875 = vector.extract_strided_slice %1865 {offsets = [1, 0], sizes = [1, 128], strides = [1, 1]} : vector<4x128xf32> to vector<1x128xf32>
    %1876 = vector.extract_strided_slice %1866 {offsets = [0, 1], sizes = [10, 1], strides = [1, 1]} : vector<10x4xf32> to vector<10x1xf32>
    %1877 = vector.broadcast %1875 : vector<1x128xf32> to vector<10x128xf32>
    %1878 = vector.broadcast %1876 : vector<10x1xf32> to vector<10x128xf32>
    %1879 = arith.mulf %1877, %1878 : vector<10x128xf32>
    %1880 = arith.addf %1874, %1879 : vector<10x128xf32>
    %1881 = vector.extract_strided_slice %1865 {offsets = [2, 0], sizes = [1, 128], strides = [1, 1]} : vector<4x128xf32> to vector<1x128xf32>
    %1882 = vector.extract_strided_slice %1866 {offsets = [0, 2], sizes = [10, 1], strides = [1, 1]} : vector<10x4xf32> to vector<10x1xf32>
    %1883 = vector.broadcast %1881 : vector<1x128xf32> to vector<10x128xf32>
    %1884 = vector.broadcast %1882 : vector<10x1xf32> to vector<10x128xf32>
    %1885 = arith.mulf %1883, %1884 : vector<10x128xf32>
    %1886 = arith.addf %1880, %1885 : vector<10x128xf32>
    %1887 = vector.extract_strided_slice %1865 {offsets = [3, 0], sizes = [1, 128], strides = [1, 1]} : vector<4x128xf32> to vector<1x128xf32>
    %1888 = vector.extract_strided_slice %1866 {offsets = [0, 3], sizes = [10, 1], strides = [1, 1]} : vector<10x4xf32> to vector<10x1xf32>
    %1889 = vector.broadcast %1887 : vector<1x128xf32> to vector<10x128xf32>
    %1890 = vector.broadcast %1888 : vector<10x1xf32> to vector<10x128xf32>
    %1891 = arith.mulf %1889, %1890 : vector<10x128xf32>
    %1892 = arith.addf %1886, %1891 : vector<10x128xf32>
    %c0_194 = arith.constant 0 : index
    %c0_195 = arith.constant 0 : index
    %1893 = vector.load %arg8[%c0_194, %c0_195] : memref<10x128xf32, #tpu.memory_space<vmem>>, vector<10x128xf32>
    tpu.vector_store %arg8[%c0_194, %c0_195], %1892 {strides = array<i32>} : memref<10x128xf32, #tpu.memory_space<vmem>>, vector<10x128xf32>,
    return
  }
  func.func @transform_0(%arg0: i32) -> (i32, i32, i32) {
    %c0_i32 = arith.constant 0 : i32
    %c0_i32_0 = arith.constant 0 : i32
    %c0_i32_1 = arith.constant 0 : i32
    return %c0_i32, %c0_i32_0, %arg0 : i32, i32, i32
  }
  func.func @transform_1(%arg0: i32) -> i32 {
    %c0_i32 = arith.constant 0 : i32
    %c0_i32_0 = arith.constant 0 : i32
    return %c0_i32 : i32
  }
  func.func @transform_2(%arg0: i32) -> i32 {
    %c0_i32 = arith.constant 0 : i32
    %c0_i32_0 = arith.constant 0 : i32
    return %c0_i32 : i32
  }
  func.func @transform_3(%arg0: i32) -> (i32, i32) {
    %c0_i32 = arith.constant 0 : i32
    %c0_i32_0 = arith.constant 0 : i32
    %c0_i32_1 = arith.constant 0 : i32
    return %c0_i32, %c0_i32_0 : i32, i32
  }
  func.func @transform_4(%arg0: i32) -> (i32, i32) {
    %c0_i32 = arith.constant 0 : i32
    %c0_i32_0 = arith.constant 0 : i32
    %c0_i32_1 = arith.constant 0 : i32
    return %c0_i32, %c0_i32_0 : i32, i32
  }
  func.func @transform_5(%arg0: i32) -> (i32, i32) {
    %c0_i32 = arith.constant 0 : i32
    %c0_i32_0 = arith.constant 0 : i32
    %c0_i32_1 = arith.constant 0 : i32
    return %c0_i32, %c0_i32_0 : i32, i32
  }
  func.func @transform_6(%arg0: i32) -> (i32, i32) {
    %c0_i32 = arith.constant 0 : i32
    %c0_i32_0 = arith.constant 0 : i32
    %c0_i32_1 = arith.constant 0 : i32
    return %c0_i32, %c0_i32_0 : i32, i32
  }
  func.func @transform_7(%arg0: i32) -> (i32, i32) {
    %c0_i32 = arith.constant 0 : i32
    %c0_i32_0 = arith.constant 0 : i32
    return %c0_i32, %arg0 : i32, i32
  }
}

</mosaic_0001>

<llo_original>
// kernel: digits_convnet_forward.1
$region0: #{digits_convnet_forward.1}
  #allocation0 [shape = 'u32[]', space=smem, size = 0x4, offset = 0x4, fixed_abs, tag = 'smem constant byte address 0x4 - core index']
  #allocation1 [shape = 'u32[72,128]{1,0:T(1,128)}', space=vmem, size = 0x9000, scoped, tag = 'internal scratch']
  %s0 = inlined_call_operand.vmem [shape: f32[8,8,128], index: 0, kind: input, shape index: {}]
  %s1 = inlined_call_operand.vmem [shape: f32[72], index: 1, kind: input, shape index: {}]
  %s2 = inlined_call_operand.vmem [shape: f32[8], index: 2, kind: input, shape index: {}]
  %s3 = inlined_call_operand.vmem [shape: f32[4,72], index: 3, kind: input, shape index: {}]
  %s4 = inlined_call_operand.vmem [shape: f32[4,1], index: 4, kind: input, shape index: {}]
  %s5 = inlined_call_operand.vmem [shape: f32[10,4], index: 5, kind: input, shape index: {}]
  %s6 = inlined_call_operand.vmem [shape: f32[10,1], index: 6, kind: input, shape index: {}]
  %s7 = inlined_call_operand.vmem [shape: f32[10,128], index: 7, kind: output, shape index: {}]
  %s8 = sld [smem:[#allocation0]]
  $region46: #{digits_convnet_forward.1} parent=0
    _
  %s10 = ssub.s32 1, %s8
  %s11 = scalar_select 0, %s10, %s8
  $region1: #{digits_convnet_forward.1} parent=0
    #allocation2 [shape = 'u8[512]{0}', space=smem, size = 0x200, scoped, tag = 'input window, operand 1, single buffered']
    #allocation3 [shape = 's32[1]{0}', space=sflag, size = 0x4, scoped, tag = 'scoped memory for digits_convnet_forward.1']
    #allocation4 [shape = 'u8[512]{0}', space=smem, size = 0x200, scoped, tag = 'input window, operand 2, single buffered']
    #allocation5 [shape = 's32[1]{0}', space=sflag, size = 0x4, scoped, tag = 'scoped memory for digits_convnet_forward.1']
    %12 = vsyncpa [#allocation3], 0
    %13 = vsyncpa [#allocation5], 0
    // Predicated region
    $region2: #{digits_convnet_forward.1} parent=1 // pred_check
      _
    $region3: #{digits_convnet_forward.1} parent=1 // pred_check_branch
      %15 = sbr.rel (0) target = $region5
    $region4: #{digits_convnet_forward.1} parent=1 // pred_region
      _
    $region5: #{digits_convnet_forward.1} parent=1 // pred_fallthru
      _
    // Predicated region
    $region6: #{digits_convnet_forward.1} parent=1 // pred_check
      _
    $region7: #{digits_convnet_forward.1} parent=1 // pred_check_branch
      %17 = sbr.rel (0) target = $region9
    $region8: #{digits_convnet_forward.1} parent=1 // pred_region
      %19 = vsyncadd [#allocation3], 0
      %s21 = sshll.u32 %s1, 4
      %s22 = int_to_ptr.vmem [resolvable:$true] %s21
      %24 = dma.vmem_to_smem %s22, 16, [#allocation2], [#allocation3]
    $region9: #{digits_convnet_forward.1} parent=1 // pred_fallthru
      _
    // Predicated region
    $region10: #{digits_convnet_forward.1} parent=1 // pred_check
      _
    $region11: #{digits_convnet_forward.1} parent=1 // pred_check_branch
      %26 = sbr.rel (0) target = $region13
    $region12: #{digits_convnet_forward.1} parent=1 // pred_region
      %28 = vsyncadd [#allocation5], 0
      %s30 = sshll.u32 %s2, 4
      %s31 = int_to_ptr.vmem [resolvable:$true] %s30
      %33 = dma.vmem_to_smem %s31, 16, [#allocation4], [#allocation5]
    $region13: #{digits_convnet_forward.1} parent=1 // pred_fallthru
      _
    // Predicated region
    $region14: #{digits_convnet_forward.1} parent=1 // pred_check
      _
    $region15: #{digits_convnet_forward.1} parent=1 // pred_check_branch
      %35 = sbr.rel (0) target = $region17
    $region16: #{digits_convnet_forward.1} parent=1 // pred_region
      _
    $region17: #{digits_convnet_forward.1} parent=1 // pred_fallthru
      _
    // Predicated region
    $region18: #{digits_convnet_forward.1} parent=1 // pred_check
      _
    $region19: #{digits_convnet_forward.1} parent=1 // pred_check_branch
      %37 = sbr.rel (0) target = $region21
    $region20: #{digits_convnet_forward.1} parent=1 // pred_region
      _
    $region21: #{digits_convnet_forward.1} parent=1 // pred_fallthru
      _
    // Predicated region
    $region22: #{digits_convnet_forward.1} parent=1 // pred_check
      _
    $region23: #{digits_convnet_forward.1} parent=1 // pred_check_branch
      %39 = sbr.rel (0) target = $region25
    $region24: #{digits_convnet_forward.1} parent=1 // pred_region
      _
    $region25: #{digits_convnet_forward.1} parent=1 // pred_fallthru
      _
    // Predicated region
    $region26: #{digits_convnet_forward.1} parent=1 // pred_check
      _
    $region27: #{digits_convnet_forward.1} parent=1 // pred_check_branch
      %41 = sbr.rel (0) target = $region29
    $region28: #{digits_convnet_forward.1} parent=1 // pred_region
      _
    $region29: #{digits_convnet_forward.1} parent=1 // pred_fallthru
      _
    // Predicated region
    $region30: #{digits_convnet_forward.1} parent=1 // pred_check
      _
    $region31: #{digits_convnet_forward.1} parent=1 // pred_check_branch
      %43 = sbr.rel (0) target = $region33
    $region32: #{digits_convnet_forward.1} parent=1 // pred_region
      %45 = dma.done [#allocation3], 16
    $region33: #{digits_convnet_forward.1} parent=1 // pred_fallthru
      _
    // Predicated region
    $region34: #{digits_convnet_forward.1} parent=1 // pred_check
      _
    $region35: #{digits_convnet_forward.1} parent=1 // pred_check_branch
      %47 = sbr.rel (0) target = $region37
    $region36: #{digits_convnet_forward.1} parent=1 // pred_region
      %49 = dma.done [#allocation5], 16
    $region37: #{digits_convnet_forward.1} parent=1 // pred_fallthru
      _
    %50 = sfence
    %v51 = vld [vmem:[%s0] sm:$0x3f]
    %v52 = vld [vmem:[%s0 + $0x8] sm:$0x3f]
    %v53 = vld [vmem:[%s0 + $0x10] sm:$0x3f]
    %v54 = vld [vmem:[%s0 + $0x18] sm:$0x3f]
    %v55 = vld [vmem:[%s0 + $0x20] sm:$0x3f]
    %v56 = vld [vmem:[%s0 + $0x28] sm:$0x3f]
    %v57 = vld [vmem:[%s0 + $0x30] sm:$0x3f]
    %v58 = vld [vmem:[%s0 + $0x38] sm:$0x3f]
    %v59 = vld [vmem:[%s0 + $0x1] sm:$0x3f]
    %v60 = vld [vmem:[%s0 + $0x9] sm:$0x3f]
    %v61 = vld [vmem:[%s0 + $0x11] sm:$0x3f]
    %v62 = vld [vmem:[%s0 + $0x19] sm:$0x3f]
    %v63 = vld [vmem:[%s0 + $0x21] sm:$0x3f]
    %v64 = vld [vmem:[%s0 + $0x29] sm:$0x3f]
    %v65 = vld [vmem:[%s0 + $0x31] sm:$0x3f]
    %v66 = vld [vmem:[%s0 + $0x39] sm:$0x3f]
    %v67 = vld [vmem:[%s0 + $0x2] sm:$0x3f]
    %v68 = vld [vmem:[%s0 + $0xa] sm:$0x3f]
    %v69 = vld [vmem:[%s0 + $0x12] sm:$0x3f]
    %v70 = vld [vmem:[%s0 + $0x1a] sm:$0x3f]
    %v71 = vld [vmem:[%s0 + $0x22] sm:$0x3f]
    %v72 = vld [vmem:[%s0 + $0x2a] sm:$0x3f]
    %v73 = vld [vmem:[%s0 + $0x32] sm:$0x3f]
    %v74 = vld [vmem:[%s0 + $0x3a] sm:$0x3f]
    %v75 = vld [vmem:[%s3] sm:$0xf]
    %s76 = sld [smem:[#allocation4]]
    %s77 = sld [smem:[#allocation2]]
    %v78 = vstv %s77
    %v79 = vmul.f32 %v51, %v78
    %v80 = vmul.f32 %v52, %v78
    %s81 = sld [smem:[#allocation2 + $0x1]]
    %v82 = vstv %s81
    %v83 = vmul.f32 %v59, %v82
    %v84 = vmul.f32 %v60, %v82
    %v85 = vadd.f32 %v79, %v83
    %v86 = vadd.f32 %v80, %v84
    %s87 = sld [smem:[#allocation2 + $0x2]]
    %v88 = vstv %s87
    %v89 = vmul.f32 %v67, %v88
    %v90 = vmul.f32 %v68, %v88
    %v91 = vadd.f32 %v85, %v89
    %v92 = vadd.f32 %v86, %v90
    %s93 = sld [smem:[#allocation2 + $0x3]]
    %v94 = vstv %s93
    %v95 = vmul.f32 %v52, %v94
    %v96 = vmul.f32 %v53, %v94
    %v97 = vadd.f32 %v91, %v95
    %v98 = vadd.f32 %v92, %v96
    %s99 = sld [smem:[#allocation2 + $0x4]]
    %v100 = vstv %s99
    %v101 = vmul.f32 %v60, %v100
    %v102 = vmul.f32 %v61, %v100
    %v103 = vadd.f32 %v97, %v101
    %v104 = vadd.f32 %v98, %v102
    %s105 = sld [smem:[#allocation2 + $0x5]]
    %v106 = vstv %s105
    %v107 = vmul.f32 %v68, %v106
    %v108 = vmul.f32 %v69, %v106
    %v109 = vadd.f32 %v103, %v107
    %v110 = vadd.f32 %v104, %v108
    %s111 = sld [smem:[#allocation2 + $0x6]]
    %v112 = vstv %s111
    %v113 = vmul.f32 %v53, %v112
    %v114 = vmul.f32 %v54, %v112
    %v115 = vadd.f32 %v109, %v113
    %v116 = vadd.f32 %v110, %v114
    %s117 = sld [smem:[#allocation2 + $0x7]]
    %v118 = vstv %s117
    %v119 = vmul.f32 %v61, %v118
    %v120 = vmul.f32 %v62, %v118
    %v121 = vadd.f32 %v115, %v119
    %v122 = vadd.f32 %v116, %v120
    %s123 = sld [smem:[#allocation2 + $0x8]]
    %v124 = vstv %s123
    %v125 = vmul.f32 %v69, %v124
    %v126 = vmul.f32 %v70, %v124
    %v127 = vadd.f32 %v121, %v125
    %v128 = vadd.f32 %v122, %v126
    %v129 = vmax.f32 %v127, %v128
    %v130 = vstv %s76
    %v131 = vadd.f32 %v129, %v130
    %v132 = vmax.f32 %v131, 0.0
    %v134 = vrot.slane %v132, 1
    %v136 = vmax.f32 %v132, %v134
    %v137 = vperm.slane %v136, 0
    %139 = vset.pattern.permute.xlu0 0
    %140 = vperm.xlu0 %139, %v75
    %v141 = vpop.permute.xlu0 %140
    %v143 = vmul.f32 %v137, %v141
    %v144 = vadd.f32 %v143, 0.0
    %v145 = vperm.slane %v136, 2
    %146 = vset.pattern.permute.xlu0 1
    %147 = vperm.xlu0 %146, %v75
    %v148 = vpop.permute.xlu0 %147
    %v150 = vmul.f32 %v145, %v148
    %v151 = vadd.f32 %v144, %v150
    %v152 = vperm.slane %v136, 4
    %153 = vset.pattern.permute.xlu0 2
    %154 = vperm.xlu0 %153, %v75
    %v155 = vpop.permute.xlu0 %154
    %v157 = vmul.f32 %v152, %v155
    %v158 = vadd.f32 %v151, %v157
    %v159 = vmul.f32 %v53, %v78
    %v160 = vmul.f32 %v54, %v78
    %v161 = vmul.f32 %v61, %v82
    %v162 = vmul.f32 %v62, %v82
    %v163 = vadd.f32 %v159, %v161
    %v164 = vadd.f32 %v160, %v162
    %v165 = vmul.f32 %v69, %v88
    %v166 = vmul.f32 %v70, %v88
    %v167 = vadd.f32 %v163, %v165
    %v168 = vadd.f32 %v164, %v166
    %v169 = vmul.f32 %v54, %v94
    %v170 = vmul.f32 %v55, %v94
    %v171 = vadd.f32 %v167, %v169
    %v172 = vadd.f32 %v168, %v170
    %v173 = vmul.f32 %v62, %v100
    %v174 = vmul.f32 %v63, %v100
    %v175 = vadd.f32 %v171, %v173
    %v176 = vadd.f32 %v172, %v174
    %v177 = vmul.f32 %v70, %v106
    %v178 = vmul.f32 %v71, %v106
    %v179 = vadd.f32 %v175, %v177
    %v180 = vadd.f32 %v176, %v178
    %v181 = vmul.f32 %v55, %v112
    %v182 = vmul.f32 %v56, %v112
    %v183 = vadd.f32 %v179, %v181
    %v184 = vadd.f32 %v180, %v182
    %v185 = vmul.f32 %v63, %v118
    %v186 = vmul.f32 %v64, %v118
    %v187 = vadd.f32 %v183, %v185
    %v188 = vadd.f32 %v184, %v186
    %v189 = vmul.f32 %v71, %v124
    %v190 = vmul.f32 %v72, %v124
    %v191 = vadd.f32 %v187, %v189
    %v192 = vadd.f32 %v188, %v190
    %v193 = vmax.f32 %v191, %v192
    %v194 = vadd.f32 %v193, %v130
    %v195 = vmax.f32 %v194, 0.0
    %v197 = vrot.slane %v195, 1
    %v199 = vmax.f32 %v195, %v197
    %v200 = vperm.slane %v199, 0
    %201 = vset.pattern.permute.xlu0 3
    %202 = vperm.xlu0 %201, %v75
    %v203 = vpop.permute.xlu0 %202
    %v205 = vmul.f32 %v200, %v203
    %v206 = vadd.f32 %v158, %v205
    %v207 = vperm.slane %v199, 2
    %208 = vset.pattern.permute.xlu0 4
    %209 = vperm.xlu0 %208, %v75
    %v210 = vpop.permute.xlu0 %209
    %v212 = vmul.f32 %v207, %v210
    %v213 = vadd.f32 %v206, %v212
    %v214 = vperm.slane %v199, 4
    %215 = vset.pattern.permute.xlu0 5
    %216 = vperm.xlu0 %215, %v75
    %v217 = vpop.permute.xlu0 %216
    %v219 = vmul.f32 %v214, %v217
    %v220 = vadd.f32 %v213, %v219
    %v221 = vmul.f32 %v55, %v78
    %v222 = vmul.f32 %v56, %v78
    %v223 = vmul.f32 %v63, %v82
    %v224 = vmul.f32 %v64, %v82
    %v225 = vadd.f32 %v221, %v223
    %v226 = vadd.f32 %v222, %v224
    %v227 = vmul.f32 %v71, %v88
    %v228 = vmul.f32 %v72, %v88
    %v229 = vadd.f32 %v225, %v227
    %v230 = vadd.f32 %v226, %v228
    %v231 = vmul.f32 %v56, %v94
    %v232 = vmul.f32 %v57, %v94
    %v233 = vadd.f32 %v229, %v231
    %v234 = vadd.f32 %v230, %v232
    %v235 = vmul.f32 %v64, %v100
    %v236 = vmul.f32 %v65, %v100
    %v237 = vadd.f32 %v233, %v235
    %v238 = vadd.f32 %v234, %v236
    %v239 = vmul.f32 %v72, %v106
    %v240 = vmul.f32 %v73, %v106
    %v241 = vadd.f32 %v237, %v239
    %v242 = vadd.f32 %v238, %v240
    %v243 = vmul.f32 %v57, %v112
    %v244 = vmul.f32 %v58, %v112
    %v245 = vadd.f32 %v241, %v243
    %v246 = vadd.f32 %v242, %v244
    %v247 = vmul.f32 %v65, %v118
    %v248 = vmul.f32 %v66, %v118
    %v249 = vadd.f32 %v245, %v247
    %v250 = vadd.f32 %v246, %v248
    %v251 = vmul.f32 %v73, %v124
    %v252 = vmul.f32 %v74, %v124
    %v253 = vadd.f32 %v249, %v251
    %v254 = vadd.f32 %v250, %v252
    %v255 = vmax.f32 %v253, %v254
    %v256 = vadd.f32 %v255, %v130
    %v257 = vmax.f32 %v256, 0.0
    %v259 = vrot.slane %v257, 1
    %v261 = vmax.f32 %v257, %v259
    %v262 = vperm.slane %v261, 0
    %263 = vset.pattern.permute.xlu0 6
    %264 = vperm.xlu0 %263, %v75
    %v265 = vpop.permute.xlu0 %264
    %v267 = vmul.f32 %v262, %v265
    %v268 = vadd.f32 %v220, %v267
    %v269 = vperm.slane %v261, 2
    %270 = vset.pattern.permute.xlu0 7
    %271 = vperm.xlu0 %270, %v75
    %v272 = vpop.permute.xlu0 %271
    %v274 = vmul.f32 %v269, %v272
    %v275 = vadd.f32 %v268, %v274
    %v276 = vperm.slane %v261, 4
    %277 = vset.pattern.permute.xlu0 8
    %278 = vperm.xlu0 %277, %v75
    %v279 = vpop.permute.xlu0 %278
    %v281 = vmul.f32 %v276, %v279
    %v282 = vadd.f32 %v275, %v281
    %s283 = sld [smem:[#allocation4 + $0x1]]
    %s284 = sld [smem:[#allocation2 + $0x9]]
    %v285 = vstv %s284
    %v286 = vmul.f32 %v51, %v285
    %v287 = vmul.f32 %v52, %v285
    %s288 = sld [smem:[#allocation2 + $0xa]]
    %v289 = vstv %s288
    %v290 = vmul.f32 %v59, %v289
    %v291 = vmul.f32 %v60, %v289
    %v292 = vadd.f32 %v286, %v290
    %v293 = vadd.f32 %v287, %v291
    %s294 = sld [smem:[#allocation2 + $0xb]]
    %v295 = vstv %s294
    %v296 = vmul.f32 %v67, %v295
    %v297 = vmul.f32 %v68, %v295
    %v298 = vadd.f32 %v292, %v296
    %v299 = vadd.f32 %v293, %v297
    %s300 = sld [smem:[#allocation2 + $0xc]]
    %v301 = vstv %s300
    %v302 = vmul.f32 %v52, %v301
    %v303 = vmul.f32 %v53, %v301
    %v304 = vadd.f32 %v298, %v302
    %v305 = vadd.f32 %v299, %v303
    %s306 = sld [smem:[#allocation2 + $0xd]]
    %v307 = vstv %s306
    %v308 = vmul.f32 %v60, %v307
    %v309 = vmul.f32 %v61, %v307
    %v310 = vadd.f32 %v304, %v308
    %v311 = vadd.f32 %v305, %v309
    %s312 = sld [smem:[#allocation2 + $0xe]]
    %v313 = vstv %s312
    %v314 = vmul.f32 %v68, %v313
    %v315 = vmul.f32 %v69, %v313
    %v316 = vadd.f32 %v310, %v314
    %v317 = vadd.f32 %v311, %v315
    %s318 = sld [smem:[#allocation2 + $0xf]]
    %v319 = vstv %s318
    %v320 = vmul.f32 %v53, %v319
    %v321 = vmul.f32 %v54, %v319
    %v322 = vadd.f32 %v316, %v320
    %v323 = vadd.f32 %v317, %v321
    %s324 = sld [smem:[#allocation2 + $0x10]]
    %v325 = vstv %s324
    %v326 = vmul.f32 %v61, %v325
    %v327 = vmul.f32 %v62, %v325
    %v328 = vadd.f32 %v322, %v326
    %v329 = vadd.f32 %v323, %v327
    %s330 = sld [smem:[#allocation2 + $0x11]]
    %v331 = vstv %s330
    %v332 = vmul.f32 %v69, %v331
    %v333 = vmul.f32 %v70, %v331
    %v334 = vadd.f32 %v328, %v332
    %v335 = vadd.f32 %v329, %v333
    %v336 = vmax.f32 %v334, %v335
    %v337 = vstv %s283
    %v338 = vadd.f32 %v336, %v337
    %v339 = vmax.f32 %v338, 0.0
    %v341 = vrot.slane %v339, 1
    %v343 = vmax.f32 %v339, %v341
    %v344 = vperm.slane %v343, 0
    %345 = vset.pattern.permute.xlu0 9
    %346 = vperm.xlu0 %345, %v75
    %v347 = vpop.permute.xlu0 %346
    %v349 = vmul.f32 %v344, %v347
    %v350 = vadd.f32 %v282, %v349
    %v351 = vperm.slane %v343, 2
    %352 = vset.pattern.permute.xlu0 10
    %353 = vperm.xlu0 %352, %v75
    %v354 = vpop.permute.xlu0 %353
    %v356 = vmul.f32 %v351, %v354
    %v357 = vadd.f32 %v350, %v356
    %v358 = vperm.slane %v343, 4
    %359 = vset.pattern.permute.xlu0 11
    %360 = vperm.xlu0 %359, %v75
    %v361 = vpop.permute.xlu0 %360
    %v363 = vmul.f32 %v358, %v361
    %v364 = vadd.f32 %v357, %v363
    %v365 = vmul.f32 %v53, %v285
    %v366 = vmul.f32 %v54, %v285
    %v367 = vmul.f32 %v61, %v289
    %v368 = vmul.f32 %v62, %v289
    %v369 = vadd.f32 %v365, %v367
    %v370 = vadd.f32 %v366, %v368
    %v371 = vmul.f32 %v69, %v295
    %v372 = vmul.f32 %v70, %v295
    %v373 = vadd.f32 %v369, %v371
    %v374 = vadd.f32 %v370, %v372
    %v375 = vmul.f32 %v54, %v301
    %v376 = vmul.f32 %v55, %v301
    %v377 = vadd.f32 %v373, %v375
    %v378 = vadd.f32 %v374, %v376
    %v379 = vmul.f32 %v62, %v307
    %v380 = vmul.f32 %v63, %v307
    %v381 = vadd.f32 %v377, %v379
    %v382 = vadd.f32 %v378, %v380
    %v383 = vmul.f32 %v70, %v313
    %v384 = vmul.f32 %v71, %v313
    %v385 = vadd.f32 %v381, %v383
    %v386 = vadd.f32 %v382, %v384
    %v387 = vmul.f32 %v55, %v319
    %v388 = vmul.f32 %v56, %v319
    %v389 = vadd.f32 %v385, %v387
    %v390 = vadd.f32 %v386, %v388
    %v391 = vmul.f32 %v63, %v325
    %v392 = vmul.f32 %v64, %v325
    %v393 = vadd.f32 %v389, %v391
    %v394 = vadd.f32 %v390, %v392
    %v395 = vmul.f32 %v71, %v331
    %v396 = vmul.f32 %v72, %v331
    %v397 = vadd.f32 %v393, %v395
    %v398 = vadd.f32 %v394, %v396
    %v399 = vmax.f32 %v397, %v398
    %v400 = vadd.f32 %v399, %v337
    %v401 = vmax.f32 %v400, 0.0
    %v403 = vrot.slane %v401, 1
    %v405 = vmax.f32 %v401, %v403
    %v406 = vperm.slane %v405, 0
    %407 = vset.pattern.permute.xlu0 12
    %408 = vperm.xlu0 %407, %v75
    %v409 = vpop.permute.xlu0 %408
    %v411 = vmul.f32 %v406, %v409
    %v412 = vadd.f32 %v364, %v411
    %v413 = vperm.slane %v405, 2
    %414 = vset.pattern.permute.xlu0 13
    %415 = vperm.xlu0 %414, %v75
    %v416 = vpop.permute.xlu0 %415
    %v418 = vmul.f32 %v413, %v416
    %v419 = vadd.f32 %v412, %v418
    %v420 = vperm.slane %v405, 4
    %421 = vset.pattern.permute.xlu0 14
    %422 = vperm.xlu0 %421, %v75
    %v423 = vpop.permute.xlu0 %422
    %v425 = vmul.f32 %v420, %v423
    %v426 = vadd.f32 %v419, %v425
    %v427 = vmul.f32 %v55, %v285
    %v428 = vmul.f32 %v56, %v285
    %v429 = vmul.f32 %v63, %v289
    %v430 = vmul.f32 %v64, %v289
    %v431 = vadd.f32 %v427, %v429
    %v432 = vadd.f32 %v428, %v430
    %v433 = vmul.f32 %v71, %v295
    %v434 = vmul.f32 %v72, %v295
    %v435 = vadd.f32 %v431, %v433
    %v436 = vadd.f32 %v432, %v434
    %v437 = vmul.f32 %v56, %v301
    %v438 = vmul.f32 %v57, %v301
    %v439 = vadd.f32 %v435, %v437
    %v440 = vadd.f32 %v436, %v438
    %v441 = vmul.f32 %v64, %v307
    %v442 = vmul.f32 %v65, %v307
    %v443 = vadd.f32 %v439, %v441
    %v444 = vadd.f32 %v440, %v442
    %v445 = vmul.f32 %v72, %v313
    %v446 = vmul.f32 %v73, %v313
    %v447 = vadd.f32 %v443, %v445
    %v448 = vadd.f32 %v444, %v446
    %v449 = vmul.f32 %v57, %v319
    %v450 = vmul.f32 %v58, %v319
    %v451 = vadd.f32 %v447, %v449
    %v452 = vadd.f32 %v448, %v450
    %v453 = vmul.f32 %v65, %v325
    %v454 = vmul.f32 %v66, %v325
    %v455 = vadd.f32 %v451, %v453
    %v456 = vadd.f32 %v452, %v454
    %v457 = vmul.f32 %v73, %v331
    %v458 = vmul.f32 %v74, %v331
    %v459 = vadd.f32 %v455, %v457
    %v460 = vadd.f32 %v456, %v458
    %v461 = vmax.f32 %v459, %v460
    %v462 = vadd.f32 %v461, %v337
    %v463 = vmax.f32 %v462, 0.0
    %v465 = vrot.slane %v463, 1
    %v467 = vmax.f32 %v463, %v465
    %v468 = vperm.slane %v467, 0
    %469 = vset.pattern.permute.xlu0 15
    %470 = vperm.xlu0 %469, %v75
    %v471 = vpop.permute.xlu0 %470
    %v473 = vmul.f32 %v468, %v471
    %v474 = vadd.f32 %v426, %v473
    %v475 = vperm.slane %v467, 2
    %476 = vset.pattern.permute.xlu0 16
    %477 = vperm.xlu0 %476, %v75
    %v478 = vpop.permute.xlu0 %477
    %v480 = vmul.f32 %v475, %v478
    %v481 = vadd.f32 %v474, %v480
    %v482 = vperm.slane %v467, 4
    %483 = vset.pattern.permute.xlu0 17
    %484 = vperm.xlu0 %483, %v75
    %v485 = vpop.permute.xlu0 %484
    %v487 = vmul.f32 %v482, %v485
    %v488 = vadd.f32 %v481, %v487
    %s489 = sld [smem:[#allocation4 + $0x2]]
    %s490 = sld [smem:[#allocation2 + $0x12]]
    %v491 = vstv %s490
    %v492 = vmul.f32 %v51, %v491
    %v493 = vmul.f32 %v52, %v491
    %s494 = sld [smem:[#allocation2 + $0x13]]
    %v495 = vstv %s494
    %v496 = vmul.f32 %v59, %v495
    %v497 = vmul.f32 %v60, %v495
    %v498 = vadd.f32 %v492, %v496
    %v499 = vadd.f32 %v493, %v497
    %s500 = sld [smem:[#allocation2 + $0x14]]
    %v501 = vstv %s500
    %v502 = vmul.f32 %v67, %v501
    %v503 = vmul.f32 %v68, %v501
    %v504 = vadd.f32 %v498, %v502
    %v505 = vadd.f32 %v499, %v503
    %s506 = sld [smem:[#allocation2 + $0x15]]
    %v507 = vstv %s506
    %v508 = vmul.f32 %v52, %v507
    %v509 = vmul.f32 %v53, %v507
    %v510 = vadd.f32 %v504, %v508
    %v511 = vadd.f32 %v505, %v509
    %s512 = sld [smem:[#allocation2 + $0x16]]
    %v513 = vstv %s512
    %v514 = vmul.f32 %v60, %v513
    %v515 = vmul.f32 %v61, %v513
    %v516 = vadd.f32 %v510, %v514
    %v517 = vadd.f32 %v511, %v515
    %s518 = sld [smem:[#allocation2 + $0x17]]
    %v519 = vstv %s518
    %v520 = vmul.f32 %v68, %v519
    %v521 = vmul.f32 %v69, %v519
    %v522 = vadd.f32 %v516, %v520
    %v523 = vadd.f32 %v517, %v521
    %s524 = sld [smem:[#allocation2 + $0x18]]
    %v525 = vstv %s524
    %v526 = vmul.f32 %v53, %v525
    %v527 = vmul.f32 %v54, %v525
    %v528 = vadd.f32 %v522, %v526
    %v529 = vadd.f32 %v523, %v527
    %s530 = sld [smem:[#allocation2 + $0x19]]
    %v531 = vstv %s530
    %v532 = vmul.f32 %v61, %v531
    %v533 = vmul.f32 %v62, %v531
    %v534 = vadd.f32 %v528, %v532
    %v535 = vadd.f32 %v529, %v533
    %s536 = sld [smem:[#allocation2 + $0x1a]]
    %v537 = vstv %s536
    %v538 = vmul.f32 %v69, %v537
    %v539 = vmul.f32 %v70, %v537
    %v540 = vadd.f32 %v534, %v538
    %v541 = vadd.f32 %v535, %v539
    %v542 = vmax.f32 %v540, %v541
    %v543 = vstv %s489
    %v544 = vadd.f32 %v542, %v543
    %v545 = vmax.f32 %v544, 0.0
    %v547 = vrot.slane %v545, 1
    %v549 = vmax.f32 %v545, %v547
    %v550 = vperm.slane %v549, 0
    %551 = vset.pattern.permute.xlu0 18
    %552 = vperm.xlu0 %551, %v75
    %v553 = vpop.permute.xlu0 %552
    %v555 = vmul.f32 %v550, %v553
    %v556 = vadd.f32 %v488, %v555
    %v557 = vperm.slane %v549, 2
    %558 = vset.pattern.permute.xlu0 19
    %559 = vperm.xlu0 %558, %v75
    %v560 = vpop.permute.xlu0 %559
    %v562 = vmul.f32 %v557, %v560
    %v563 = vadd.f32 %v556, %v562
    %v564 = vperm.slane %v549, 4
    %565 = vset.pattern.permute.xlu0 20
    %566 = vperm.xlu0 %565, %v75
    %v567 = vpop.permute.xlu0 %566
    %v569 = vmul.f32 %v564, %v567
    %v570 = vadd.f32 %v563, %v569
    %v571 = vmul.f32 %v53, %v491
    %v572 = vmul.f32 %v54, %v491
    %v573 = vmul.f32 %v61, %v495
    %v574 = vmul.f32 %v62, %v495
    %v575 = vadd.f32 %v571, %v573
    %v576 = vadd.f32 %v572, %v574
    %v577 = vmul.f32 %v69, %v501
    %v578 = vmul.f32 %v70, %v501
    %v579 = vadd.f32 %v575, %v577
    %v580 = vadd.f32 %v576, %v578
    %v581 = vmul.f32 %v54, %v507
    %v582 = vmul.f32 %v55, %v507
    %v583 = vadd.f32 %v579, %v581
    %v584 = vadd.f32 %v580, %v582
    %v585 = vmul.f32 %v62, %v513
    %v586 = vmul.f32 %v63, %v513
    %v587 = vadd.f32 %v583, %v585
    %v588 = vadd.f32 %v584, %v586
    %v589 = vmul.f32 %v70, %v519
    %v590 = vmul.f32 %v71, %v519
    %v591 = vadd.f32 %v587, %v589
    %v592 = vadd.f32 %v588, %v590
    %v593 = vmul.f32 %v55, %v525
    %v594 = vmul.f32 %v56, %v525
    %v595 = vadd.f32 %v591, %v593
    %v596 = vadd.f32 %v592, %v594
    %v597 = vmul.f32 %v63, %v531
    %v598 = vmul.f32 %v64, %v531
    %v599 = vadd.f32 %v595, %v597
    %v600 = vadd.f32 %v596, %v598
    %v601 = vmul.f32 %v71, %v537
    %v602 = vmul.f32 %v72, %v537
    %v603 = vadd.f32 %v599, %v601
    %v604 = vadd.f32 %v600, %v602
    %v605 = vmax.f32 %v603, %v604
    %v606 = vadd.f32 %v605, %v543
    %v607 = vmax.f32 %v606, 0.0
    %v609 = vrot.slane %v607, 1
    %v611 = vmax.f32 %v607, %v609
    %v612 = vperm.slane %v611, 0
    %613 = vset.pattern.permute.xlu0 21
    %614 = vperm.xlu0 %613, %v75
    %v615 = vpop.permute.xlu0 %614
    %v617 = vmul.f32 %v612, %v615
    %v618 = vadd.f32 %v570, %v617
    %v619 = vperm.slane %v611, 2
    %620 = vset.pattern.permute.xlu0 22
    %621 = vperm.xlu0 %620, %v75
    %v622 = vpop.permute.xlu0 %621
    %v624 = vmul.f32 %v619, %v622
    %v625 = vadd.f32 %v618, %v624
    %v626 = vperm.slane %v611, 4
    %627 = vset.pattern.permute.xlu0 23
    %628 = vperm.xlu0 %627, %v75
    %v629 = vpop.permute.xlu0 %628
    %v631 = vmul.f32 %v626, %v629
    %v632 = vadd.f32 %v625, %v631
    %v633 = vmul.f32 %v55, %v491
    %v634 = vmul.f32 %v56, %v491
    %v635 = vmul.f32 %v63, %v495
    %v636 = vmul.f32 %v64, %v495
    %v637 = vadd.f32 %v633, %v635
    %v638 = vadd.f32 %v634, %v636
    %v639 = vmul.f32 %v71, %v501
    %v640 = vmul.f32 %v72, %v501
    %v641 = vadd.f32 %v637, %v639
    %v642 = vadd.f32 %v638, %v640
    %v643 = vmul.f32 %v56, %v507
    %v644 = vmul.f32 %v57, %v507
    %v645 = vadd.f32 %v641, %v643
    %v646 = vadd.f32 %v642, %v644
    %v647 = vmul.f32 %v64, %v513
    %v648 = vmul.f32 %v65, %v513
    %v649 = vadd.f32 %v645, %v647
    %v650 = vadd.f32 %v646, %v648
    %v651 = vmul.f32 %v72, %v519
    %v652 = vmul.f32 %v73, %v519
    %v653 = vadd.f32 %v649, %v651
    %v654 = vadd.f32 %v650, %v652
    %v655 = vmul.f32 %v57, %v525
    %v656 = vmul.f32 %v58, %v525
    %v657 = vadd.f32 %v653, %v655
    %v658 = vadd.f32 %v654, %v656
    %v659 = vmul.f32 %v65, %v531
    %v660 = vmul.f32 %v66, %v531
    %v661 = vadd.f32 %v657, %v659
    %v662 = vadd.f32 %v658, %v660
    %v663 = vmul.f32 %v73, %v537
    %v664 = vmul.f32 %v74, %v537
    %v665 = vadd.f32 %v661, %v663
    %v666 = vadd.f32 %v662, %v664
    %v667 = vmax.f32 %v665, %v666
    %v668 = vadd.f32 %v667, %v543
    %v669 = vmax.f32 %v668, 0.0
    %v671 = vrot.slane %v669, 1
    %v673 = vmax.f32 %v669, %v671
    %v674 = vperm.slane %v673, 0
    %675 = vset.pattern.permute.xlu0 24
    %676 = vperm.xlu0 %675, %v75
    %v677 = vpop.permute.xlu0 %676
    %v679 = vmul.f32 %v674, %v677
    %v680 = vadd.f32 %v632, %v679
    %v681 = vperm.slane %v673, 2
    %682 = vset.pattern.permute.xlu0 25
    %683 = vperm.xlu0 %682, %v75
    %v684 = vpop.permute.xlu0 %683
    %v686 = vmul.f32 %v681, %v684
    %v687 = vadd.f32 %v680, %v686
    %v688 = vperm.slane %v673, 4
    %689 = vset.pattern.permute.xlu0 26
    %690 = vperm.xlu0 %689, %v75
    %v691 = vpop.permute.xlu0 %690
    %v693 = vmul.f32 %v688, %v691
    %v694 = vadd.f32 %v687, %v693
    %s695 = sld [smem:[#allocation4 + $0x3]]
    %s696 = sld [smem:[#allocation2 + $0x1b]]
    %v697 = vstv %s696
    %v698 = vmul.f32 %v51, %v697
    %v699 = vmul.f32 %v52, %v697
    %s700 = sld [smem:[#allocation2 + $0x1c]]
    %v701 = vstv %s700
    %v702 = vmul.f32 %v59, %v701
    %v703 = vmul.f32 %v60, %v701
    %v704 = vadd.f32 %v698, %v702
    %v705 = vadd.f32 %v699, %v703
    %s706 = sld [smem:[#allocation2 + $0x1d]]
    %v707 = vstv %s706
    %v708 = vmul.f32 %v67, %v707
    %v709 = vmul.f32 %v68, %v707
    %v710 = vadd.f32 %v704, %v708
    %v711 = vadd.f32 %v705, %v709
    %s712 = sld [smem:[#allocation2 + $0x1e]]
    %v713 = vstv %s712
    %v714 = vmul.f32 %v52, %v713
    %v715 = vmul.f32 %v53, %v713
    %v716 = vadd.f32 %v710, %v714
    %v717 = vadd.f32 %v711, %v715
    %s718 = sld [smem:[#allocation2 + $0x1f]]
    %v719 = vstv %s718
    %v720 = vmul.f32 %v60, %v719
    %v721 = vmul.f32 %v61, %v719
    %v722 = vadd.f32 %v716, %v720
    %v723 = vadd.f32 %v717, %v721
    %s724 = sld [smem:[#allocation2 + $0x20]]
    %v725 = vstv %s724
    %v726 = vmul.f32 %v68, %v725
    %v727 = vmul.f32 %v69, %v725
    %v728 = vadd.f32 %v722, %v726
    %v729 = vadd.f32 %v723, %v727
    %s730 = sld [smem:[#allocation2 + $0x21]]
    %v731 = vstv %s730
    %v732 = vmul.f32 %v53, %v731
    %v733 = vmul.f32 %v54, %v731
    %v734 = vadd.f32 %v728, %v732
    %v735 = vadd.f32 %v729, %v733
    %s736 = sld [smem:[#allocation2 + $0x22]]
    %v737 = vstv %s736
    %v738 = vmul.f32 %v61, %v737
    %v739 = vmul.f32 %v62, %v737
    %v740 = vadd.f32 %v734, %v738
    %v741 = vadd.f32 %v735, %v739
    %s742 = sld [smem:[#allocation2 + $0x23]]
    %v743 = vstv %s742
    %v744 = vmul.f32 %v69, %v743
    %v745 = vmul.f32 %v70, %v743
    %v746 = vadd.f32 %v740, %v744
    %v747 = vadd.f32 %v741, %v745
    %v748 = vmax.f32 %v746, %v747
    %v749 = vstv %s695
    %v750 = vadd.f32 %v748, %v749
    %v751 = vmax.f32 %v750, 0.0
    %v753 = vrot.slane %v751, 1
    %v755 = vmax.f32 %v751, %v753
    %v756 = vperm.slane %v755, 0
    %757 = vset.pattern.permute.xlu0 27
    %758 = vperm.xlu0 %757, %v75
    %v759 = vpop.permute.xlu0 %758
    %v761 = vmul.f32 %v756, %v759
    %v762 = vadd.f32 %v694, %v761
    %v763 = vperm.slane %v755, 2
    %764 = vset.pattern.permute.xlu0 28
    %765 = vperm.xlu0 %764, %v75
    %v766 = vpop.permute.xlu0 %765
    %v768 = vmul.f32 %v763, %v766
    %v769 = vadd.f32 %v762, %v768
    %v770 = vperm.slane %v755, 4
    %771 = vset.pattern.permute.xlu0 29
    %772 = vperm.xlu0 %771, %v75
    %v773 = vpop.permute.xlu0 %772
    %v775 = vmul.f32 %v770, %v773
    %v776 = vadd.f32 %v769, %v775
    %v777 = vmul.f32 %v53, %v697
    %v778 = vmul.f32 %v54, %v697
    %v779 = vmul.f32 %v61, %v701
    %v780 = vmul.f32 %v62, %v701
    %v781 = vadd.f32 %v777, %v779
    %v782 = vadd.f32 %v778, %v780
    %v783 = vmul.f32 %v69, %v707
    %v784 = vmul.f32 %v70, %v707
    %v785 = vadd.f32 %v781, %v783
    %v786 = vadd.f32 %v782, %v784
    %v787 = vmul.f32 %v54, %v713
    %v788 = vmul.f32 %v55, %v713
    %v789 = vadd.f32 %v785, %v787
    %v790 = vadd.f32 %v786, %v788
    %v791 = vmul.f32 %v62, %v719
    %v792 = vmul.f32 %v63, %v719
    %v793 = vadd.f32 %v789, %v791
    %v794 = vadd.f32 %v790, %v792
    %v795 = vmul.f32 %v70, %v725
    %v796 = vmul.f32 %v71, %v725
    %v797 = vadd.f32 %v793, %v795
    %v798 = vadd.f32 %v794, %v796
    %v799 = vmul.f32 %v55, %v731
    %v800 = vmul.f32 %v56, %v731
    %v801 = vadd.f32 %v797, %v799
    %v802 = vadd.f32 %v798, %v800
    %v803 = vmul.f32 %v63, %v737
    %v804 = vmul.f32 %v64, %v737
    %v805 = vadd.f32 %v801, %v803
    %v806 = vadd.f32 %v802, %v804
    %v807 = vmul.f32 %v71, %v743
    %v808 = vmul.f32 %v72, %v743
    %v809 = vadd.f32 %v805, %v807
    %v810 = vadd.f32 %v806, %v808
    %v811 = vmax.f32 %v809, %v810
    %v812 = vadd.f32 %v811, %v749
    %v813 = vmax.f32 %v812, 0.0
    %v815 = vrot.slane %v813, 1
    %v817 = vmax.f32 %v813, %v815
    %v818 = vperm.slane %v817, 0
    %819 = vset.pattern.permute.xlu0 30
    %820 = vperm.xlu0 %819, %v75
    %v821 = vpop.permute.xlu0 %820
    %v823 = vmul.f32 %v818, %v821
    %v824 = vadd.f32 %v776, %v823
    %v825 = vperm.slane %v817, 2
    %826 = vset.pattern.permute.xlu0 31
    %827 = vperm.xlu0 %826, %v75
    %v828 = vpop.permute.xlu0 %827
    %v830 = vmul.f32 %v825, %v828
    %v831 = vadd.f32 %v824, %v830
    %v832 = vperm.slane %v817, 4
    %833 = vset.pattern.permute.xlu0 32
    %834 = vperm.xlu0 %833, %v75
    %v835 = vpop.permute.xlu0 %834
    %v837 = vmul.f32 %v832, %v835
    %v838 = vadd.f32 %v831, %v837
    %v839 = vmul.f32 %v55, %v697
    %v840 = vmul.f32 %v56, %v697
    %v841 = vmul.f32 %v63, %v701
    %v842 = vmul.f32 %v64, %v701
    %v843 = vadd.f32 %v839, %v841
    %v844 = vadd.f32 %v840, %v842
    %v845 = vmul.f32 %v71, %v707
    %v846 = vmul.f32 %v72, %v707
    %v847 = vadd.f32 %v843, %v845
    %v848 = vadd.f32 %v844, %v846
    %v849 = vmul.f32 %v56, %v713
    %v850 = vmul.f32 %v57, %v713
    %v851 = vadd.f32 %v847, %v849
    %v852 = vadd.f32 %v848, %v850
    %v853 = vmul.f32 %v64, %v719
    %v854 = vmul.f32 %v65, %v719
    %v855 = vadd.f32 %v851, %v853
    %v856 = vadd.f32 %v852, %v854
    %v857 = vmul.f32 %v72, %v725
    %v858 = vmul.f32 %v73, %v725
    %v859 = vadd.f32 %v855, %v857
    %v860 = vadd.f32 %v856, %v858
    %v861 = vmul.f32 %v57, %v731
    %v862 = vmul.f32 %v58, %v731
    %v863 = vadd.f32 %v859, %v861
    %v864 = vadd.f32 %v860, %v862
    %v865 = vmul.f32 %v65, %v737
    %v866 = vmul.f32 %v66, %v737
    %v867 = vadd.f32 %v863, %v865
    %v868 = vadd.f32 %v864, %v866
    %v869 = vmul.f32 %v73, %v743
    %v870 = vmul.f32 %v74, %v743
    %v871 = vadd.f32 %v867, %v869
    %v872 = vadd.f32 %v868, %v870
    %v873 = vmax.f32 %v871, %v872
    %v874 = vadd.f32 %v873, %v749
    %v875 = vmax.f32 %v874, 0.0
    %v877 = vrot.slane %v875, 1
    %v879 = vmax.f32 %v875, %v877
    %v880 = vperm.slane %v879, 0
    %881 = vset.pattern.permute.xlu0 33
    %882 = vperm.xlu0 %881, %v75
    %v883 = vpop.permute.xlu0 %882
    %v885 = vmul.f32 %v880, %v883
    %v886 = vadd.f32 %v838, %v885
    %v887 = vperm.slane %v879, 2
    %888 = vset.pattern.permute.xlu0 34
    %889 = vperm.xlu0 %888, %v75
    %v890 = vpop.permute.xlu0 %889
    %v892 = vmul.f32 %v887, %v890
    %v893 = vadd.f32 %v886, %v892
    %v894 = vperm.slane %v879, 4
    %895 = vset.pattern.permute.xlu0 35
    %896 = vperm.xlu0 %895, %v75
    %v897 = vpop.permute.xlu0 %896
    %v899 = vmul.f32 %v894, %v897
    %v900 = vadd.f32 %v893, %v899
    %s901 = sld [smem:[#allocation4 + $0x4]]
    %s902 = sld [smem:[#allocation2 + $0x24]]
    %v903 = vstv %s902
    %v904 = vmul.f32 %v51, %v903
    %v905 = vmul.f32 %v52, %v903
    %s906 = sld [smem:[#allocation2 + $0x25]]
    %v907 = vstv %s906
    %v908 = vmul.f32 %v59, %v907
    %v909 = vmul.f32 %v60, %v907
    %v910 = vadd.f32 %v904, %v908
    %v911 = vadd.f32 %v905, %v909
    %s912 = sld [smem:[#allocation2 + $0x26]]
    %v913 = vstv %s912
    %v914 = vmul.f32 %v67, %v913
    %v915 = vmul.f32 %v68, %v913
    %v916 = vadd.f32 %v910, %v914
    %v917 = vadd.f32 %v911, %v915
    %s918 = sld [smem:[#allocation2 + $0x27]]
    %v919 = vstv %s918
    %v920 = vmul.f32 %v52, %v919
    %v921 = vmul.f32 %v53, %v919
    %v922 = vadd.f32 %v916, %v920
    %v923 = vadd.f32 %v917, %v921
    %s924 = sld [smem:[#allocation2 + $0x28]]
    %v925 = vstv %s924
    %v926 = vmul.f32 %v60, %v925
    %v927 = vmul.f32 %v61, %v925
    %v928 = vadd.f32 %v922, %v926
    %v929 = vadd.f32 %v923, %v927
    %s930 = sld [smem:[#allocation2 + $0x29]]
    %v931 = vstv %s930
    %v932 = vmul.f32 %v68, %v931
    %v933 = vmul.f32 %v69, %v931
    %v934 = vadd.f32 %v928, %v932
    %v935 = vadd.f32 %v929, %v933
    %s936 = sld [smem:[#allocation2 + $0x2a]]
    %v937 = vstv %s936
    %v938 = vmul.f32 %v53, %v937
    %v939 = vmul.f32 %v54, %v937
    %v940 = vadd.f32 %v934, %v938
    %v941 = vadd.f32 %v935, %v939
    %s942 = sld [smem:[#allocation2 + $0x2b]]
    %v943 = vstv %s942
    %v944 = vmul.f32 %v61, %v943
    %v945 = vmul.f32 %v62, %v943
    %v946 = vadd.f32 %v940, %v944
    %v947 = vadd.f32 %v941, %v945
    %s948 = sld [smem:[#allocation2 + $0x2c]]
    %v949 = vstv %s948
    %v950 = vmul.f32 %v69, %v949
    %v951 = vmul.f32 %v70, %v949
    %v952 = vadd.f32 %v946, %v950
    %v953 = vadd.f32 %v947, %v951
    %v954 = vmax.f32 %v952, %v953
    %v955 = vstv %s901
    %v956 = vadd.f32 %v954, %v955
    %v957 = vmax.f32 %v956, 0.0
    %v959 = vrot.slane %v957, 1
    %v961 = vmax.f32 %v957, %v959
    %v962 = vperm.slane %v961, 0
    %963 = vset.pattern.permute.xlu0 36
    %964 = vperm.xlu0 %963, %v75
    %v965 = vpop.permute.xlu0 %964
    %v967 = vmul.f32 %v962, %v965
    %v968 = vadd.f32 %v900, %v967
    %v969 = vperm.slane %v961, 2
    %970 = vset.pattern.permute.xlu0 37
    %971 = vperm.xlu0 %970, %v75
    %v972 = vpop.permute.xlu0 %971
    %v974 = vmul.f32 %v969, %v972
    %v975 = vadd.f32 %v968, %v974
    %v976 = vperm.slane %v961, 4
    %977 = vset.pattern.permute.xlu0 38
    %978 = vperm.xlu0 %977, %v75
    %v979 = vpop.permute.xlu0 %978
    %v981 = vmul.f32 %v976, %v979
    %v982 = vadd.f32 %v975, %v981
    %v983 = vmul.f32 %v53, %v903
    %v984 = vmul.f32 %v54, %v903
    %v985 = vmul.f32 %v61, %v907
    %v986 = vmul.f32 %v62, %v907
    %v987 = vadd.f32 %v983, %v985
    %v988 = vadd.f32 %v984, %v986
    %v989 = vmul.f32 %v69, %v913
    %v990 = vmul.f32 %v70, %v913
    %v991 = vadd.f32 %v987, %v989
    %v992 = vadd.f32 %v988, %v990
    %v993 = vmul.f32 %v54, %v919
    %v994 = vmul.f32 %v55, %v919
    %v995 = vadd.f32 %v991, %v993
    %v996 = vadd.f32 %v992, %v994
    %v997 = vmul.f32 %v62, %v925
    %v998 = vmul.f32 %v63, %v925
    %v999 = vadd.f32 %v995, %v997
    %v1000 = vadd.f32 %v996, %v998
    %v1001 = vmul.f32 %v70, %v931
    %v1002 = vmul.f32 %v71, %v931
    %v1003 = vadd.f32 %v999, %v1001
    %v1004 = vadd.f32 %v1000, %v1002
    %v1005 = vmul.f32 %v55, %v937
    %v1006 = vmul.f32 %v56, %v937
    %v1007 = vadd.f32 %v1003, %v1005
    %v1008 = vadd.f32 %v1004, %v1006
    %v1009 = vmul.f32 %v63, %v943
    %v1010 = vmul.f32 %v64, %v943
    %v1011 = vadd.f32 %v1007, %v1009
    %v1012 = vadd.f32 %v1008, %v1010
    %v1013 = vmul.f32 %v71, %v949
    %v1014 = vmul.f32 %v72, %v949
    %v1015 = vadd.f32 %v1011, %v1013
    %v1016 = vadd.f32 %v1012, %v1014
    %v1017 = vmax.f32 %v1015, %v1016
    %v1018 = vadd.f32 %v1017, %v955
    %v1019 = vmax.f32 %v1018, 0.0
    %v1021 = vrot.slane %v1019, 1
    %v1023 = vmax.f32 %v1019, %v1021
    %v1024 = vperm.slane %v1023, 0
    %1025 = vset.pattern.permute.xlu0 39
    %1026 = vperm.xlu0 %1025, %v75
    %v1027 = vpop.permute.xlu0 %1026
    %v1029 = vmul.f32 %v1024, %v1027
    %v1030 = vadd.f32 %v982, %v1029
    %v1031 = vperm.slane %v1023, 2
    %1032 = vset.pattern.permute.xlu0 40
    %1033 = vperm.xlu0 %1032, %v75
    %v1034 = vpop.permute.xlu0 %1033
    %v1036 = vmul.f32 %v1031, %v1034
    %v1037 = vadd.f32 %v1030, %v1036
    %v1038 = vperm.slane %v1023, 4
    %1039 = vset.pattern.permute.xlu0 41
    %1040 = vperm.xlu0 %1039, %v75
    %v1041 = vpop.permute.xlu0 %1040
    %v1043 = vmul.f32 %v1038, %v1041
    %v1044 = vadd.f32 %v1037, %v1043
    %v1045 = vmul.f32 %v55, %v903
    %v1046 = vmul.f32 %v56, %v903
    %v1047 = vmul.f32 %v63, %v907
    %v1048 = vmul.f32 %v64, %v907
    %v1049 = vadd.f32 %v1045, %v1047
    %v1050 = vadd.f32 %v1046, %v1048
    %v1051 = vmul.f32 %v71, %v913
    %v1052 = vmul.f32 %v72, %v913
    %v1053 = vadd.f32 %v1049, %v1051
    %v1054 = vadd.f32 %v1050, %v1052
    %v1055 = vmul.f32 %v56, %v919
    %v1056 = vmul.f32 %v57, %v919
    %v1057 = vadd.f32 %v1053, %v1055
    %v1058 = vadd.f32 %v1054, %v1056
    %v1059 = vmul.f32 %v64, %v925
    %v1060 = vmul.f32 %v65, %v925
    %v1061 = vadd.f32 %v1057, %v1059
    %v1062 = vadd.f32 %v1058, %v1060
    %v1063 = vmul.f32 %v72, %v931
    %v1064 = vmul.f32 %v73, %v931
    %v1065 = vadd.f32 %v1061, %v1063
    %v1066 = vadd.f32 %v1062, %v1064
    %v1067 = vmul.f32 %v57, %v937
    %v1068 = vmul.f32 %v58, %v937
    %v1069 = vadd.f32 %v1065, %v1067
    %v1070 = vadd.f32 %v1066, %v1068
    %v1071 = vmul.f32 %v65, %v943
    %v1072 = vmul.f32 %v66, %v943
    %v1073 = vadd.f32 %v1069, %v1071
    %v1074 = vadd.f32 %v1070, %v1072
    %v1075 = vmul.f32 %v73, %v949
    %v1076 = vmul.f32 %v74, %v949
    %v1077 = vadd.f32 %v1073, %v1075
    %v1078 = vadd.f32 %v1074, %v1076
    %v1079 = vmax.f32 %v1077, %v1078
    %v1080 = vadd.f32 %v1079, %v955
    %v1081 = vmax.f32 %v1080, 0.0
    %v1083 = vrot.slane %v1081, 1
    %v1085 = vmax.f32 %v1081, %v1083
    %v1086 = vperm.slane %v1085, 0
    %1087 = vset.pattern.permute.xlu0 42
    %1088 = vperm.xlu0 %1087, %v75
    %v1089 = vpop.permute.xlu0 %1088
    %v1091 = vmul.f32 %v1086, %v1089
    %v1092 = vadd.f32 %v1044, %v1091
    %v1093 = vperm.slane %v1085, 2
    %1094 = vset.pattern.permute.xlu0 43
    %1095 = vperm.xlu0 %1094, %v75
    %v1096 = vpop.permute.xlu0 %1095
    %v1098 = vmul.f32 %v1093, %v1096
    %v1099 = vadd.f32 %v1092, %v1098
    %v1100 = vperm.slane %v1085, 4
    %1101 = vset.pattern.permute.xlu0 44
    %1102 = vperm.xlu0 %1101, %v75
    %v1103 = vpop.permute.xlu0 %1102
    %v1105 = vmul.f32 %v1100, %v1103
    %v1106 = vadd.f32 %v1099, %v1105
    %s1107 = sld [smem:[#allocation4 + $0x5]]
    %s1108 = sld [smem:[#allocation2 + $0x2d]]
    %v1109 = vstv %s1108
    %v1110 = vmul.f32 %v51, %v1109
    %v1111 = vmul.f32 %v52, %v1109
    %s1112 = sld [smem:[#allocation2 + $0x2e]]
    %v1113 = vstv %s1112
    %v1114 = vmul.f32 %v59, %v1113
    %v1115 = vmul.f32 %v60, %v1113
    %v1116 = vadd.f32 %v1110, %v1114
    %v1117 = vadd.f32 %v1111, %v1115
    %s1118 = sld [smem:[#allocation2 + $0x2f]]
    %v1119 = vstv %s1118
    %v1120 = vmul.f32 %v67, %v1119
    %v1121 = vmul.f32 %v68, %v1119
    %v1122 = vadd.f32 %v1116, %v1120
    %v1123 = vadd.f32 %v1117, %v1121
    %s1124 = sld [smem:[#allocation2 + $0x30]]
    %v1125 = vstv %s1124
    %v1126 = vmul.f32 %v52, %v1125
    %v1127 = vmul.f32 %v53, %v1125
    %v1128 = vadd.f32 %v1122, %v1126
    %v1129 = vadd.f32 %v1123, %v1127
    %s1130 = sld [smem:[#allocation2 + $0x31]]
    %v1131 = vstv %s1130
    %v1132 = vmul.f32 %v60, %v1131
    %v1133 = vmul.f32 %v61, %v1131
    %v1134 = vadd.f32 %v1128, %v1132
    %v1135 = vadd.f32 %v1129, %v1133
    %s1136 = sld [smem:[#allocation2 + $0x32]]
    %v1137 = vstv %s1136
    %v1138 = vmul.f32 %v68, %v1137
    %v1139 = vmul.f32 %v69, %v1137
    %v1140 = vadd.f32 %v1134, %v1138
    %v1141 = vadd.f32 %v1135, %v1139
    %s1142 = sld [smem:[#allocation2 + $0x33]]
    %v1143 = vstv %s1142
    %v1144 = vmul.f32 %v53, %v1143
    %v1145 = vmul.f32 %v54, %v1143
    %v1146 = vadd.f32 %v1140, %v1144
    %v1147 = vadd.f32 %v1141, %v1145
    %s1148 = sld [smem:[#allocation2 + $0x34]]
    %v1149 = vstv %s1148
    %v1150 = vmul.f32 %v61, %v1149
    %v1151 = vmul.f32 %v62, %v1149
    %v1152 = vadd.f32 %v1146, %v1150
    %v1153 = vadd.f32 %v1147, %v1151
    %s1154 = sld [smem:[#allocation2 + $0x35]]
    %v1155 = vstv %s1154
    %v1156 = vmul.f32 %v69, %v1155
    %v1157 = vmul.f32 %v70, %v1155
    %v1158 = vadd.f32 %v1152, %v1156
    %v1159 = vadd.f32 %v1153, %v1157
    %v1160 = vmax.f32 %v1158, %v1159
    %v1161 = vstv %s1107
    %v1162 = vadd.f32 %v1160, %v1161
    %v1163 = vmax.f32 %v1162, 0.0
    %v1165 = vrot.slane %v1163, 1
    %v1167 = vmax.f32 %v1163, %v1165
    %v1168 = vperm.slane %v1167, 0
    %1169 = vset.pattern.permute.xlu0 45
    %1170 = vperm.xlu0 %1169, %v75
    %v1171 = vpop.permute.xlu0 %1170
    %v1173 = vmul.f32 %v1168, %v1171
    %v1174 = vadd.f32 %v1106, %v1173
    %v1175 = vperm.slane %v1167, 2
    %1176 = vset.pattern.permute.xlu0 46
    %1177 = vperm.xlu0 %1176, %v75
    %v1178 = vpop.permute.xlu0 %1177
    %v1180 = vmul.f32 %v1175, %v1178
    %v1181 = vadd.f32 %v1174, %v1180
    %v1182 = vperm.slane %v1167, 4
    %1183 = vset.pattern.permute.xlu0 47
    %1184 = vperm.xlu0 %1183, %v75
    %v1185 = vpop.permute.xlu0 %1184
    %v1187 = vmul.f32 %v1182, %v1185
    %v1188 = vadd.f32 %v1181, %v1187
    %v1189 = vmul.f32 %v53, %v1109
    %v1190 = vmul.f32 %v54, %v1109
    %v1191 = vmul.f32 %v61, %v1113
    %v1192 = vmul.f32 %v62, %v1113
    %v1193 = vadd.f32 %v1189, %v1191
    %v1194 = vadd.f32 %v1190, %v1192
    %v1195 = vmul.f32 %v69, %v1119
    %v1196 = vmul.f32 %v70, %v1119
    %v1197 = vadd.f32 %v1193, %v1195
    %v1198 = vadd.f32 %v1194, %v1196
    %v1199 = vmul.f32 %v54, %v1125
    %v1200 = vmul.f32 %v55, %v1125
    %v1201 = vadd.f32 %v1197, %v1199
    %v1202 = vadd.f32 %v1198, %v1200
    %v1203 = vmul.f32 %v62, %v1131
    %v1204 = vmul.f32 %v63, %v1131
    %v1205 = vadd.f32 %v1201, %v1203
    %v1206 = vadd.f32 %v1202, %v1204
    %v1207 = vmul.f32 %v70, %v1137
    %v1208 = vmul.f32 %v71, %v1137
    %v1209 = vadd.f32 %v1205, %v1207
    %v1210 = vadd.f32 %v1206, %v1208
    %v1211 = vmul.f32 %v55, %v1143
    %v1212 = vmul.f32 %v56, %v1143
    %v1213 = vadd.f32 %v1209, %v1211
    %v1214 = vadd.f32 %v1210, %v1212
    %v1215 = vmul.f32 %v63, %v1149
    %v1216 = vmul.f32 %v64, %v1149
    %v1217 = vadd.f32 %v1213, %v1215
    %v1218 = vadd.f32 %v1214, %v1216
    %v1219 = vmul.f32 %v71, %v1155
    %v1220 = vmul.f32 %v72, %v1155
    %v1221 = vadd.f32 %v1217, %v1219
    %v1222 = vadd.f32 %v1218, %v1220
    %v1223 = vmax.f32 %v1221, %v1222
    %v1224 = vadd.f32 %v1223, %v1161
    %v1225 = vmax.f32 %v1224, 0.0
    %v1227 = vrot.slane %v1225, 1
    %v1229 = vmax.f32 %v1225, %v1227
    %v1230 = vperm.slane %v1229, 0
    %1231 = vset.pattern.permute.xlu0 48
    %1232 = vperm.xlu0 %1231, %v75
    %v1233 = vpop.permute.xlu0 %1232
    %v1235 = vmul.f32 %v1230, %v1233
    %v1236 = vadd.f32 %v1188, %v1235
    %v1237 = vperm.slane %v1229, 2
    %1238 = vset.pattern.permute.xlu0 49
    %1239 = vperm.xlu0 %1238, %v75
    %v1240 = vpop.permute.xlu0 %1239
    %v1242 = vmul.f32 %v1237, %v1240
    %v1243 = vadd.f32 %v1236, %v1242
    %v1244 = vperm.slane %v1229, 4
    %1245 = vset.pattern.permute.xlu0 50
    %1246 = vperm.xlu0 %1245, %v75
    %v1247 = vpop.permute.xlu0 %1246
    %v1249 = vmul.f32 %v1244, %v1247
    %v1250 = vadd.f32 %v1243, %v1249
    %v1251 = vmul.f32 %v55, %v1109
    %v1252 = vmul.f32 %v56, %v1109
    %v1253 = vmul.f32 %v63, %v1113
    %v1254 = vmul.f32 %v64, %v1113
    %v1255 = vadd.f32 %v1251, %v1253
    %v1256 = vadd.f32 %v1252, %v1254
    %v1257 = vmul.f32 %v71, %v1119
    %v1258 = vmul.f32 %v72, %v1119
    %v1259 = vadd.f32 %v1255, %v1257
    %v1260 = vadd.f32 %v1256, %v1258
    %v1261 = vmul.f32 %v56, %v1125
    %v1262 = vmul.f32 %v57, %v1125
    %v1263 = vadd.f32 %v1259, %v1261
    %v1264 = vadd.f32 %v1260, %v1262
    %v1265 = vmul.f32 %v64, %v1131
    %v1266 = vmul.f32 %v65, %v1131
    %v1267 = vadd.f32 %v1263, %v1265
    %v1268 = vadd.f32 %v1264, %v1266
    %v1269 = vmul.f32 %v72, %v1137
    %v1270 = vmul.f32 %v73, %v1137
    %v1271 = vadd.f32 %v1267, %v1269
    %v1272 = vadd.f32 %v1268, %v1270
    %v1273 = vmul.f32 %v57, %v1143
    %v1274 = vmul.f32 %v58, %v1143
    %v1275 = vadd.f32 %v1271, %v1273
    %v1276 = vadd.f32 %v1272, %v1274
    %v1277 = vmul.f32 %v65, %v1149
    %v1278 = vmul.f32 %v66, %v1149
    %v1279 = vadd.f32 %v1275, %v1277
    %v1280 = vadd.f32 %v1276, %v1278
    %v1281 = vmul.f32 %v73, %v1155
    %v1282 = vmul.f32 %v74, %v1155
    %v1283 = vadd.f32 %v1279, %v1281
    %v1284 = vadd.f32 %v1280, %v1282
    %v1285 = vmax.f32 %v1283, %v1284
    %v1286 = vadd.f32 %v1285, %v1161
    %v1287 = vmax.f32 %v1286, 0.0
    %v1289 = vrot.slane %v1287, 1
    %v1291 = vmax.f32 %v1287, %v1289
    %v1292 = vperm.slane %v1291, 0
    %1293 = vset.pattern.permute.xlu0 51
    %1294 = vperm.xlu0 %1293, %v75
    %v1295 = vpop.permute.xlu0 %1294
    %v1297 = vmul.f32 %v1292, %v1295
    %v1298 = vadd.f32 %v1250, %v1297
    %v1299 = vperm.slane %v1291, 2
    %1300 = vset.pattern.permute.xlu0 52
    %1301 = vperm.xlu0 %1300, %v75
    %v1302 = vpop.permute.xlu0 %1301
    %v1304 = vmul.f32 %v1299, %v1302
    %v1305 = vadd.f32 %v1298, %v1304
    %v1306 = vperm.slane %v1291, 4
    %1307 = vset.pattern.permute.xlu0 53
    %1308 = vperm.xlu0 %1307, %v75
    %v1309 = vpop.permute.xlu0 %1308
    %v1311 = vmul.f32 %v1306, %v1309
    %v1312 = vadd.f32 %v1305, %v1311
    %s1313 = sld [smem:[#allocation4 + $0x6]]
    %s1314 = sld [smem:[#allocation2 + $0x36]]
    %v1315 = vstv %s1314
    %v1316 = vmul.f32 %v51, %v1315
    %v1317 = vmul.f32 %v52, %v1315
    %s1318 = sld [smem:[#allocation2 + $0x37]]
    %v1319 = vstv %s1318
    %v1320 = vmul.f32 %v59, %v1319
    %v1321 = vmul.f32 %v60, %v1319
    %v1322 = vadd.f32 %v1316, %v1320
    %v1323 = vadd.f32 %v1317, %v1321
    %s1324 = sld [smem:[#allocation2 + $0x38]]
    %v1325 = vstv %s1324
    %v1326 = vmul.f32 %v67, %v1325
    %v1327 = vmul.f32 %v68, %v1325
    %v1328 = vadd.f32 %v1322, %v1326
    %v1329 = vadd.f32 %v1323, %v1327
    %s1330 = sld [smem:[#allocation2 + $0x39]]
    %v1331 = vstv %s1330
    %v1332 = vmul.f32 %v52, %v1331
    %v1333 = vmul.f32 %v53, %v1331
    %v1334 = vadd.f32 %v1328, %v1332
    %v1335 = vadd.f32 %v1329, %v1333
    %s1336 = sld [smem:[#allocation2 + $0x3a]]
    %v1337 = vstv %s1336
    %v1338 = vmul.f32 %v60, %v1337
    %v1339 = vmul.f32 %v61, %v1337
    %v1340 = vadd.f32 %v1334, %v1338
    %v1341 = vadd.f32 %v1335, %v1339
    %s1342 = sld [smem:[#allocation2 + $0x3b]]
    %v1343 = vstv %s1342
    %v1344 = vmul.f32 %v68, %v1343
    %v1345 = vmul.f32 %v69, %v1343
    %v1346 = vadd.f32 %v1340, %v1344
    %v1347 = vadd.f32 %v1341, %v1345
    %s1348 = sld [smem:[#allocation2 + $0x3c]]
    %v1349 = vstv %s1348
    %v1350 = vmul.f32 %v53, %v1349
    %v1351 = vmul.f32 %v54, %v1349
    %v1352 = vadd.f32 %v1346, %v1350
    %v1353 = vadd.f32 %v1347, %v1351
    %s1354 = sld [smem:[#allocation2 + $0x3d]]
    %v1355 = vstv %s1354
    %v1356 = vmul.f32 %v61, %v1355
    %v1357 = vmul.f32 %v62, %v1355
    %v1358 = vadd.f32 %v1352, %v1356
    %v1359 = vadd.f32 %v1353, %v1357
    %s1360 = sld [smem:[#allocation2 + $0x3e]]
    %v1361 = vstv %s1360
    %v1362 = vmul.f32 %v69, %v1361
    %v1363 = vmul.f32 %v70, %v1361
    %v1364 = vadd.f32 %v1358, %v1362
    %v1365 = vadd.f32 %v1359, %v1363
    %v1366 = vmax.f32 %v1364, %v1365
    %v1367 = vstv %s1313
    %v1368 = vadd.f32 %v1366, %v1367
    %v1369 = vmax.f32 %v1368, 0.0
    %v1371 = vrot.slane %v1369, 1
    %v1373 = vmax.f32 %v1369, %v1371
    %v1374 = vperm.slane %v1373, 0
    %1375 = vset.pattern.permute.xlu0 54
    %1376 = vperm.xlu0 %1375, %v75
    %v1377 = vpop.permute.xlu0 %1376
    %v1379 = vmul.f32 %v1374, %v1377
    %v1380 = vadd.f32 %v1312, %v1379
    %v1381 = vperm.slane %v1373, 2
    %1382 = vset.pattern.permute.xlu0 55
    %1383 = vperm.xlu0 %1382, %v75
    %v1384 = vpop.permute.xlu0 %1383
    %v1386 = vmul.f32 %v1381, %v1384
    %v1387 = vadd.f32 %v1380, %v1386
    %v1388 = vperm.slane %v1373, 4
    %1389 = vset.pattern.permute.xlu0 56
    %1390 = vperm.xlu0 %1389, %v75
    %v1391 = vpop.permute.xlu0 %1390
    %v1393 = vmul.f32 %v1388, %v1391
    %v1394 = vadd.f32 %v1387, %v1393
    %v1395 = vmul.f32 %v53, %v1315
    %v1396 = vmul.f32 %v54, %v1315
    %v1397 = vmul.f32 %v61, %v1319
    %v1398 = vmul.f32 %v62, %v1319
    %v1399 = vadd.f32 %v1395, %v1397
    %v1400 = vadd.f32 %v1396, %v1398
    %v1401 = vmul.f32 %v69, %v1325
    %v1402 = vmul.f32 %v70, %v1325
    %v1403 = vadd.f32 %v1399, %v1401
    %v1404 = vadd.f32 %v1400, %v1402
    %v1405 = vmul.f32 %v54, %v1331
    %v1406 = vmul.f32 %v55, %v1331
    %v1407 = vadd.f32 %v1403, %v1405
    %v1408 = vadd.f32 %v1404, %v1406
    %v1409 = vmul.f32 %v62, %v1337
    %v1410 = vmul.f32 %v63, %v1337
    %v1411 = vadd.f32 %v1407, %v1409
    %v1412 = vadd.f32 %v1408, %v1410
    %v1413 = vmul.f32 %v70, %v1343
    %v1414 = vmul.f32 %v71, %v1343
    %v1415 = vadd.f32 %v1411, %v1413
    %v1416 = vadd.f32 %v1412, %v1414
    %v1417 = vmul.f32 %v55, %v1349
    %v1418 = vmul.f32 %v56, %v1349
    %v1419 = vadd.f32 %v1415, %v1417
    %v1420 = vadd.f32 %v1416, %v1418
    %v1421 = vmul.f32 %v63, %v1355
    %v1422 = vmul.f32 %v64, %v1355
    %v1423 = vadd.f32 %v1419, %v1421
    %v1424 = vadd.f32 %v1420, %v1422
    %v1425 = vmul.f32 %v71, %v1361
    %v1426 = vmul.f32 %v72, %v1361
    %v1427 = vadd.f32 %v1423, %v1425
    %v1428 = vadd.f32 %v1424, %v1426
    %v1429 = vmax.f32 %v1427, %v1428
    %v1430 = vadd.f32 %v1429, %v1367
    %v1431 = vmax.f32 %v1430, 0.0
    %v1433 = vrot.slane %v1431, 1
    %v1435 = vmax.f32 %v1431, %v1433
    %v1436 = vperm.slane %v1435, 0
    %1437 = vset.pattern.permute.xlu0 57
    %1438 = vperm.xlu0 %1437, %v75
    %v1439 = vpop.permute.xlu0 %1438
    %v1441 = vmul.f32 %v1436, %v1439
    %v1442 = vadd.f32 %v1394, %v1441
    %v1443 = vperm.slane %v1435, 2
    %1444 = vset.pattern.permute.xlu0 58
    %1445 = vperm.xlu0 %1444, %v75
    %v1446 = vpop.permute.xlu0 %1445
    %v1448 = vmul.f32 %v1443, %v1446
    %v1449 = vadd.f32 %v1442, %v1448
    %v1450 = vperm.slane %v1435, 4
    %1451 = vset.pattern.permute.xlu0 59
    %1452 = vperm.xlu0 %1451, %v75
    %v1453 = vpop.permute.xlu0 %1452
    %v1455 = vmul.f32 %v1450, %v1453
    %v1456 = vadd.f32 %v1449, %v1455
    %v1457 = vmul.f32 %v55, %v1315
    %v1458 = vmul.f32 %v56, %v1315
    %v1459 = vmul.f32 %v63, %v1319
    %v1460 = vmul.f32 %v64, %v1319
    %v1461 = vadd.f32 %v1457, %v1459
    %v1462 = vadd.f32 %v1458, %v1460
    %v1463 = vmul.f32 %v71, %v1325
    %v1464 = vmul.f32 %v72, %v1325
    %v1465 = vadd.f32 %v1461, %v1463
    %v1466 = vadd.f32 %v1462, %v1464
    %v1467 = vmul.f32 %v56, %v1331
    %v1468 = vmul.f32 %v57, %v1331
    %v1469 = vadd.f32 %v1465, %v1467
    %v1470 = vadd.f32 %v1466, %v1468
    %v1471 = vmul.f32 %v64, %v1337
    %v1472 = vmul.f32 %v65, %v1337
    %v1473 = vadd.f32 %v1469, %v1471
    %v1474 = vadd.f32 %v1470, %v1472
    %v1475 = vmul.f32 %v72, %v1343
    %v1476 = vmul.f32 %v73, %v1343
    %v1477 = vadd.f32 %v1473, %v1475
    %v1478 = vadd.f32 %v1474, %v1476
    %v1479 = vmul.f32 %v57, %v1349
    %v1480 = vmul.f32 %v58, %v1349
    %v1481 = vadd.f32 %v1477, %v1479
    %v1482 = vadd.f32 %v1478, %v1480
    %v1483 = vmul.f32 %v65, %v1355
    %v1484 = vmul.f32 %v66, %v1355
    %v1485 = vadd.f32 %v1481, %v1483
    %v1486 = vadd.f32 %v1482, %v1484
    %v1487 = vmul.f32 %v73, %v1361
    %v1488 = vmul.f32 %v74, %v1361
    %v1489 = vadd.f32 %v1485, %v1487
    %v1490 = vadd.f32 %v1486, %v1488
    %v1491 = vmax.f32 %v1489, %v1490
    %v1492 = vadd.f32 %v1491, %v1367
    %v1493 = vmax.f32 %v1492, 0.0
    %v1495 = vrot.slane %v1493, 1
    %v1497 = vmax.f32 %v1493, %v1495
    %v1498 = vperm.slane %v1497, 0
    %1499 = vset.pattern.permute.xlu0 60
    %1500 = vperm.xlu0 %1499, %v75
    %v1501 = vpop.permute.xlu0 %1500
    %v1503 = vmul.f32 %v1498, %v1501
    %v1504 = vadd.f32 %v1456, %v1503
    %v1505 = vperm.slane %v1497, 2
    %1506 = vset.pattern.permute.xlu0 61
    %1507 = vperm.xlu0 %1506, %v75
    %v1508 = vpop.permute.xlu0 %1507
    %v1510 = vmul.f32 %v1505, %v1508
    %v1511 = vadd.f32 %v1504, %v1510
    %v1512 = vperm.slane %v1497, 4
    %1513 = vset.pattern.permute.xlu0 62
    %1514 = vperm.xlu0 %1513, %v75
    %v1515 = vpop.permute.xlu0 %1514
    %v1517 = vmul.f32 %v1512, %v1515
    %v1518 = vadd.f32 %v1511, %v1517
    %s1519 = sld [smem:[#allocation4 + $0x7]]
    %s1520 = sld [smem:[#allocation2 + $0x3f]]
    %v1521 = vstv %s1520
    %v1522 = vmul.f32 %v51, %v1521
    %v1523 = vmul.f32 %v52, %v1521
    %s1524 = sld [smem:[#allocation2 + $0x40]]
    %v1525 = vstv %s1524
    %v1526 = vmul.f32 %v59, %v1525
    %v1527 = vmul.f32 %v60, %v1525
    %v1528 = vadd.f32 %v1522, %v1526
    %v1529 = vadd.f32 %v1523, %v1527
    %s1530 = sld [smem:[#allocation2 + $0x41]]
    %v1531 = vstv %s1530
    %v1532 = vmul.f32 %v67, %v1531
    %v1533 = vmul.f32 %v68, %v1531
    %v1534 = vadd.f32 %v1528, %v1532
    %v1535 = vadd.f32 %v1529, %v1533
    %s1536 = sld [smem:[#allocation2 + $0x42]]
    %v1537 = vstv %s1536
    %v1538 = vmul.f32 %v52, %v1537
    %v1539 = vmul.f32 %v53, %v1537
    %v1540 = vadd.f32 %v1534, %v1538
    %v1541 = vadd.f32 %v1535, %v1539
    %s1542 = sld [smem:[#allocation2 + $0x43]]
    %v1543 = vstv %s1542
    %v1544 = vmul.f32 %v60, %v1543
    %v1545 = vmul.f32 %v61, %v1543
    %v1546 = vadd.f32 %v1540, %v1544
    %v1547 = vadd.f32 %v1541, %v1545
    %s1548 = sld [smem:[#allocation2 + $0x44]]
    %v1549 = vstv %s1548
    %v1550 = vmul.f32 %v68, %v1549
    %v1551 = vmul.f32 %v69, %v1549
    %v1552 = vadd.f32 %v1546, %v1550
    %v1553 = vadd.f32 %v1547, %v1551
    %s1554 = sld [smem:[#allocation2 + $0x45]]
    %v1555 = vstv %s1554
    %v1556 = vmul.f32 %v53, %v1555
    %v1557 = vmul.f32 %v54, %v1555
    %v1558 = vadd.f32 %v1552, %v1556
    %v1559 = vadd.f32 %v1553, %v1557
    %s1560 = sld [smem:[#allocation2 + $0x46]]
    %v1561 = vstv %s1560
    %v1562 = vmul.f32 %v61, %v1561
    %v1563 = vmul.f32 %v62, %v1561
    %v1564 = vadd.f32 %v1558, %v1562
    %v1565 = vadd.f32 %v1559, %v1563
    %s1566 = sld [smem:[#allocation2 + $0x47]]
    %v1567 = vstv %s1566
    %v1568 = vmul.f32 %v69, %v1567
    %v1569 = vmul.f32 %v70, %v1567
    %v1570 = vadd.f32 %v1564, %v1568
    %v1571 = vadd.f32 %v1565, %v1569
    %v1572 = vmax.f32 %v1570, %v1571
    %v1573 = vstv %s1519
    %v1574 = vadd.f32 %v1572, %v1573
    %v1575 = vmax.f32 %v1574, 0.0
    %v1577 = vrot.slane %v1575, 1
    %v1579 = vmax.f32 %v1575, %v1577
    %v1580 = vperm.slane %v1579, 0
    %1581 = vset.pattern.permute.xlu0 63
    %1582 = vperm.xlu0 %1581, %v75
    %v1583 = vpop.permute.xlu0 %1582
    %v1585 = vmul.f32 %v1580, %v1583
    %v1586 = vadd.f32 %v1518, %v1585
    %v1587 = vperm.slane %v1579, 2
    %1588 = vset.pattern.permute.xlu0 64
    %1589 = vperm.xlu0 %1588, %v75
    %v1590 = vpop.permute.xlu0 %1589
    %v1592 = vmul.f32 %v1587, %v1590
    %v1593 = vadd.f32 %v1586, %v1592
    %v1594 = vperm.slane %v1579, 4
    %1595 = vset.pattern.permute.xlu0 65
    %1596 = vperm.xlu0 %1595, %v75
    %v1597 = vpop.permute.xlu0 %1596
    %v1599 = vmul.f32 %v1594, %v1597
    %v1600 = vadd.f32 %v1593, %v1599
    %v1601 = vmul.f32 %v53, %v1521
    %v1602 = vmul.f32 %v54, %v1521
    %v1603 = vmul.f32 %v61, %v1525
    %v1604 = vmul.f32 %v62, %v1525
    %v1605 = vadd.f32 %v1601, %v1603
    %v1606 = vadd.f32 %v1602, %v1604
    %v1607 = vmul.f32 %v69, %v1531
    %v1608 = vmul.f32 %v70, %v1531
    %v1609 = vadd.f32 %v1605, %v1607
    %v1610 = vadd.f32 %v1606, %v1608
    %v1611 = vmul.f32 %v54, %v1537
    %v1612 = vmul.f32 %v55, %v1537
    %v1613 = vadd.f32 %v1609, %v1611
    %v1614 = vadd.f32 %v1610, %v1612
    %v1615 = vmul.f32 %v62, %v1543
    %v1616 = vmul.f32 %v63, %v1543
    %v1617 = vadd.f32 %v1613, %v1615
    %v1618 = vadd.f32 %v1614, %v1616
    %v1619 = vmul.f32 %v70, %v1549
    %v1620 = vmul.f32 %v71, %v1549
    %v1621 = vadd.f32 %v1617, %v1619
    %v1622 = vadd.f32 %v1618, %v1620
    %v1623 = vmul.f32 %v55, %v1555
    %v1624 = vmul.f32 %v56, %v1555
    %v1625 = vadd.f32 %v1621, %v1623
    %v1626 = vadd.f32 %v1622, %v1624
    %v1627 = vmul.f32 %v63, %v1561
    %v1628 = vmul.f32 %v64, %v1561
    %v1629 = vadd.f32 %v1625, %v1627
    %v1630 = vadd.f32 %v1626, %v1628
    %v1631 = vmul.f32 %v71, %v1567
    %v1632 = vmul.f32 %v72, %v1567
    %v1633 = vadd.f32 %v1629, %v1631
    %v1634 = vadd.f32 %v1630, %v1632
    %v1635 = vmax.f32 %v1633, %v1634
    %v1636 = vadd.f32 %v1635, %v1573
    %v1637 = vmax.f32 %v1636, 0.0
    %v1639 = vrot.slane %v1637, 1
    %v1641 = vmax.f32 %v1637, %v1639
    %v1642 = vperm.slane %v1641, 0
    %1643 = vset.pattern.permute.xlu0 66
    %1644 = vperm.xlu0 %1643, %v75
    %v1645 = vpop.permute.xlu0 %1644
    %v1647 = vmul.f32 %v1642, %v1645
    %v1648 = vadd.f32 %v1600, %v1647
    %v1649 = vperm.slane %v1641, 2
    %1650 = vset.pattern.permute.xlu0 67
    %1651 = vperm.xlu0 %1650, %v75
    %v1652 = vpop.permute.xlu0 %1651
    %v1654 = vmul.f32 %v1649, %v1652
    %v1655 = vadd.f32 %v1648, %v1654
    %v1656 = vperm.slane %v1641, 4
    %1657 = vset.pattern.permute.xlu0 68
    %1658 = vperm.xlu0 %1657, %v75
    %v1659 = vpop.permute.xlu0 %1658
    %v1661 = vmul.f32 %v1656, %v1659
    %v1662 = vadd.f32 %v1655, %v1661
    %v1663 = vmul.f32 %v55, %v1521
    %v1664 = vmul.f32 %v56, %v1521
    %v1665 = vmul.f32 %v63, %v1525
    %v1666 = vmul.f32 %v64, %v1525
    %v1667 = vadd.f32 %v1663, %v1665
    %v1668 = vadd.f32 %v1664, %v1666
    %v1669 = vmul.f32 %v71, %v1531
    %v1670 = vmul.f32 %v72, %v1531
    %v1671 = vadd.f32 %v1667, %v1669
    %v1672 = vadd.f32 %v1668, %v1670
    %v1673 = vmul.f32 %v56, %v1537
    %v1674 = vmul.f32 %v57, %v1537
    %v1675 = vadd.f32 %v1671, %v1673
    %v1676 = vadd.f32 %v1672, %v1674
    %v1677 = vmul.f32 %v64, %v1543
    %v1678 = vmul.f32 %v65, %v1543
    %v1679 = vadd.f32 %v1675, %v1677
    %v1680 = vadd.f32 %v1676, %v1678
    %v1681 = vmul.f32 %v72, %v1549
    %v1682 = vmul.f32 %v73, %v1549
    %v1683 = vadd.f32 %v1679, %v1681
    %v1684 = vadd.f32 %v1680, %v1682
    %v1685 = vmul.f32 %v57, %v1555
    %v1686 = vmul.f32 %v58, %v1555
    %v1687 = vadd.f32 %v1683, %v1685
    %v1688 = vadd.f32 %v1684, %v1686
    %v1689 = vmul.f32 %v65, %v1561
    %v1690 = vmul.f32 %v66, %v1561
    %v1691 = vadd.f32 %v1687, %v1689
    %v1692 = vadd.f32 %v1688, %v1690
    %v1693 = vmul.f32 %v73, %v1567
    %v1694 = vmul.f32 %v74, %v1567
    %v1695 = vadd.f32 %v1691, %v1693
    %v1696 = vadd.f32 %v1692, %v1694
    %v1697 = vmax.f32 %v1695, %v1696
    %v1698 = vadd.f32 %v1697, %v1573
    %v1699 = vmax.f32 %v1698, 0.0
    %v1701 = vrot.slane %v1699, 1
    %v1703 = vmax.f32 %v1699, %v1701
    %v1704 = vperm.slane %v1703, 0
    %1705 = vset.pattern.permute.xlu0 69
    %1706 = vperm.xlu0 %1705, %v75
    %v1707 = vpop.permute.xlu0 %1706
    %v1709 = vmul.f32 %v1704, %v1707
    %v1710 = vadd.f32 %v1662, %v1709
    %v1711 = vperm.slane %v1703, 2
    %1712 = vset.pattern.permute.xlu0 70
    %1713 = vperm.xlu0 %1712, %v75
    %v1714 = vpop.permute.xlu0 %1713
    %v1716 = vmul.f32 %v1711, %v1714
    %v1717 = vadd.f32 %v1710, %v1716
    %v1718 = vperm.slane %v1703, 4
    %1719 = vset.pattern.permute.xlu0 71
    %1720 = vperm.xlu0 %1719, %v75
    %v1721 = vpop.permute.xlu0 %1720
    %v1723 = vmul.f32 %v1718, %v1721
    %v1724 = vadd.f32 %v1717, %v1723
    %v1725 = vld [vmem:[%s4] sm:$0xf]
    %1727 = vset.pattern.permute.xlu0 0
    %1728 = vperm.xlu0 %1727, %v1725
    %v1729 = vpop.permute.xlu0 %1728
    %v1731 = vadd.f32 %v1724, %v1729
    %v1732 = vmax.f32 %v1731, 0.0
    %v1733 = vld [vmem:[%s5] sm:$0xff]
    %v1734 = vld [vmem:[%s5 + $0x8] sm:$0x3]
    %v1735 = vld [vmem:[%s6] sm:$0xff]
    %v1736 = vld [vmem:[%s6 + $0x8] sm:$0x3]
    %v1737 = vperm.slane %v1732, 0
    %1739 = vset.pattern.permute.xlu0 0
    %1740 = vperm.xlu0 %1739, %v1733
    %v1741 = vpop.permute.xlu0 %1740
    %1744 = vset.pattern.permute.xlu0 0
    %1745 = vperm.xlu0 %1744, %v1734
    %v1746 = vpop.permute.xlu0 %1745
    %v1748 = vmul.f32 %v1737, %v1741
    %v1749 = vmul.f32 %v1737, %v1746
    %1751 = vset.pattern.permute.xlu0 0
    %1752 = vperm.xlu0 %1751, %v1735
    %v1753 = vpop.permute.xlu0 %1752
    %1756 = vset.pattern.permute.xlu0 0
    %1757 = vperm.xlu0 %1756, %v1736
    %v1758 = vpop.permute.xlu0 %1757
    %v1760 = vadd.f32 %v1753, %v1748
    %v1761 = vadd.f32 %v1758, %v1749
    %v1762 = vperm.slane %v1732, 1
    %1763 = vset.pattern.permute.xlu0 1
    %1764 = vperm.xlu0 %1763, %v1733
    %v1765 = vpop.permute.xlu0 %1764
    %1767 = vset.pattern.permute.xlu0 1
    %1768 = vperm.xlu0 %1767, %v1734
    %v1769 = vpop.permute.xlu0 %1768
    %v1771 = vmul.f32 %v1762, %v1765
    %v1772 = vmul.f32 %v1762, %v1769
    %v1773 = vadd.f32 %v1760, %v1771
    %v1774 = vadd.f32 %v1761, %v1772
    %v1775 = vperm.slane %v1732, 2
    %1776 = vset.pattern.permute.xlu0 2
    %1777 = vperm.xlu0 %1776, %v1733
    %v1778 = vpop.permute.xlu0 %1777
    %1780 = vset.pattern.permute.xlu0 2
    %1781 = vperm.xlu0 %1780, %v1734
    %v1782 = vpop.permute.xlu0 %1781
    %v1784 = vmul.f32 %v1775, %v1778
    %v1785 = vmul.f32 %v1775, %v1782
    %v1786 = vadd.f32 %v1773, %v1784
    %v1787 = vadd.f32 %v1774, %v1785
    %v1788 = vperm.slane %v1732, 3
    %1789 = vset.pattern.permute.xlu0 3
    %1790 = vperm.xlu0 %1789, %v1733
    %v1791 = vpop.permute.xlu0 %1790
    %1793 = vset.pattern.permute.xlu0 3
    %1794 = vperm.xlu0 %1793, %v1734
    %v1795 = vpop.permute.xlu0 %1794
    %v1797 = vmul.f32 %v1788, %v1791
    %v1798 = vmul.f32 %v1788, %v1795
    %v1799 = vadd.f32 %v1786, %v1797
    %v1800 = vadd.f32 %v1787, %v1798
    %1801 = vst [vmem:[%s7] sm:$0xff] %v1799
    %1802 = vst [vmem:[%s7 + $0x8] sm:$0x3] %v1800
    // Predicated region
    $region38: #{digits_convnet_forward.1} parent=1 // pred_check
      _
    $region39: #{digits_convnet_forward.1} parent=1 // pred_check_branch
      %1804 = sbr.rel (0) target = $region41
    $region40: #{digits_convnet_forward.1} parent=1 // pred_region
      _
    $region41: #{digits_convnet_forward.1} parent=1 // pred_fallthru
      _
    // Predicated region
    $region42: #{digits_convnet_forward.1} parent=1 // pred_check
      _
    $region43: #{digits_convnet_forward.1} parent=1 // pred_check_branch
      %1806 = sbr.rel (0) target = $region45
    $region44: #{digits_convnet_forward.1} parent=1 // pred_region
      _
    $region45: #{digits_convnet_forward.1} parent=1 // pred_fallthru
      _
    %1807 = vsyncpa [#allocation3], 1
    %1808 = vsyncpa [#allocation5], 1

</llo_original>
